<compile_context>
chip_gen: v6e
topology: v6e:2x2x1
jax: 0.10.0
libtpu: 0.0.40
codegen_flags: <defaults>
</compile_context>

<pallas_src>
import jax
import jax.numpy as jnp
from jax.experimental import pallas as pl
from jax.experimental.pallas import tpu as pltpu

_LANES = 128


def _round_up(x, m):
    return (x + m - 1) // m * m


# ------------------------------- fused kernel --------------------------------

def _bottleneck_kernel(x_ref, w1_ref, b1_ref, w2_ref, b2_ref, w3_ref, b3_ref,
                       o_ref, y1pad_ref):
    nt, H, W, cin = x_ref.shape
    cmid = w1_ref.shape[1]
    cout = w3_ref.shape[1]
    rows = nt * H * W

    # ---- conv1 (1x1x1, BN1 scale folded into w1) + bias + relu ----
    a1 = jnp.dot(x_ref[...].reshape(rows, cin), w1_ref[...],
                 preferred_element_type=jnp.float32)
    y1 = jnp.maximum(a1 + b1_ref[...], 0.0)

    # ---- halo-padded VMEM scratch implements conv2's (0,1,1) spatial zero padding.
    # Only the border strips are zeroed (interior is fully overwritten below); the border
    # is re-zeroed every step because the grid axis is "parallel" (no per-core "first step").
    zero_rows = jnp.zeros((nt, 1, W + 2, cmid), y1pad_ref.dtype)
    zero_cols = jnp.zeros((nt, H + 2, 1, cmid), y1pad_ref.dtype)
    y1pad_ref[:, 0:1, :, :] = zero_rows
    y1pad_ref[:, H + 1:H + 2, :, :] = zero_rows
    y1pad_ref[:, :, 0:1, :] = zero_cols
    y1pad_ref[:, :, W + 1:W + 2, :] = zero_cols
    y1pad_ref[:, 1:H + 1, 1:W + 1, :] = (
        y1.reshape(nt, H, W, cmid).astype(y1pad_ref.dtype))

    # ---- conv2 (1,3,3), pad (0,1,1): 9 accumulating MXU dots (no 9*cmid concat temp) ----
    a2 = None
    t = 0
    for dh in range(3):
        for dw in range(3):
            tap = y1pad_ref[:, dh:dh + H, dw:dw + W, :].reshape(rows, cmid)
            d = jnp.dot(tap, w2_ref[t * cmid:(t + 1) * cmid, :],
                        preferred_element_type=jnp.float32)
            a2 = d if a2 is None else a2 + d
            t += 1
    y2 = jnp.maximum(a2 + b2_ref[...], 0.0)

    # ---- conv3 (1x1x1, BN3 scale folded) + bias + residual add + relu ----
    a3 = jnp.dot(y2.astype(w3_ref.dtype), w3_ref[...],
                 preferred_element_type=jnp.float32)
    res = x_ref[...].reshape(rows, cout).astype(jnp.float32)   # cin_p == cout_p (asserted)
    out = jnp.maximum(a3 + b3_ref[...] + res, 0.0)
    o_ref[...] = out.reshape(nt, H, W, cout).astype(o_ref.dtype)


# ------------------------------- wrapper --------------------------------------

def _vmem_capacity_bytes():
    try:
        return int(pltpu.get_tpu_info().vmem_capacity_bytes)
    except Exception:
        return 64 << 20          # conservative (v7x per-TC size); safe on v5e/v6e too


def _step_vmem_bytes(nt, H, W, cin_p, cmid_p, cout_p):
    """Rough per-grid-step VMEM footprint (double-buffered I/O + scratch + temps)."""
    rows = nt * H * W
    x_in = 2 * rows * cin_p * 2                        # bf16 input, 2 buffers
    out = 2 * rows * cout_p * 2                        # bf16 output, 2 buffers
    halo = nt * (H + 2) * (W + 2) * cmid_p * 2         # bf16 halo scratch
    temps = rows * (4 * cmid_p + 4 * cout_p + 2 * cmid_p)  # f32 acc / out + one bf16 tap
    return x_in + out + halo + temps


def _pick_nt_tile(NT, H, W, cin_p, cmid_p, cout_p, budget):
    """Largest NT divisor that fits the VMEM budget, preferring >= 4 grid steps
    (>= 2 per TensorCore on v7x) so DMA overlaps compute, then >= 2, then 1."""
    divisors = sorted(d for d in range(1, NT + 1) if NT % d == 0)
    fits = [d for d in divisors
            if _step_vmem_bytes(d, H, W, cin_p, cmid_p, cout_p) <= budget] or [1]
    for min_steps in (4, 2, 1):
        cands = [d for d in fits if NT // d >= min_steps]
        if cands:
            return max(cands)
    return fits[0]
    # TODO(synk): for very large (H, W) planes where even nt_tile=1 exceeds the budget,
    #             add a spatial grid axis over H with a 2-row halo.


def bottleneck_forward(x_ncthw, p):
    """Fused Bottleneck forward (head_conv=1, stride=1, downsample=None). NCTHW in / out."""
    N, Cin, T, H, W = x_ncthw.shape
    cin_p, cmid_p = p['w1'].shape
    cout_p = p['w3'].shape[1]
    assert cin_p == cout_p, "residual path requires inplanes == planes * expansion"
    assert Cin <= cin_p

    NT = N * T
    cap = _vmem_capacity_bytes()
    budget = (3 * cap) // 8                       # ~24 MiB on v7x, ~48 MiB on v5e/v6e
    nt_tile = _pick_nt_tile(NT, H, W, cin_p, cmid_p, cout_p, budget)
    grid = (NT // nt_tile,)
    vmem_limit = min((3 * cap) // 4, 128 * 1024 * 1024)

    # single channel-last transpose at the module boundary (NCTHW is the PyTorch contract)
    x = jnp.transpose(x_ncthw, (0, 2, 3, 4, 1)).reshape(NT, H, W, Cin)
    x = jnp.pad(x, ((0, 0), (0, 0), (0, 0), (0, cin_p - Cin))).astype(jnp.bfloat16)

    out = pl.pallas_call(
        _bottleneck_kernel,
        out_shape=jax.ShapeDtypeStruct((NT, H, W, cout_p), jnp.bfloat16),
        grid=grid,
        in_specs=[
            pl.BlockSpec((nt_tile, H, W, cin_p), lambda i: (i, 0, 0, 0)),   # x (also residual)
            pl.BlockSpec((cin_p, cmid_p), lambda i: (0, 0)),                # w1 (s1 folded)
            pl.BlockSpec((1, cmid_p), lambda i: (0, 0)),                    # b1
            pl.BlockSpec((9 * cmid_p, cmid_p), lambda i: (0, 0)),           # w2 (taps, s2 folded)
            pl.BlockSpec((1, cmid_p), lambda i: (0, 0)),                    # b2
            pl.BlockSpec((cmid_p, cout_p), lambda i: (0, 0)),               # w3 (s3 folded)
            pl.BlockSpec((1, cout_p), lambda i: (0, 0)),                    # b3
        ],
        out_specs=pl.BlockSpec((nt_tile, H, W, cout_p), lambda i: (i, 0, 0, 0)),
        scratch_shapes=[pltpu.VMEM((nt_tile, H + 2, W + 2, cmid_p), jnp.bfloat16)],
        compiler_params=pltpu.CompilerParams(
            dimension_semantics=("parallel",),
            vmem_limit_bytes=vmem_limit),
    )(x, p['w1'], p['b1'], p['w2'], p['b2'], p['w3'], p['b3'])

    # Drop channel padding and restore the NCTHW f32 contract; the slice/transpose/cast
    # fuse into a single XLA op at the module boundary (kernel writes stay bf16).
    out = out[..., :Cin]
    return jnp.transpose(out.reshape(N, T, H, W, Cin), (0, 4, 1, 2, 3)).astype(jnp.float32)


# ------------------------------- params ---------------------------------------

def make_params(w1_pt, w2_pt, w3_pt, s1, b1, s2, b2, s3, b3):
    """Fold PyTorch OIDHW conv weights + BN affines into lane-padded bf16/f32 kernel params.

    BN scales are folded into the conv output columns in f32, *then* cast to bf16."""
    cmid, cin = w1_pt.shape[0], w1_pt.shape[1]
    cout = w3_pt.shape[0]
    assert cin == cout, "residual path requires inplanes == planes * expansion"
    cin_p, cmid_p, cout_p = (_round_up(c, _LANES) for c in (cin, cmid, cout))

    def pad2(a, r, c):
        return jnp.pad(a, ((0, r - a.shape[0]), (0, c - a.shape[1])))

    def pad_vec(v, c):
        return jnp.pad(v.reshape(1, -1), ((0, 0), (0, c - v.size))).astype(jnp.float32)

    w1 = pad2(w1_pt[:, :, 0, 0, 0].T * s1[None, :], cin_p, cmid_p).astype(jnp.bfloat16)
    w2_taps = [pad2(w2_pt[:, :, 0, dh, dw].T * s2[None, :], cmid_p, cmid_p)
               for dh in range(3) for dw in range(3)]
    w2 = jnp.concatenate(w2_taps, axis=0).astype(jnp.bfloat16)            # (9*cmid_p, cmid_p)
    w3 = pad2(w3_pt[:, :, 0, 0, 0].T * s3[None, :], cmid_p, cout_p).astype(jnp.bfloat16)

    return dict(w1=w1, w2=w2, w3=w3,
                b1=pad_vec(b1, cmid_p), b2=pad_vec(b2, cmid_p), b3=pad_vec(b3, cout_p))


def _bn_affine(key, C, eps=1e-5):
    k1, k2, k3, k4 = jax.random.split(key, 4)
    gamma = 1.0 + 0.1 * jax.random.normal(k1, (C,), jnp.float32)
    beta = 0.1 * jax.random.normal(k2, (C,), jnp.float32)
    mean = 0.1 * jax.random.normal(k3, (C,), jnp.float32)
    var = 1.0 + 0.1 * jax.random.uniform(k4, (C,), jnp.float32)
    scale = gamma / jnp.sqrt(var + eps)
    bias = beta - mean * scale
    return scale, bias


# ------------------------------- reference ------------------------------------

def _reference(x, w1, w2, w3, s1, b1, s2, b2, s3, b3):
    # Independent lax-conv check in PyTorch NCDHW / OIDHW layout.  The reference applies the
    # same scale-folding + bf16 rounding of weights / inter-stage activations the kernel uses,
    # so the compare isolates kernel logic rather than the (intentional) bf16 memory-traffic
    # optimization.
    dn = ('NCDHW', 'OIDHW', 'NCDHW')
    q = lambda a: a.astype(jnp.bfloat16).astype(jnp.float32)
    fold = lambda w, s: q(w * s.reshape(-1, 1, 1, 1, 1))
    badd = lambda y, b: y + b.reshape(1, -1, 1, 1, 1)

    xq = q(x)
    y = jax.lax.conv_general_dilated(xq, fold(w1, s1), (1, 1, 1), 'VALID',
                                     dimension_numbers=dn)
    y = q(jax.nn.relu(badd(y, b1)))
    y = jax.lax.conv_general_dilated(y, fold(w2, s2), (1, 1, 1),
                                     ((0, 0), (1, 1), (1, 1)), dimension_numbers=dn)
    y = q(jax.nn.relu(badd(y, b2)))
    y = jax.lax.conv_general_dilated(y, fold(w3, s3), (1, 1, 1), 'VALID',
                                     dimension_numbers=dn)
    y = badd(y, b3)
    return jax.nn.relu(y + xq)


# ------------------------------- demo / test -----------------------------------

if __name__ == "__main__":
    inplanes, planes, expansion = 16, 4, 4        # inplanes == planes*expansion, no downsample
    N, T, H, W = 2, 4, 8, 8

    key = jax.random.PRNGKey(0)
    kx, k1, k2, k3, kb1, kb2, kb3 = jax.random.split(key, 7)

    x = jax.random.normal(kx, (N, inplanes, T, H, W), jnp.float32)

    # PyTorch-shaped conv weights (O, I, kT, kH, kW), no bias.
    w1_pt = 0.2 * jax.random.normal(k1, (planes, inplanes, 1, 1, 1), jnp.float32)
    w2_pt = 0.2 * jax.random.normal(k2, (planes, planes, 1, 3, 3), jnp.float32)
    w3_pt = 0.2 * jax.random.normal(k3, (planes * expansion, planes, 1, 1, 1), jnp.float32)

    s1, b1 = _bn_affine(kb1, planes)
    s2, b2 = _bn_affine(kb2, planes)
    s3, b3 = _bn_affine(kb3, planes * expansion)

    params = make_params(w1_pt, w2_pt, w3_pt, s1, b1, s2, b2, s3, b3)

    out = jax.jit(bottleneck_forward)(x, params)
    out = jax.block_until_ready(out)

    ref = _reference(x, w1_pt, w2_pt, w3_pt, s1, b1, s2, b2, s3, b3)
    assert out.shape == (N, planes * expansion, T, H, W), out.shape
    err = float(jnp.max(jnp.abs(out - ref)))
    assert jnp.allclose(out, ref, atol=5e-2, rtol=5e-2), f"max abs err {err}"

    print("KERNEL_OK")
</pallas_src>

<mosaic_0001>
module attributes {stable_mosaic.version = 11 : i64} {
  func.func @_bottleneck_kernel(%arg0: i32, %arg1: memref<2x8x8x128xbf16, #tpu.memory_space<vmem>>, %arg2: memref<128x128xbf16, #tpu.memory_space<vmem>>, %arg3: memref<1x128xf32, #tpu.memory_space<vmem>>, %arg4: memref<1152x128xbf16, #tpu.memory_space<vmem>>, %arg5: memref<1x128xf32, #tpu.memory_space<vmem>>, %arg6: memref<128x128xbf16, #tpu.memory_space<vmem>>, %arg7: memref<1x128xf32, #tpu.memory_space<vmem>>, %arg8: memref<2x8x8x128xbf16, #tpu.memory_space<vmem>>, %arg9: memref<2x10x10x128xbf16, #tpu.memory_space<vmem>>) attributes {dimension_semantics = [#tpu.dimension_semantics<parallel>], iteration_bounds = array<i64: 4>, scalar_prefetch = 0 : i64, scratch_operands = 1 : i64, tpu.core_type = #tpu.core_type<tc>, window_params = [{transform_indices = @transform_0, window_bounds = array<i64: 2, 8, 8, 128>}, {pipeline_mode = #tpu.pipeline_mode<synchronous>, transform_indices = @transform_1, window_bounds = array<i64: 128, 128>}, {pipeline_mode = #tpu.pipeline_mode<synchronous>, transform_indices = @transform_2, window_bounds = array<i64: 1, 128>}, {pipeline_mode = #tpu.pipeline_mode<synchronous>, transform_indices = @transform_3, window_bounds = array<i64: 1152, 128>}, {pipeline_mode = #tpu.pipeline_mode<synchronous>, transform_indices = @transform_4, window_bounds = array<i64: 1, 128>}, {pipeline_mode = #tpu.pipeline_mode<synchronous>, transform_indices = @transform_5, window_bounds = array<i64: 128, 128>}, {pipeline_mode = #tpu.pipeline_mode<synchronous>, transform_indices = @transform_6, window_bounds = array<i64: 1, 128>}, {transform_indices = @transform_7, window_bounds = array<i64: 2, 8, 8, 128>}]} {
    %c0 = arith.constant 0 : index
    %c0_0 = arith.constant 0 : index
    %c0_1 = arith.constant 0 : index
    %c0_2 = arith.constant 0 : index
    %0 = vector.load %arg1[%c0, %c0_0, %c0_1, %c0_2] : memref<2x8x8x128xbf16, #tpu.memory_space<vmem>>, vector<2x8x8x128xbf16>
    %1 = vector.shape_cast %0 : vector<2x8x8x128xbf16> to vector<128x128xbf16>
    %c0_3 = arith.constant 0 : index
    %c0_4 = arith.constant 0 : index
    %2 = vector.load %arg2[%c0_3, %c0_4] : memref<128x128xbf16, #tpu.memory_space<vmem>>, vector<128x128xbf16>
    %cst = arith.constant dense<0.000000e+00> : vector<128x128xf32>
    %3 = tpu.matmul %1, %2, %cst {dimension_numbers = #tpu.dot_dimension_numbers<[1], [0], [0], [1], [0, 0, 1, 1], [], []>} : vector<128x128xbf16>, vector<128x128xbf16>, vector<128x128xf32> -> vector<128x128xf32>
    %c0_5 = arith.constant 0 : index
    %c0_6 = arith.constant 0 : index
    %4 = vector.load %arg3[%c0_5, %c0_6] : memref<1x128xf32, #tpu.memory_space<vmem>>, vector<1x128xf32>
    %5 = vector.broadcast %4 : vector<1x128xf32> to vector<128x128xf32>
    %6 = arith.addf %3, %5 : vector<128x128xf32>
    %cst_7 = arith.constant 0.000000e+00 : f32
    %7 = vector.broadcast %cst_7 : f32 to vector<128x128xf32>
    %8 = arith.maximumf %6, %7 : vector<128x128xf32>
    %cst_8 = arith.constant 0.000000e+00 : bf16
    %9 = vector.broadcast %cst_8 : bf16 to vector<2x1x10x128xbf16>
    %cst_9 = arith.constant 0.000000e+00 : bf16
    %10 = vector.broadcast %cst_9 : bf16 to vector<2x10x1x128xbf16>
    %c0_10 = arith.constant 0 : index
    %c0_11 = arith.constant 0 : index
    %c0_12 = arith.constant 0 : index
    %c0_13 = arith.constant 0 : index
    %11 = vector.load %arg9[%c0_10, %c0_11, %c0_12, %c0_13] : memref<2x10x10x128xbf16, #tpu.memory_space<vmem>>, vector<2x1x10x128xbf16>
    tpu.vector_store %arg9[%c0_10, %c0_11, %c0_12, %c0_13], %9 {strides = array<i32>} : memref<2x10x10x128xbf16, #tpu.memory_space<vmem>>, vector<2x1x10x128xbf16>,
    %c0_14 = arith.constant 0 : index
    %c9 = arith.constant 9 : index
    %c0_15 = arith.constant 0 : index
    %c0_16 = arith.constant 0 : index
    %12 = vector.load %arg9[%c0_14, %c9, %c0_15, %c0_16] : memref<2x10x10x128xbf16, #tpu.memory_space<vmem>>, vector<2x1x10x128xbf16>
    tpu.vector_store %arg9[%c0_14, %c9, %c0_15, %c0_16], %9 {strides = array<i32>} : memref<2x10x10x128xbf16, #tpu.memory_space<vmem>>, vector<2x1x10x128xbf16>,
    %c0_17 = arith.constant 0 : index
    %c0_18 = arith.constant 0 : index
    %c0_19 = arith.constant 0 : index
    %c0_20 = arith.constant 0 : index
    %13 = vector.load %arg9[%c0_17, %c0_18, %c0_19, %c0_20] : memref<2x10x10x128xbf16, #tpu.memory_space<vmem>>, vector<2x10x1x128xbf16>
    tpu.vector_store %arg9[%c0_17, %c0_18, %c0_19, %c0_20], %10 {strides = array<i32>} : memref<2x10x10x128xbf16, #tpu.memory_space<vmem>>, vector<2x10x1x128xbf16>,
    %c0_21 = arith.constant 0 : index
    %c0_22 = arith.constant 0 : index
    %c9_23 = arith.constant 9 : index
    %c0_24 = arith.constant 0 : index
    %14 = vector.load %arg9[%c0_21, %c0_22, %c9_23, %c0_24] : memref<2x10x10x128xbf16, #tpu.memory_space<vmem>>, vector<2x10x1x128xbf16>
    tpu.vector_store %arg9[%c0_21, %c0_22, %c9_23, %c0_24], %10 {strides = array<i32>} : memref<2x10x10x128xbf16, #tpu.memory_space<vmem>>, vector<2x10x1x128xbf16>,
    %15 = vector.shape_cast %8 : vector<128x128xf32> to vector<2x8x8x128xf32>
    %16 = arith.truncf %15 : vector<2x8x8x128xf32> to vector<2x8x8x128xbf16>
    %c0_25 = arith.constant 0 : index
    %c1 = arith.constant 1 : index
    %c1_26 = arith.constant 1 : index
    %c0_27 = arith.constant 0 : index
    %17 = vector.load %arg9[%c0_25, %c1, %c1_26, %c0_27] : memref<2x10x10x128xbf16, #tpu.memory_space<vmem>>, vector<2x8x8x128xbf16>
    tpu.vector_store %arg9[%c0_25, %c1, %c1_26, %c0_27], %16 {strides = array<i32>} : memref<2x10x10x128xbf16, #tpu.memory_space<vmem>>, vector<2x8x8x128xbf16>,
    %c0_28 = arith.constant 0 : index
    %c0_29 = arith.constant 0 : index
    %c0_30 = arith.constant 0 : index
    %c0_31 = arith.constant 0 : index
    %18 = vector.load %arg9[%c0_28, %c0_29, %c0_30, %c0_31] : memref<2x10x10x128xbf16, #tpu.memory_space<vmem>>, vector<2x8x8x128xbf16>
    %19 = vector.shape_cast %18 : vector<2x8x8x128xbf16> to vector<128x128xbf16>
    %c0_32 = arith.constant 0 : index
    %c0_33 = arith.constant 0 : index
    %20 = vector.load %arg4[%c0_32, %c0_33] : memref<1152x128xbf16, #tpu.memory_space<vmem>>, vector<128x128xbf16>
    %cst_34 = arith.constant dense<0.000000e+00> : vector<128x128xf32>
    %21 = tpu.matmul %19, %20, %cst_34 {dimension_numbers = #tpu.dot_dimension_numbers<[1], [0], [0], [1], [0, 0, 1, 1], [], []>} : vector<128x128xbf16>, vector<128x128xbf16>, vector<128x128xf32> -> vector<128x128xf32>
    %c0_35 = arith.constant 0 : index
    %c0_36 = arith.constant 0 : index
    %c1_37 = arith.constant 1 : index
    %c0_38 = arith.constant 0 : index
    %22 = vector.load %arg9[%c0_35, %c0_36, %c1_37, %c0_38] : memref<2x10x10x128xbf16, #tpu.memory_space<vmem>>, vector<2x8x8x128xbf16>
    %23 = vector.shape_cast %22 : vector<2x8x8x128xbf16> to vector<128x128xbf16>
    %c128 = arith.constant 128 : index
    %c0_39 = arith.constant 0 : index
    %24 = vector.load %arg4[%c128, %c0_39] : memref<1152x128xbf16, #tpu.memory_space<vmem>>, vector<128x128xbf16>
    %cst_40 = arith.constant dense<0.000000e+00> : vector<128x128xf32>
    %25 = tpu.matmul %23, %24, %cst_40 {dimension_numbers = #tpu.dot_dimension_numbers<[1], [0], [0], [1], [0, 0, 1, 1], [], []>} : vector<128x128xbf16>, vector<128x128xbf16>, vector<128x128xf32> -> vector<128x128xf32>
    %26 = arith.addf %21, %25 : vector<128x128xf32>
    %c0_41 = arith.constant 0 : index
    %c0_42 = arith.constant 0 : index
    %c2 = arith.constant 2 : index
    %c0_43 = arith.constant 0 : index
    %27 = vector.load %arg9[%c0_41, %c0_42, %c2, %c0_43] : memref<2x10x10x128xbf16, #tpu.memory_space<vmem>>, vector<2x8x8x128xbf16>
    %28 = vector.shape_cast %27 : vector<2x8x8x128xbf16> to vector<128x128xbf16>
    %c256 = arith.constant 256 : index
    %c0_44 = arith.constant 0 : index
    %29 = vector.load %arg4[%c256, %c0_44] : memref<1152x128xbf16, #tpu.memory_space<vmem>>, vector<128x128xbf16>
    %cst_45 = arith.constant dense<0.000000e+00> : vector<128x128xf32>
    %30 = tpu.matmul %28, %29, %cst_45 {dimension_numbers = #tpu.dot_dimension_numbers<[1], [0], [0], [1], [0, 0, 1, 1], [], []>} : vector<128x128xbf16>, vector<128x128xbf16>, vector<128x128xf32> -> vector<128x128xf32>
    %31 = arith.addf %26, %30 : vector<128x128xf32>
    %c0_46 = arith.constant 0 : index
    %c1_47 = arith.constant 1 : index
    %c0_48 = arith.constant 0 : index
    %c0_49 = arith.constant 0 : index
    %32 = vector.load %arg9[%c0_46, %c1_47, %c0_48, %c0_49] : memref<2x10x10x128xbf16, #tpu.memory_space<vmem>>, vector<2x8x8x128xbf16>
    %33 = vector.shape_cast %32 : vector<2x8x8x128xbf16> to vector<128x128xbf16>
    %c384 = arith.constant 384 : index
    %c0_50 = arith.constant 0 : index
    %34 = vector.load %arg4[%c384, %c0_50] : memref<1152x128xbf16, #tpu.memory_space<vmem>>, vector<128x128xbf16>
    %cst_51 = arith.constant dense<0.000000e+00> : vector<128x128xf32>
    %35 = tpu.matmul %33, %34, %cst_51 {dimension_numbers = #tpu.dot_dimension_numbers<[1], [0], [0], [1], [0, 0, 1, 1], [], []>} : vector<128x128xbf16>, vector<128x128xbf16>, vector<128x128xf32> -> vector<128x128xf32>
    %36 = arith.addf %31, %35 : vector<128x128xf32>
    %c0_52 = arith.constant 0 : index
    %c1_53 = arith.constant 1 : index
    %c1_54 = arith.constant 1 : index
    %c0_55 = arith.constant 0 : index
    %37 = vector.load %arg9[%c0_52, %c1_53, %c1_54, %c0_55] : memref<2x10x10x128xbf16, #tpu.memory_space<vmem>>, vector<2x8x8x128xbf16>
    %38 = vector.shape_cast %37 : vector<2x8x8x128xbf16> to vector<128x128xbf16>
    %c512 = arith.constant 512 : index
    %c0_56 = arith.constant 0 : index
    %39 = vector.load %arg4[%c512, %c0_56] : memref<1152x128xbf16, #tpu.memory_space<vmem>>, vector<128x128xbf16>
    %cst_57 = arith.constant dense<0.000000e+00> : vector<128x128xf32>
    %40 = tpu.matmul %38, %39, %cst_57 {dimension_numbers = #tpu.dot_dimension_numbers<[1], [0], [0], [1], [0, 0, 1, 1], [], []>} : vector<128x128xbf16>, vector<128x128xbf16>, vector<128x128xf32> -> vector<128x128xf32>
    %41 = arith.addf %36, %40 : vector<128x128xf32>
    %c0_58 = arith.constant 0 : index
    %c1_59 = arith.constant 1 : index
    %c2_60 = arith.constant 2 : index
    %c0_61 = arith.constant 0 : index
    %42 = vector.load %arg9[%c0_58, %c1_59, %c2_60, %c0_61] : memref<2x10x10x128xbf16, #tpu.memory_space<vmem>>, vector<2x8x8x128xbf16>
    %43 = vector.shape_cast %42 : vector<2x8x8x128xbf16> to vector<128x128xbf16>
    %c640 = arith.constant 640 : index
    %c0_62 = arith.constant 0 : index
    %44 = vector.load %arg4[%c640, %c0_62] : memref<1152x128xbf16, #tpu.memory_space<vmem>>, vector<128x128xbf16>
    %cst_63 = arith.constant dense<0.000000e+00> : vector<128x128xf32>
    %45 = tpu.matmul %43, %44, %cst_63 {dimension_numbers = #tpu.dot_dimension_numbers<[1], [0], [0], [1], [0, 0, 1, 1], [], []>} : vector<128x128xbf16>, vector<128x128xbf16>, vector<128x128xf32> -> vector<128x128xf32>
    %46 = arith.addf %41, %45 : vector<128x128xf32>
    %c0_64 = arith.constant 0 : index
    %c2_65 = arith.constant 2 : index
    %c0_66 = arith.constant 0 : index
    %c0_67 = arith.constant 0 : index
    %47 = vector.load %arg9[%c0_64, %c2_65, %c0_66, %c0_67] : memref<2x10x10x128xbf16, #tpu.memory_space<vmem>>, vector<2x8x8x128xbf16>
    %48 = vector.shape_cast %47 : vector<2x8x8x128xbf16> to vector<128x128xbf16>
    %c768 = arith.constant 768 : index
    %c0_68 = arith.constant 0 : index
    %49 = vector.load %arg4[%c768, %c0_68] : memref<1152x128xbf16, #tpu.memory_space<vmem>>, vector<128x128xbf16>
    %cst_69 = arith.constant dense<0.000000e+00> : vector<128x128xf32>
    %50 = tpu.matmul %48, %49, %cst_69 {dimension_numbers = #tpu.dot_dimension_numbers<[1], [0], [0], [1], [0, 0, 1, 1], [], []>} : vector<128x128xbf16>, vector<128x128xbf16>, vector<128x128xf32> -> vector<128x128xf32>
    %51 = arith.addf %46, %50 : vector<128x128xf32>
    %c0_70 = arith.constant 0 : index
    %c2_71 = arith.constant 2 : index
    %c1_72 = arith.constant 1 : index
    %c0_73 = arith.constant 0 : index
    %52 = vector.load %arg9[%c0_70, %c2_71, %c1_72, %c0_73] : memref<2x10x10x128xbf16, #tpu.memory_space<vmem>>, vector<2x8x8x128xbf16>
    %53 = vector.shape_cast %52 : vector<2x8x8x128xbf16> to vector<128x128xbf16>
    %c896 = arith.constant 896 : index
    %c0_74 = arith.constant 0 : index
    %54 = vector.load %arg4[%c896, %c0_74] : memref<1152x128xbf16, #tpu.memory_space<vmem>>, vector<128x128xbf16>
    %cst_75 = arith.constant dense<0.000000e+00> : vector<128x128xf32>
    %55 = tpu.matmul %53, %54, %cst_75 {dimension_numbers = #tpu.dot_dimension_numbers<[1], [0], [0], [1], [0, 0, 1, 1], [], []>} : vector<128x128xbf16>, vector<128x128xbf16>, vector<128x128xf32> -> vector<128x128xf32>
    %56 = arith.addf %51, %55 : vector<128x128xf32>
    %c0_76 = arith.constant 0 : index
    %c2_77 = arith.constant 2 : index
    %c2_78 = arith.constant 2 : index
    %c0_79 = arith.constant 0 : index
    %57 = vector.load %arg9[%c0_76, %c2_77, %c2_78, %c0_79] : memref<2x10x10x128xbf16, #tpu.memory_space<vmem>>, vector<2x8x8x128xbf16>
    %58 = vector.shape_cast %57 : vector<2x8x8x128xbf16> to vector<128x128xbf16>
    %c1024 = arith.constant 1024 : index
    %c0_80 = arith.constant 0 : index
    %59 = vector.load %arg4[%c1024, %c0_80] : memref<1152x128xbf16, #tpu.memory_space<vmem>>, vector<128x128xbf16>
    %cst_81 = arith.constant dense<0.000000e+00> : vector<128x128xf32>
    %60 = tpu.matmul %58, %59, %cst_81 {dimension_numbers = #tpu.dot_dimension_numbers<[1], [0], [0], [1], [0, 0, 1, 1], [], []>} : vector<128x128xbf16>, vector<128x128xbf16>, vector<128x128xf32> -> vector<128x128xf32>
    %61 = arith.addf %56, %60 : vector<128x128xf32>
    %c0_82 = arith.constant 0 : index
    %c0_83 = arith.constant 0 : index
    %62 = vector.load %arg5[%c0_82, %c0_83] : memref<1x128xf32, #tpu.memory_space<vmem>>, vector<1x128xf32>
    %63 = vector.broadcast %62 : vector<1x128xf32> to vector<128x128xf32>
    %64 = arith.addf %61, %63 : vector<128x128xf32>
    %cst_84 = arith.constant 0.000000e+00 : f32
    %65 = vector.broadcast %cst_84 : f32 to vector<128x128xf32>
    %66 = arith.maximumf %64, %65 : vector<128x128xf32>
    %67 = arith.truncf %66 : vector<128x128xf32> to vector<128x128xbf16>
    %c0_85 = arith.constant 0 : index
    %c0_86 = arith.constant 0 : index
    %68 = vector.load %arg6[%c0_85, %c0_86] : memref<128x128xbf16, #tpu.memory_space<vmem>>, vector<128x128xbf16>
    %cst_87 = arith.constant dense<0.000000e+00> : vector<128x128xf32>
    %69 = tpu.matmul %67, %68, %cst_87 {dimension_numbers = #tpu.dot_dimension_numbers<[1], [0], [0], [1], [0, 0, 1, 1], [], []>} : vector<128x128xbf16>, vector<128x128xbf16>, vector<128x128xf32> -> vector<128x128xf32>
    %c0_88 = arith.constant 0 : index
    %c0_89 = arith.constant 0 : index
    %c0_90 = arith.constant 0 : index
    %c0_91 = arith.constant 0 : index
    %70 = vector.load %arg1[%c0_88, %c0_89, %c0_90, %c0_91] : memref<2x8x8x128xbf16, #tpu.memory_space<vmem>>, vector<2x8x8x128xbf16>
    %71 = vector.shape_cast %70 : vector<2x8x8x128xbf16> to vector<128x128xbf16>
    %72 = arith.extf %71 : vector<128x128xbf16> to vector<128x128xf32>
    %c0_92 = arith.constant 0 : index
    %c0_93 = arith.constant 0 : index
    %73 = vector.load %arg7[%c0_92, %c0_93] : memref<1x128xf32, #tpu.memory_space<vmem>>, vector<1x128xf32>
    %74 = vector.broadcast %73 : vector<1x128xf32> to vector<128x128xf32>
    %75 = arith.addf %69, %74 : vector<128x128xf32>
    %76 = arith.addf %75, %72 : vector<128x128xf32>
    %cst_94 = arith.constant 0.000000e+00 : f32
    %77 = vector.broadcast %cst_94 : f32 to vector<128x128xf32>
    %78 = arith.maximumf %76, %77 : vector<128x128xf32>
    %79 = vector.shape_cast %78 : vector<128x128xf32> to vector<2x8x8x128xf32>
    %80 = arith.truncf %79 : vector<2x8x8x128xf32> to vector<2x8x8x128xbf16>
    %c0_95 = arith.constant 0 : index
    %c0_96 = arith.constant 0 : index
    %c0_97 = arith.constant 0 : index
    %c0_98 = arith.constant 0 : index
    %81 = vector.load %arg8[%c0_95, %c0_96, %c0_97, %c0_98] : memref<2x8x8x128xbf16, #tpu.memory_space<vmem>>, vector<2x8x8x128xbf16>
    tpu.vector_store %arg8[%c0_95, %c0_96, %c0_97, %c0_98], %80 {strides = array<i32>} : memref<2x8x8x128xbf16, #tpu.memory_space<vmem>>, vector<2x8x8x128xbf16>,
    return
  }
  func.func @transform_0(%arg0: i32) -> (i32, i32, i32, i32) {
    %c0_i32 = arith.constant 0 : i32
    %c0_i32_0 = arith.constant 0 : i32
    %c0_i32_1 = arith.constant 0 : i32
    %c0_i32_2 = arith.constant 0 : i32
    return %arg0, %c0_i32, %c0_i32_0, %c0_i32_1 : i32, i32, i32, i32
  }
  func.func @transform_1(%arg0: i32) -> (i32, i32) {
    %c0_i32 = arith.constant 0 : i32
    %c0_i32_0 = arith.constant 0 : i32
    %c0_i32_1 = arith.constant 0 : i32
    return %c0_i32, %c0_i32_0 : i32, i32
  }
  func.func @transform_2(%arg0: i32) -> (i32, i32) {
    %c0_i32 = arith.constant 0 : i32
    %c0_i32_0 = arith.constant 0 : i32
    %c0_i32_1 = arith.constant 0 : i32
    return %c0_i32, %c0_i32_0 : i32, i32
  }
  func.func @transform_3(%arg0: i32) -> (i32, i32) {
    %c0_i32 = arith.constant 0 : i32
    %c0_i32_0 = arith.constant 0 : i32
    %c0_i32_1 = arith.constant 0 : i32
    return %c0_i32, %c0_i32_0 : i32, i32
  }
  func.func @transform_4(%arg0: i32) -> (i32, i32) {
    %c0_i32 = arith.constant 0 : i32
    %c0_i32_0 = arith.constant 0 : i32
    %c0_i32_1 = arith.constant 0 : i32
    return %c0_i32, %c0_i32_0 : i32, i32
  }
  func.func @transform_5(%arg0: i32) -> (i32, i32) {
    %c0_i32 = arith.constant 0 : i32
    %c0_i32_0 = arith.constant 0 : i32
    %c0_i32_1 = arith.constant 0 : i32
    return %c0_i32, %c0_i32_0 : i32, i32
  }
  func.func @transform_6(%arg0: i32) -> (i32, i32) {
    %c0_i32 = arith.constant 0 : i32
    %c0_i32_0 = arith.constant 0 : i32
    %c0_i32_1 = arith.constant 0 : i32
    return %c0_i32, %c0_i32_0 : i32, i32
  }
  func.func @transform_7(%arg0: i32) -> (i32, i32, i32, i32) {
    %c0_i32 = arith.constant 0 : i32
    %c0_i32_0 = arith.constant 0 : i32
    %c0_i32_1 = arith.constant 0 : i32
    %c0_i32_2 = arith.constant 0 : i32
    return %arg0, %c0_i32, %c0_i32_0, %c0_i32_1 : i32, i32, i32, i32
  }
}

</mosaic_0001>

<llo_original>
// kernel: bottleneck_forward.1
$region0: #{bottleneck_forward.1}
  #allocation0 [shape = 'u32[]', space=smem, size = 0x4, offset = 0x4, fixed_abs, tag = 'smem constant byte address 0x4 - core index']
  #allocation1 [shape = 'u32[144,128]{1,0:T(1,128)}', space=vmem, size = 0x12000, scoped, tag = 'internal scratch']
  #allocation2 [shape = 'bf16[2,10,10,128]{3,2,1,0:T(8,128)(2,1)}', space=vmem, size = 0x14000, scoped, tag = 'scratch operand']
  %s0 = inlined_call_operand.vmem [shape: bf16[8,8,8,128], index: 0, kind: input, shape index: {}]
  %s1 = inlined_call_operand.vmem [shape: bf16[128,128], index: 1, kind: input, shape index: {}]
  %s2 = inlined_call_operand.vmem [shape: f32[1,128], index: 2, kind: input, shape index: {}]
  %s3 = inlined_call_operand.vmem [shape: bf16[1152,128], index: 3, kind: input, shape index: {}]
  %s4 = inlined_call_operand.vmem [shape: f32[1,128], index: 4, kind: input, shape index: {}]
  %s5 = inlined_call_operand.vmem [shape: bf16[128,128], index: 5, kind: input, shape index: {}]
  %s6 = inlined_call_operand.vmem [shape: f32[1,128], index: 6, kind: input, shape index: {}]
  %s7 = inlined_call_operand.vmem [shape: bf16[8,8,8,128], index: 7, kind: output, shape index: {}]
  %s8 = sld [smem:[#allocation0]]
  $region61: #{bottleneck_forward.1} parent=0
    _
  %s10 = ssub.s32 1, %s8
  %s11 = scalar_select 0, %s10, %s8
  loop: start=0, step=1, limit=6
  $region2: #{bottleneck_forward.1} parent=0 // loop_pre_header
    _
  $region3: #{bottleneck_forward.1} parent=0 // loop_header
    %s13 = sphi 0, %s17
    %p14 = scmp.ge.s32.totalorder %s13, 6
    %s23 = sphi 0, %s25
    %s26 = sphi 0, %s23
    %s27 = sphi 0, %s26
    %s43 = sphi 0, %s27
    %s47 = sphi 0, %s47
    %s49 = sphi 0, %s47
    %s50 = sphi 0, %s49
    %s64 = sphi 0, %s50
    %s68 = sphi 0, %s68
    %s70 = sphi 0, %s68
    %s71 = sphi 0, %s70
    %s85 = sphi 0, %s71
    %s89 = sphi 0, %s89
    %s91 = sphi 0, %s89
    %s92 = sphi 0, %s91
    %s106 = sphi 0, %s92
    %s110 = sphi 0, %s110
    %s112 = sphi 0, %s110
    %s113 = sphi 0, %s112
    %s127 = sphi 0, %s113
    %s131 = sphi 0, %s131
    %s133 = sphi 0, %s131
    %s134 = sphi 0, %s133
    %s148 = sphi 0, %s134
    %s152 = sphi 0, %s152
    %s154 = sphi 0, %s152
    %s155 = sphi 0, %s154
    %s169 = sphi 0, %s155
    %s175 = sphi 0, %s177
    %s178 = sphi 0, %s175
    %s179 = sphi 0, %s178
    %s195 = sphi 0, %s179
  $region4: #{bottleneck_forward.1} parent=0 // loop_header_branch
    %16 = sbr.rel (%p14) target = $region8
  $region5: #{bottleneck_forward.1} parent=0 // loop_body
    %s18 = ssub.s32 %s13, 1
    %s19 = ssub.s32 %s13, 2
    %s20 = sadd.s32 %s13, 1
    %s21 = ssub.s32 %s13, %s20
    %p22 = scmp.eq.s32.totalorder %s21, 0
    %s24 = sadd.s32 %s23, 1
    %s25 = scalar_select %p22, %s23, %s24
    %p28 = pneg %p22
    %p29 = scmp.eq.s32.totalorder %s13, 3
    %p30 = por %p28, %p29
    %p31 = scmp.ne.s32.totalorder %s23, %s26
    %p32 = scmp.eq.s32.totalorder %s13, 0
    %p33 = por %p31, %p32
    %p34 = scmp.ne.s32.totalorder %s23, %s26
    %p35 = scmp.eq.s32.totalorder %s18, 3
    %p36 = por %p34, %p35
    %p37 = scmp.ne.s32.totalorder %s26, %s27
    %p38 = scmp.eq.s32.totalorder %s18, 0
    %p39 = por %p37, %p38
    %p40 = scmp.ne.s32.totalorder %s26, %s27
    %p41 = scmp.eq.s32.totalorder %s19, 3
    %p42 = por %p40, %p41
    %p44 = scmp.ne.s32.totalorder %s27, %s43
    %p45 = scmp.eq.s32.totalorder %s19, 0
    %p46 = por %p44, %p45
    %s48 = sadd.s32 %s47, 1
    %p51 = scmp.eq.s32.totalorder %s13, 3
    %p52 = scmp.ne.s32.totalorder %s47, %s49
    %p53 = scmp.eq.s32.totalorder %s13, 0
    %p54 = por %p52, %p53
    %p55 = scmp.ne.s32.totalorder %s47, %s49
    %p56 = scmp.eq.s32.totalorder %s18, 3
    %p57 = por %p55, %p56
    %p58 = scmp.ne.s32.totalorder %s49, %s50
    %p59 = scmp.eq.s32.totalorder %s18, 0
    %p60 = por %p58, %p59
    %p61 = scmp.ne.s32.totalorder %s49, %s50
    %p62 = scmp.eq.s32.totalorder %s19, 3
    %p63 = por %p61, %p62
    %p65 = scmp.ne.s32.totalorder %s50, %s64
    %p66 = scmp.eq.s32.totalorder %s19, 0
    %p67 = por %p65, %p66
    %s69 = sadd.s32 %s68, 1
    %p72 = scmp.eq.s32.totalorder %s13, 3
    %p73 = scmp.ne.s32.totalorder %s68, %s70
    %p74 = scmp.eq.s32.totalorder %s13, 0
    %p75 = por %p73, %p74
    %p76 = scmp.ne.s32.totalorder %s68, %s70
    %p77 = scmp.eq.s32.totalorder %s18, 3
    %p78 = por %p76, %p77
    %p79 = scmp.ne.s32.totalorder %s70, %s71
    %p80 = scmp.eq.s32.totalorder %s18, 0
    %p81 = por %p79, %p80
    %p82 = scmp.ne.s32.totalorder %s70, %s71
    %p83 = scmp.eq.s32.totalorder %s19, 3
    %p84 = por %p82, %p83
    %p86 = scmp.ne.s32.totalorder %s71, %s85
    %p87 = scmp.eq.s32.totalorder %s19, 0
    %p88 = por %p86, %p87
    %s90 = sadd.s32 %s89, 1
    %p93 = scmp.eq.s32.totalorder %s13, 3
    %p94 = scmp.ne.s32.totalorder %s89, %s91
    %p95 = scmp.eq.s32.totalorder %s13, 0
    %p96 = por %p94, %p95
    %p97 = scmp.ne.s32.totalorder %s89, %s91
    %p98 = scmp.eq.s32.totalorder %s18, 3
    %p99 = por %p97, %p98
    %p100 = scmp.ne.s32.totalorder %s91, %s92
    %p101 = scmp.eq.s32.totalorder %s18, 0
    %p102 = por %p100, %p101
    %p103 = scmp.ne.s32.totalorder %s91, %s92
    %p104 = scmp.eq.s32.totalorder %s19, 3
    %p105 = por %p103, %p104
    %p107 = scmp.ne.s32.totalorder %s92, %s106
    %p108 = scmp.eq.s32.totalorder %s19, 0
    %p109 = por %p107, %p108
    %s111 = sadd.s32 %s110, 1
    %p114 = scmp.eq.s32.totalorder %s13, 3
    %p115 = scmp.ne.s32.totalorder %s110, %s112
    %p116 = scmp.eq.s32.totalorder %s13, 0
    %p117 = por %p115, %p116
    %p118 = scmp.ne.s32.totalorder %s110, %s112
    %p119 = scmp.eq.s32.totalorder %s18, 3
    %p120 = por %p118, %p119
    %p121 = scmp.ne.s32.totalorder %s112, %s113
    %p122 = scmp.eq.s32.totalorder %s18, 0
    %p123 = por %p121, %p122
    %p124 = scmp.ne.s32.totalorder %s112, %s113
    %p125 = scmp.eq.s32.totalorder %s19, 3
    %p126 = por %p124, %p125
    %p128 = scmp.ne.s32.totalorder %s113, %s127
    %p129 = scmp.eq.s32.totalorder %s19, 0
    %p130 = por %p128, %p129
    %s132 = sadd.s32 %s131, 1
    %p135 = scmp.eq.s32.totalorder %s13, 3
    %p136 = scmp.ne.s32.totalorder %s131, %s133
    %p137 = scmp.eq.s32.totalorder %s13, 0
    %p138 = por %p136, %p137
    %p139 = scmp.ne.s32.totalorder %s131, %s133
    %p140 = scmp.eq.s32.totalorder %s18, 3
    %p141 = por %p139, %p140
    %p142 = scmp.ne.s32.totalorder %s133, %s134
    %p143 = scmp.eq.s32.totalorder %s18, 0
    %p144 = por %p142, %p143
    %p145 = scmp.ne.s32.totalorder %s133, %s134
    %p146 = scmp.eq.s32.totalorder %s19, 3
    %p147 = por %p145, %p146
    %p149 = scmp.ne.s32.totalorder %s134, %s148
    %p150 = scmp.eq.s32.totalorder %s19, 0
    %p151 = por %p149, %p150
    %s153 = sadd.s32 %s152, 1
    %p156 = scmp.eq.s32.totalorder %s13, 3
    %p157 = scmp.ne.s32.totalorder %s152, %s154
    %p158 = scmp.eq.s32.totalorder %s13, 0
    %p159 = por %p157, %p158
    %p160 = scmp.ne.s32.totalorder %s152, %s154
    %p161 = scmp.eq.s32.totalorder %s18, 3
    %p162 = por %p160, %p161
    %p163 = scmp.ne.s32.totalorder %s154, %s155
    %p164 = scmp.eq.s32.totalorder %s18, 0
    %p165 = por %p163, %p164
    %p166 = scmp.ne.s32.totalorder %s154, %s155
    %p167 = scmp.eq.s32.totalorder %s19, 3
    %p168 = por %p166, %p167
    %p170 = scmp.ne.s32.totalorder %s155, %s169
    %p171 = scmp.eq.s32.totalorder %s19, 0
    %p172 = por %p170, %p171
    %s173 = ssub.s32 %s13, %s20
    %p174 = scmp.eq.s32.totalorder %s173, 0
    %s176 = sadd.s32 %s175, 1
    %s177 = scalar_select %p174, %s175, %s176
    %p180 = pneg %p174
    %p181 = scmp.eq.s32.totalorder %s13, 3
    %p182 = por %p180, %p181
    %p183 = scmp.ne.s32.totalorder %s175, %s178
    %p184 = scmp.eq.s32.totalorder %s13, 0
    %p185 = por %p183, %p184
    %p186 = scmp.ne.s32.totalorder %s175, %s178
    %p187 = scmp.eq.s32.totalorder %s18, 3
    %p188 = por %p186, %p187
    %p189 = scmp.ne.s32.totalorder %s178, %s179
    %p190 = scmp.eq.s32.totalorder %s18, 0
    %p191 = por %p189, %p190
    %p192 = scmp.ne.s32.totalorder %s178, %s179
    %p193 = scmp.eq.s32.totalorder %s19, 3
    %p194 = por %p192, %p193
    %p196 = scmp.ne.s32.totalorder %s179, %s195
    %p197 = scmp.eq.s32.totalorder %s19, 0
    %p198 = por %p196, %p197
    %p199 = scmp.le.s32.totalorder 1, %s13
    %p200 = scmp.lt.s32.totalorder %s13, 5
    %p201 = pnand %p199, %p200
    %p202 = pneg %p201
    // Predicated region
    $region9: #{bottleneck_forward.1} parent=5 // pred_check
      _
    $region10: #{bottleneck_forward.1} parent=5 // pred_check_branch
      %204 = sbr.rel (%p201) target = $region12
    $region11: #{bottleneck_forward.1} parent=5 // pred_region
      %s205 = ssub.s32 %s13, 1
      // Predicated region
      $region13: #{bottleneck_forward.1} parent=11 // pred_check
        %p206 = pneg %p60
      $region14: #{bottleneck_forward.1} parent=11 // pred_check_branch
        %208 = sbr.rel (%p206) target = $region16
      $region15: #{bottleneck_forward.1} parent=11 // pred_region
        _
      $region16: #{bottleneck_forward.1} parent=11 // pred_fallthru
        _
      // Predicated region
      $region17: #{bottleneck_forward.1} parent=11 // pred_check
        %p209 = pneg %p81
      $region18: #{bottleneck_forward.1} parent=11 // pred_check_branch
        %211 = sbr.rel (%p209) target = $region20
      $region19: #{bottleneck_forward.1} parent=11 // pred_region
        _
      $region20: #{bottleneck_forward.1} parent=11 // pred_fallthru
        _
      // Predicated region
      $region21: #{bottleneck_forward.1} parent=11 // pred_check
        %p212 = pneg %p102
      $region22: #{bottleneck_forward.1} parent=11 // pred_check_branch
        %214 = sbr.rel (%p212) target = $region24
      $region23: #{bottleneck_forward.1} parent=11 // pred_region
        _
      $region24: #{bottleneck_forward.1} parent=11 // pred_fallthru
        _
      // Predicated region
      $region25: #{bottleneck_forward.1} parent=11 // pred_check
        %p215 = pneg %p123
      $region26: #{bottleneck_forward.1} parent=11 // pred_check_branch
        %217 = sbr.rel (%p215) target = $region28
      $region27: #{bottleneck_forward.1} parent=11 // pred_region
        _
      $region28: #{bottleneck_forward.1} parent=11 // pred_fallthru
        _
      // Predicated region
      $region29: #{bottleneck_forward.1} parent=11 // pred_check
        %p218 = pneg %p144
      $region30: #{bottleneck_forward.1} parent=11 // pred_check_branch
        %220 = sbr.rel (%p218) target = $region32
      $region31: #{bottleneck_forward.1} parent=11 // pred_region
        _
      $region32: #{bottleneck_forward.1} parent=11 // pred_fallthru
        _
      // Predicated region
      $region33: #{bottleneck_forward.1} parent=11 // pred_check
        %p221 = pneg %p165
      $region34: #{bottleneck_forward.1} parent=11 // pred_check_branch
        %223 = sbr.rel (%p221) target = $region36
      $region35: #{bottleneck_forward.1} parent=11 // pred_region
        _
      $region36: #{bottleneck_forward.1} parent=11 // pred_fallthru
        _
    $region12: #{bottleneck_forward.1} parent=5 // pred_fallthru
      _
    %p224 = scmp.lt.s32.totalorder %s13, 4
    // Predicated region
    $region37: #{bottleneck_forward.1} parent=5 // pred_check
      %p225 = pneg %p224
    $region38: #{bottleneck_forward.1} parent=5 // pred_check_branch
      %227 = sbr.rel (%p225) target = $region40
    $region39: #{bottleneck_forward.1} parent=5 // pred_region
      // Predicated region
      $region41: #{bottleneck_forward.1} parent=39 // pred_check
        %p228 = pneg %p33
      $region42: #{bottleneck_forward.1} parent=39 // pred_check_branch
        %230 = sbr.rel (%p228) target = $region44
      $region43: #{bottleneck_forward.1} parent=39 // pred_region
        %s231 = smul.u32 2, %s13
        %p232 = scmp.lt.s32.totalorder %s231, 7
        %s233 = scalar_select %p232, %s231, 7
        %s234 = smul.addr %s233, 8
        %s235 = smul.addr %s234, 4
        %s236 = scalar_lea.vmem %s0, %s235
        %s237 = smul.u32 2, %s13
      $region44: #{bottleneck_forward.1} parent=39 // pred_fallthru
        _
    $region40: #{bottleneck_forward.1} parent=5 // pred_fallthru
      _
    %p238 = scmp.le.s32.totalorder 1, %s13
    %p239 = scmp.lt.s32.totalorder %s13, 5
    %p240 = pnand %p238, %p239
    %p241 = pneg %p240
    // Predicated region
    $region45: #{bottleneck_forward.1} parent=5 // pred_check
      _
    $region46: #{bottleneck_forward.1} parent=5 // pred_check_branch
      %243 = sbr.rel (%p240) target = $region48
    $region47: #{bottleneck_forward.1} parent=5 // pred_region
      %s244 = ssub.s32 %s13, 1
      %s245 = smul.u32 2, %s18
      %p246 = scmp.lt.s32.totalorder %s245, 7
      %s247 = scalar_select %p246, %s245, 7
      %s248 = smul.addr %s247, 8
      %s249 = smul.addr %s248, 4
      %s250 = scalar_lea.vmem %s0, %s249
      %p251 = pneg %p39
      %p252 = pneg %p36
      %p253 = pneg %p60
      %p254 = pneg %p57
      %p255 = pneg %p81
      %p256 = pneg %p78
      %p257 = pneg %p102
      %p258 = pneg %p99
      %p259 = pneg %p123
      %p260 = pneg %p120
      %p261 = pneg %p144
      %p262 = pneg %p141
      %p263 = pneg %p165
      %p264 = pneg %p162
      %p265 = pneg %p191
      %p266 = pneg %p188
      %s267 = smul.u32 2, %s18
      %p268 = scmp.lt.s32.totalorder %s267, 7
      %s269 = scalar_select %p268, %s267, 7
      %s270 = smul.addr %s269, 8
      %s271 = smul.addr %s270, 4
      %s272 = scalar_lea.vmem %s7, %s271
      %s273 = smul.u32 2, %s18
      %p274 = scmp.lt.s32.totalorder %s273, 7
      %s275 = scalar_select %p274, %s273, 7
      %s276 = smul.addr %s275, 8
      %s277 = smul.addr %s276, 4
      %s278 = scalar_lea.vmem %s0, %s277
      %s279 = smul.u32 2, %s18
      %s280 = smul.u32 2, %s18
      %p281 = scmp.lt.s32.totalorder %s280, 7
      %s282 = scalar_select %p281, %s280, 7
      %s283 = smul.addr %s282, 8
      %s284 = smul.addr %s283, 4
      %s285 = scalar_lea.vmem %s7, %s284
      %s286 = smul.u32 2, %s18
      %v288 = vld [vmem:[%s278] sm:$0xf]
      %v289 = vld [vmem:[%s278 + $0x4] sm:$0xf]
      %v290 = vld [vmem:[%s278 + $0x8] sm:$0xf]
      %v291 = vld [vmem:[%s278 + $0xc] sm:$0xf]
      %v292 = vld [vmem:[%s278 + $0x10] sm:$0xf]
      %v293 = vld [vmem:[%s278 + $0x14] sm:$0xf]
      %v294 = vld [vmem:[%s278 + $0x18] sm:$0xf]
      %v295 = vld [vmem:[%s278 + $0x1c] sm:$0xf]
      %v296 = vld [vmem:[%s278 + $0x20] sm:$0xf]
      %v297 = vld [vmem:[%s278 + $0x24] sm:$0xf]
      %v298 = vld [vmem:[%s278 + $0x28] sm:$0xf]
      %v299 = vld [vmem:[%s278 + $0x2c] sm:$0xf]
      %v300 = vld [vmem:[%s278 + $0x30] sm:$0xf]
      %v301 = vld [vmem:[%s278 + $0x34] sm:$0xf]
      %v302 = vld [vmem:[%s278 + $0x38] sm:$0xf]
      %v303 = vld [vmem:[%s278 + $0x3c] sm:$0xf]
      %v304 = vld [vmem:[%s1] sm:$0xf]
      %v305 = vld [vmem:[%s1 + $0x4] sm:$0xf]
      %v306 = vld [vmem:[%s1 + $0x8] sm:$0xf]
      %v307 = vld [vmem:[%s1 + $0xc] sm:$0xf]
      %v308 = vld [vmem:[%s1 + $0x10] sm:$0xf]
      %v309 = vld [vmem:[%s1 + $0x14] sm:$0xf]
      %v310 = vld [vmem:[%s1 + $0x18] sm:$0xf]
      %v311 = vld [vmem:[%s1 + $0x1c] sm:$0xf]
      %v312 = vld [vmem:[%s1 + $0x20] sm:$0xf]
      %v313 = vld [vmem:[%s1 + $0x24] sm:$0xf]
      %v314 = vld [vmem:[%s1 + $0x28] sm:$0xf]
      %v315 = vld [vmem:[%s1 + $0x2c] sm:$0xf]
      %v316 = vld [vmem:[%s1 + $0x30] sm:$0xf]
      %v317 = vld [vmem:[%s1 + $0x34] sm:$0xf]
      %v318 = vld [vmem:[%s1 + $0x38] sm:$0xf]
      %v319 = vld [vmem:[%s1 + $0x3c] sm:$0xf]
      %v320 = vld [vmem:[%s2] sm:$0x1]
      %v322 = vlaneseq
      %v323 = vshrl.u32 %v322, 7
      %v324 = vsub.s32 0, %v323
      %v325 = vrot.slane %v320, %v324
      %v343 = vunpack.c.l.b16 %v288
      %v344 = vunpack.c.l.b16 %v289
      %v345 = vunpack.c.l.b16 %v290
      %v346 = vunpack.c.l.b16 %v291
      %v347 = vunpack.c.l.b16 %v292
      %v348 = vunpack.c.l.b16 %v293
      %v349 = vunpack.c.l.b16 %v294
      %v350 = vunpack.c.l.b16 %v295
      %v351 = vunpack.c.l.b16 %v296
      %v352 = vunpack.c.l.b16 %v297
      %v353 = vunpack.c.l.b16 %v298
      %v354 = vunpack.c.l.b16 %v299
      %v355 = vunpack.c.l.b16 %v300
      %v356 = vunpack.c.l.b16 %v301
      %v357 = vunpack.c.l.b16 %v302
      %v358 = vunpack.c.l.b16 %v303
      %v359 = vpack.c.b16 %v344, %v343
      %v360 = vpack.c.b16 %v346, %v345
      %v361 = vpack.c.b16 %v348, %v347
      %v362 = vpack.c.b16 %v350, %v349
      %v363 = vpack.c.b16 %v352, %v351
      %v364 = vpack.c.b16 %v354, %v353
      %v365 = vpack.c.b16 %v356, %v355
      %v366 = vpack.c.b16 %v358, %v357
      %v391 = vunpack.c.l.b16 %v304
      %v392 = vunpack.c.l.b16 %v305
      %v393 = vunpack.c.l.b16 %v306
      %v394 = vunpack.c.l.b16 %v307
      %v395 = vunpack.c.l.b16 %v308
      %v396 = vunpack.c.l.b16 %v309
      %v397 = vunpack.c.l.b16 %v310
      %v398 = vunpack.c.l.b16 %v311
      %v399 = vunpack.c.l.b16 %v312
      %v400 = vunpack.c.l.b16 %v313
      %v401 = vunpack.c.l.b16 %v314
      %v402 = vunpack.c.l.b16 %v315
      %v403 = vunpack.c.l.b16 %v316
      %v404 = vunpack.c.l.b16 %v317
      %v405 = vunpack.c.l.b16 %v318
      %v406 = vunpack.c.l.b16 %v319
      %v407 = vpack.c.b16 %v392, %v391
      %v408 = vpack.c.b16 %v394, %v393
      %v409 = vpack.c.b16 %v396, %v395
      %v410 = vpack.c.b16 %v398, %v397
      %v411 = vpack.c.b16 %v400, %v399
      %v412 = vpack.c.b16 %v402, %v401
      %v413 = vpack.c.b16 %v404, %v403
      %v414 = vpack.c.b16 %v406, %v405
      %423 = vmatprep.subr.bf16.mxu0 0
      %424 = vmatpush1.bf16.msra.mxu0 %v414
      %425 = vmatprep.subr.bf16.mxu0 0
      %426 = vmatpush1.bf16.msra.mxu0 %v413
      %427 = vmatprep.subr.bf16.mxu0 0
      %428 = vmatpush1.bf16.msra.mxu0 %v412
      %429 = vmatprep.subr.bf16.mxu0 0
      %430 = vmatpush1.bf16.msra.mxu0 %v411
      %431 = vmatprep.subr.bf16.mxu0 0
      %432 = vmatpush1.bf16.msra.mxu0 %v410
      %433 = vmatprep.subr.bf16.mxu0 0
      %434 = vmatpush1.bf16.msra.mxu0 %v409
      %435 = vmatprep.subr.bf16.mxu0 0
      %436 = vmatpush1.bf16.msra.mxu0 %v408
      %437 = vmatprep.subr.bf16.mxu0 0
      %438 = vmatpush1.bf16.msra.mxu0 %v407
      %439 = vmatprep.subr.bf16.mxu0 0
      %440 = vmatpush2.bf16.msra.mxu0 0
      %441 = vmatprep.subr.bf16.mxu0 0
      %442 = vmatpush2.bf16.msra.mxu0 0
      %443 = vmatprep.subr.bf16.mxu0 0
      %444 = vmatpush2.bf16.msra.mxu0 0
      %445 = vmatprep.subr.bf16.mxu0 0
      %446 = vmatpush2.bf16.msra.mxu0 0
      %447 = vmatprep.subr.bf16.mxu0 0
      %448 = vmatpush2.bf16.msra.mxu0 0
      %449 = vmatprep.subr.bf16.mxu0 0
      %450 = vmatpush2.bf16.msra.mxu0 0
      %451 = vmatprep.subr.bf16.mxu0 0
      %452 = vmatpush2.bf16.msra.mxu0 0
      %453 = vmatprep.subr.bf16.mxu0 0
      %454 = vmatpush2.bf16.msra.mxu0 0
      %455 = vmatprep.mubr.bf16.mxu0 0
      %456 = vmatmul.mubr.bf16.gmra.mxu0 %v359
      %v457 = vpop.f32.mrf.mxu0
      %v458 = vadd.f32 %v325, %v457
      %v459 = vpop.f32.mrf.mxu0
      %v460 = vpop.f32.mrf.mxu0
      %v461 = vadd.f32 %v325, %v460
      %v462 = vpop.f32.mrf.mxu0
      %463 = vmatprep.mubr.bf16.mxu0 0
      %464 = vmatmul.mubr.bf16.gmra.mxu0 %v360
      %v465 = vpop.f32.mrf.mxu0
      %v466 = vadd.f32 %v325, %v465
      %v467 = vpop.f32.mrf.mxu0
      %v468 = vpop.f32.mrf.mxu0
      %v469 = vadd.f32 %v325, %v468
      %v470 = vpop.f32.mrf.mxu0
      %471 = vmatprep.mubr.bf16.mxu0 0
      %472 = vmatmul.mubr.bf16.gmra.mxu0 %v361
      %v473 = vpop.f32.mrf.mxu0
      %v474 = vadd.f32 %v325, %v473
      %v475 = vpop.f32.mrf.mxu0
      %v476 = vpop.f32.mrf.mxu0
      %v477 = vadd.f32 %v325, %v476
      %v478 = vpop.f32.mrf.mxu0
      %479 = vmatprep.mubr.bf16.mxu0 0
      %480 = vmatmul.mubr.bf16.gmra.mxu0 %v362
      %v481 = vpop.f32.mrf.mxu0
      %v482 = vadd.f32 %v325, %v481
      %v483 = vpop.f32.mrf.mxu0
      %v484 = vpop.f32.mrf.mxu0
      %v485 = vadd.f32 %v325, %v484
      %v486 = vpop.f32.mrf.mxu0
      %487 = vmatprep.mubr.bf16.mxu0 0
      %488 = vmatmul.mubr.bf16.gmra.mxu0 %v363
      %v489 = vpop.f32.mrf.mxu0
      %v490 = vadd.f32 %v325, %v489
      %v491 = vpop.f32.mrf.mxu0
      %v492 = vpop.f32.mrf.mxu0
      %v493 = vadd.f32 %v325, %v492
      %v494 = vpop.f32.mrf.mxu0
      %495 = vmatprep.mubr.bf16.mxu0 0
      %496 = vmatmul.mubr.bf16.gmra.mxu0 %v364
      %v497 = vpop.f32.mrf.mxu0
      %v498 = vadd.f32 %v325, %v497
      %v499 = vpop.f32.mrf.mxu0
      %v500 = vpop.f32.mrf.mxu0
      %v501 = vadd.f32 %v325, %v500
      %v502 = vpop.f32.mrf.mxu0
      %503 = vmatprep.mubr.bf16.mxu0 0
      %504 = vmatmul.mubr.bf16.gmra.mxu0 %v365
      %v505 = vpop.f32.mrf.mxu0
      %v506 = vadd.f32 %v325, %v505
      %v507 = vpop.f32.mrf.mxu0
      %v508 = vpop.f32.mrf.mxu0
      %v509 = vadd.f32 %v325, %v508
      %v510 = vpop.f32.mrf.mxu0
      %511 = vmatprep.mubr.bf16.mxu0 0
      %512 = vmatmul.mubr.bf16.gmra.mxu0 %v366
      %v513 = vpop.f32.mrf.mxu0
      %v514 = vadd.f32 %v325, %v513
      %v515 = vpop.f32.mrf.mxu0
      %v516 = vpop.f32.mrf.mxu0
      %v517 = vadd.f32 %v325, %v516
      %v518 = vpop.f32.mrf.mxu0
      %519 = vdwg.mxu0
      %v520 = vmax.f32 %v458, 0.0
      %v521 = vmax.f32 %v461, 0.0
      %v522 = vmax.f32 %v466, 0.0
      %v523 = vmax.f32 %v469, 0.0
      %v524 = vmax.f32 %v474, 0.0
      %v525 = vmax.f32 %v477, 0.0
      %v526 = vmax.f32 %v482, 0.0
      %v527 = vmax.f32 %v485, 0.0
      %v528 = vmax.f32 %v490, 0.0
      %v529 = vmax.f32 %v493, 0.0
      %v530 = vmax.f32 %v498, 0.0
      %v531 = vmax.f32 %v501, 0.0
      %v532 = vmax.f32 %v506, 0.0
      %v533 = vmax.f32 %v509, 0.0
      %v534 = vmax.f32 %v514, 0.0
      %v535 = vmax.f32 %v517, 0.0
      %536 = vst [vmem:[#allocation2] sm:$0xf] 0
      %537 = vst [vmem:[#allocation2 + $0x4] sm:$0x1] 0
      %538 = vst [vmem:[#allocation2 + $0x50] sm:$0xf] 0
      %539 = vst [vmem:[#allocation2 + $0x54] sm:$0x1] 0
      %s540 = scalar_lea.vmem [#allocation2], 72
      %541 = vst [vmem:[%s540] sm:$0xf] 0
      %542 = vst [vmem:[%s540 + $0x4] sm:$0x1] 0
      %543 = vst [vmem:[%s540 + $0x50] sm:$0xf] 0
      %544 = vst [vmem:[%s540 + $0x54] sm:$0x1] 0
      %vm545 = vcmask 1040384
      %vm546 = vsmask.f32 256
      %vm547 = vmand %vm545, %vm546
      %v548 = vld [vmem:[#allocation2] sm:$0x1]
      %v549 = vsel %vm547, 0, %v548
      %550 = vst [vmem:[#allocation2] sm:$0x1] %v549
      %v551 = vld [vmem:[#allocation2 + $0x8] sm:$0x1]
      %v552 = vsel %vm547, 0, %v551
      %553 = vst [vmem:[#allocation2 + $0x8] sm:$0x1] %v552
      %v554 = vld [vmem:[#allocation2 + $0x10] sm:$0x1]
      %v555 = vsel %vm547, 0, %v554
      %556 = vst [vmem:[#allocation2 + $0x10] sm:$0x1] %v555
      %v557 = vld [vmem:[#allocation2 + $0x18] sm:$0x1]
      %v558 = vsel %vm547, 0, %v557
      %559 = vst [vmem:[#allocation2 + $0x18] sm:$0x1] %v558
      %v560 = vld [vmem:[#allocation2 + $0x20] sm:$0x1]
      %v561 = vsel %vm547, 0, %v560
      %562 = vst [vmem:[#allocation2 + $0x20] sm:$0x1] %v561
      %v563 = vld [vmem:[#allocation2 + $0x28] sm:$0x1]
      %v564 = vsel %vm547, 0, %v563
      %565 = vst [vmem:[#allocation2 + $0x28] sm:$0x1] %v564
      %v566 = vld [vmem:[#allocation2 + $0x30] sm:$0x1]
      %v567 = vsel %vm547, 0, %v566
      %568 = vst [vmem:[#allocation2 + $0x30] sm:$0x1] %v567
      %v569 = vld [vmem:[#allocation2 + $0x38] sm:$0x1]
      %v570 = vsel %vm547, 0, %v569
      %571 = vst [vmem:[#allocation2 + $0x38] sm:$0x1] %v570
      %v572 = vld [vmem:[#allocation2 + $0x40] sm:$0x1]
      %v573 = vsel %vm547, 0, %v572
      %574 = vst [vmem:[#allocation2 + $0x40] sm:$0x1] %v573
      %v575 = vld [vmem:[#allocation2 + $0x48] sm:$0x1]
      %v576 = vsel %vm547, 0, %v575
      %577 = vst [vmem:[#allocation2 + $0x48] sm:$0x1] %v576
      %v578 = vld [vmem:[#allocation2 + $0x50] sm:$0x1]
      %v579 = vsel %vm547, 0, %v578
      %580 = vst [vmem:[#allocation2 + $0x50] sm:$0x1] %v579
      %v581 = vld [vmem:[#allocation2 + $0x58] sm:$0x1]
      %v582 = vsel %vm547, 0, %v581
      %583 = vst [vmem:[#allocation2 + $0x58] sm:$0x1] %v582
      %v584 = vld [vmem:[#allocation2 + $0x60] sm:$0x1]
      %v585 = vsel %vm547, 0, %v584
      %586 = vst [vmem:[#allocation2 + $0x60] sm:$0x1] %v585
      %v587 = vld [vmem:[#allocation2 + $0x68] sm:$0x1]
      %v588 = vsel %vm547, 0, %v587
      %589 = vst [vmem:[#allocation2 + $0x68] sm:$0x1] %v588
      %v590 = vld [vmem:[#allocation2 + $0x70] sm:$0x1]
      %v591 = vsel %vm547, 0, %v590
      %592 = vst [vmem:[#allocation2 + $0x70] sm:$0x1] %v591
      %v593 = vld [vmem:[#allocation2 + $0x78] sm:$0x1]
      %v594 = vsel %vm547, 0, %v593
      %595 = vst [vmem:[#allocation2 + $0x78] sm:$0x1] %v594
      %v596 = vld [vmem:[#allocation2 + $0x80] sm:$0x1]
      %v597 = vsel %vm547, 0, %v596
      %598 = vst [vmem:[#allocation2 + $0x80] sm:$0x1] %v597
      %v599 = vld [vmem:[#allocation2 + $0x88] sm:$0x1]
      %v600 = vsel %vm547, 0, %v599
      %601 = vst [vmem:[#allocation2 + $0x88] sm:$0x1] %v600
      %v602 = vld [vmem:[#allocation2 + $0x90] sm:$0x1]
      %v603 = vsel %vm547, 0, %v602
      %604 = vst [vmem:[#allocation2 + $0x90] sm:$0x1] %v603
      %v605 = vld [vmem:[#allocation2 + $0x98] sm:$0x1]
      %v606 = vsel %vm547, 0, %v605
      %607 = vst [vmem:[#allocation2 + $0x98] sm:$0x1] %v606
      %vm608 = vsmask.f32 7938
      %vm609 = vmand %vm545, %vm608
      %v610 = vld [vmem:[#allocation2 + $0x4] sm:$0x1]
      %v611 = vsel %vm609, 0, %v610
      %612 = vst [vmem:[#allocation2 + $0x4] sm:$0x1] %v611
      %v613 = vld [vmem:[#allocation2 + $0xc] sm:$0x1]
      %v614 = vsel %vm609, 0, %v613
      %615 = vst [vmem:[#allocation2 + $0xc] sm:$0x1] %v614
      %v616 = vld [vmem:[#allocation2 + $0x14] sm:$0x1]
      %v617 = vsel %vm609, 0, %v616
      %618 = vst [vmem:[#allocation2 + $0x14] sm:$0x1] %v617
      %v619 = vld [vmem:[#allocation2 + $0x1c] sm:$0x1]
      %v620 = vsel %vm609, 0, %v619
      %621 = vst [vmem:[#allocation2 + $0x1c] sm:$0x1] %v620
      %v622 = vld [vmem:[#allocation2 + $0x24] sm:$0x1]
      %v623 = vsel %vm609, 0, %v622
      %624 = vst [vmem:[#allocation2 + $0x24] sm:$0x1] %v623
      %v625 = vld [vmem:[#allocation2 + $0x2c] sm:$0x1]
      %v626 = vsel %vm609, 0, %v625
      %627 = vst [vmem:[#allocation2 + $0x2c] sm:$0x1] %v626
      %v628 = vld [vmem:[#allocation2 + $0x34] sm:$0x1]
      %v629 = vsel %vm609, 0, %v628
      %630 = vst [vmem:[#allocation2 + $0x34] sm:$0x1] %v629
      %v631 = vld [vmem:[#allocation2 + $0x3c] sm:$0x1]
      %v632 = vsel %vm609, 0, %v631
      %633 = vst [vmem:[#allocation2 + $0x3c] sm:$0x1] %v632
      %v634 = vld [vmem:[#allocation2 + $0x44] sm:$0x1]
      %v635 = vsel %vm609, 0, %v634
      %636 = vst [vmem:[#allocation2 + $0x44] sm:$0x1] %v635
      %v637 = vld [vmem:[#allocation2 + $0x4c] sm:$0x1]
      %v638 = vsel %vm609, 0, %v637
      %639 = vst [vmem:[#allocation2 + $0x4c] sm:$0x1] %v638
      %v640 = vld [vmem:[#allocation2 + $0x54] sm:$0x1]
      %v641 = vsel %vm609, 0, %v640
      %642 = vst [vmem:[#allocation2 + $0x54] sm:$0x1] %v641
      %v643 = vld [vmem:[#allocation2 + $0x5c] sm:$0x1]
      %v644 = vsel %vm609, 0, %v643
      %645 = vst [vmem:[#allocation2 + $0x5c] sm:$0x1] %v644
      %v646 = vld [vmem:[#allocation2 + $0x64] sm:$0x1]
      %v647 = vsel %vm609, 0, %v646
      %648 = vst [vmem:[#allocation2 + $0x64] sm:$0x1] %v647
      %v649 = vld [vmem:[#allocation2 + $0x6c] sm:$0x1]
      %v650 = vsel %vm609, 0, %v649
      %651 = vst [vmem:[#allocation2 + $0x6c] sm:$0x1] %v650
      %v652 = vld [vmem:[#allocation2 + $0x74] sm:$0x1]
      %v653 = vsel %vm609, 0, %v652
      %654 = vst [vmem:[#allocation2 + $0x74] sm:$0x1] %v653
      %v655 = vld [vmem:[#allocation2 + $0x7c] sm:$0x1]
      %v656 = vsel %vm609, 0, %v655
      %657 = vst [vmem:[#allocation2 + $0x7c] sm:$0x1] %v656
      %v658 = vld [vmem:[#allocation2 + $0x84] sm:$0x1]
      %v659 = vsel %vm609, 0, %v658
      %660 = vst [vmem:[#allocation2 + $0x84] sm:$0x1] %v659
      %v661 = vld [vmem:[#allocation2 + $0x8c] sm:$0x1]
      %v662 = vsel %vm609, 0, %v661
      %663 = vst [vmem:[#allocation2 + $0x8c] sm:$0x1] %v662
      %v664 = vld [vmem:[#allocation2 + $0x94] sm:$0x1]
      %v665 = vsel %vm609, 0, %v664
      %666 = vst [vmem:[#allocation2 + $0x94] sm:$0x1] %v665
      %v667 = vld [vmem:[#allocation2 + $0x9c] sm:$0x1]
      %v668 = vsel %vm609, 0, %v667
      %669 = vst [vmem:[#allocation2 + $0x9c] sm:$0x1] %v668
      %v670 = vpack.c.bf16 %v520, %v520
      %v671 = vpack.c.bf16 %v521, %v521
      %v672 = vpack.c.bf16 %v522, %v522
      %v673 = vpack.c.bf16 %v523, %v523
      %v674 = vpack.c.bf16 %v524, %v524
      %v675 = vpack.c.bf16 %v525, %v525
      %v676 = vpack.c.bf16 %v526, %v526
      %v677 = vpack.c.bf16 %v527, %v527
      %v678 = vpack.c.bf16 %v528, %v528
      %v679 = vpack.c.bf16 %v529, %v529
      %v680 = vpack.c.bf16 %v530, %v530
      %v681 = vpack.c.bf16 %v531, %v531
      %v682 = vpack.c.bf16 %v532, %v532
      %v683 = vpack.c.bf16 %v533, %v533
      %v684 = vpack.c.bf16 %v534, %v534
      %v685 = vpack.c.bf16 %v535, %v535
      %v702 = vunpack.c.l.b16 %v670
      %v703 = vunpack.c.l.b16 %v671
      %v704 = vunpack.c.l.b16 %v672
      %v705 = vunpack.c.l.b16 %v673
      %v706 = vunpack.c.l.b16 %v674
      %v707 = vunpack.c.l.b16 %v675
      %v708 = vunpack.c.l.b16 %v676
      %v709 = vunpack.c.l.b16 %v677
      %v710 = vunpack.c.l.b16 %v678
      %v711 = vunpack.c.l.b16 %v679
      %v712 = vunpack.c.l.b16 %v680
      %v713 = vunpack.c.l.b16 %v681
      %v714 = vunpack.c.l.b16 %v682
      %v715 = vunpack.c.l.b16 %v683
      %v716 = vunpack.c.l.b16 %v684
      %v717 = vunpack.c.l.b16 %v685
      %v718 = vpack.c.b16 %v702, %v702
      %v719 = vpack.c.b16 %v703, %v703
      %v720 = vpack.c.b16 %v704, %v704
      %v721 = vpack.c.b16 %v705, %v705
      %v722 = vpack.c.b16 %v706, %v706
      %v723 = vpack.c.b16 %v707, %v707
      %v724 = vpack.c.b16 %v708, %v708
      %v725 = vpack.c.b16 %v709, %v709
      %v726 = vpack.c.b16 %v710, %v710
      %v727 = vpack.c.b16 %v711, %v711
      %v728 = vpack.c.b16 %v712, %v712
      %v729 = vpack.c.b16 %v713, %v713
      %v730 = vpack.c.b16 %v714, %v714
      %v731 = vpack.c.b16 %v715, %v715
      %v732 = vpack.c.b16 %v716, %v716
      %v733 = vpack.c.b16 %v717, %v717
      %v735 = vshrl.u32 %v718, 16
      %v737 = vrot.slane %v735, 7
      %v738 = vshll.u32 %v718, 16
      %v740 = vor.u32 %v737, %v738
      %v741 = vrot.slane %v737, 4
      %v743 = vshrl.u32 %v719, 16
      %v745 = vrot.slane %v743, 7
      %v746 = vshll.u32 %v719, 16
      %v748 = vor.u32 %v745, %v746
      %v749 = vrot.slane %v745, 4
      %v751 = vshrl.u32 %v720, 16
      %v753 = vrot.slane %v751, 7
      %v754 = vshll.u32 %v720, 16
      %v756 = vor.u32 %v753, %v754
      %v757 = vrot.slane %v753, 4
      %v759 = vshrl.u32 %v721, 16
      %v761 = vrot.slane %v759, 7
      %v762 = vshll.u32 %v721, 16
      %v764 = vor.u32 %v761, %v762
      %v765 = vrot.slane %v761, 4
      %v767 = vshrl.u32 %v722, 16
      %v769 = vrot.slane %v767, 7
      %v770 = vshll.u32 %v722, 16
      %v772 = vor.u32 %v769, %v770
      %v773 = vrot.slane %v769, 4
      %v775 = vshrl.u32 %v723, 16
      %v777 = vrot.slane %v775, 7
      %v778 = vshll.u32 %v723, 16
      %v780 = vor.u32 %v777, %v778
      %v781 = vrot.slane %v777, 4
      %v783 = vshrl.u32 %v724, 16
      %v785 = vrot.slane %v783, 7
      %v786 = vshll.u32 %v724, 16
      %v788 = vor.u32 %v785, %v786
      %v789 = vrot.slane %v785, 4
      %v791 = vshrl.u32 %v725, 16
      %v793 = vrot.slane %v791, 7
      %v794 = vshll.u32 %v725, 16
      %v796 = vor.u32 %v793, %v794
      %v797 = vrot.slane %v793, 4
      %v799 = vshrl.u32 %v726, 16
      %v801 = vrot.slane %v799, 7
      %v802 = vshll.u32 %v726, 16
      %v804 = vor.u32 %v801, %v802
      %v805 = vrot.slane %v801, 4
      %v807 = vshrl.u32 %v727, 16
      %v809 = vrot.slane %v807, 7
      %v810 = vshll.u32 %v727, 16
      %v812 = vor.u32 %v809, %v810
      %v813 = vrot.slane %v809, 4
      %v815 = vshrl.u32 %v728, 16
      %v817 = vrot.slane %v815, 7
      %v818 = vshll.u32 %v728, 16
      %v820 = vor.u32 %v817, %v818
      %v821 = vrot.slane %v817, 4
      %v823 = vshrl.u32 %v729, 16
      %v825 = vrot.slane %v823, 7
      %v826 = vshll.u32 %v729, 16
      %v828 = vor.u32 %v825, %v826
      %v829 = vrot.slane %v825, 4
      %v831 = vshrl.u32 %v730, 16
      %v833 = vrot.slane %v831, 7
      %v834 = vshll.u32 %v730, 16
      %v836 = vor.u32 %v833, %v834
      %v837 = vrot.slane %v833, 4
      %v839 = vshrl.u32 %v731, 16
      %v841 = vrot.slane %v839, 7
      %v842 = vshll.u32 %v731, 16
      %v844 = vor.u32 %v841, %v842
      %v845 = vrot.slane %v841, 4
      %v847 = vshrl.u32 %v732, 16
      %v849 = vrot.slane %v847, 7
      %v850 = vshll.u32 %v732, 16
      %v852 = vor.u32 %v849, %v850
      %v853 = vrot.slane %v849, 4
      %v855 = vshrl.u32 %v733, 16
      %v857 = vrot.slane %v855, 7
      %v858 = vshll.u32 %v733, 16
      %v860 = vor.u32 %v857, %v858
      %v861 = vrot.slane %v857, 4
      %s894 = scalar_lea.vmem [#allocation2], 8
      %vm895 = vcmask 1043456
      %vm896 = vmand %vm895, %vm608
      %v897 = vld [vmem:[%s894] sm:$0xf]
      %v898 = vsel %vm896, %v740, %v897
      %899 = vst [vmem:[%s894] sm:$0xf] %v898
      %v900 = vld [vmem:[%s894 + $0x4] sm:$0x1]
      %v901 = vsel %vm547, %v741, %v900
      %902 = vst [vmem:[%s894 + $0x4] sm:$0x1] %v901
      %v903 = vld [vmem:[%s894 + $0x8] sm:$0xf]
      %v904 = vsel %vm896, %v748, %v903
      %905 = vst [vmem:[%s894 + $0x8] sm:$0xf] %v904
      %v906 = vld [vmem:[%s894 + $0xc] sm:$0x1]
      %v907 = vsel %vm547, %v749, %v906
      %908 = vst [vmem:[%s894 + $0xc] sm:$0x1] %v907
      %v909 = vld [vmem:[%s894 + $0x10] sm:$0xf]
      %v910 = vsel %vm896, %v756, %v909
      %911 = vst [vmem:[%s894 + $0x10] sm:$0xf] %v910
      %v912 = vld [vmem:[%s894 + $0x14] sm:$0x1]
      %v913 = vsel %vm547, %v757, %v912
      %914 = vst [vmem:[%s894 + $0x14] sm:$0x1] %v913
      %v915 = vld [vmem:[%s894 + $0x18] sm:$0xf]
      %v916 = vsel %vm896, %v764, %v915
      %917 = vst [vmem:[%s894 + $0x18] sm:$0xf] %v916
      %v918 = vld [vmem:[%s894 + $0x1c] sm:$0x1]
      %v919 = vsel %vm547, %v765, %v918
      %920 = vst [vmem:[%s894 + $0x1c] sm:$0x1] %v919
      %v921 = vld [vmem:[%s894 + $0x20] sm:$0xf]
      %v922 = vsel %vm896, %v772, %v921
      %923 = vst [vmem:[%s894 + $0x20] sm:$0xf] %v922
      %v924 = vld [vmem:[%s894 + $0x24] sm:$0x1]
      %v925 = vsel %vm547, %v773, %v924
      %926 = vst [vmem:[%s894 + $0x24] sm:$0x1] %v925
      %v927 = vld [vmem:[%s894 + $0x28] sm:$0xf]
      %v928 = vsel %vm896, %v780, %v927
      %929 = vst [vmem:[%s894 + $0x28] sm:$0xf] %v928
      %v930 = vld [vmem:[%s894 + $0x2c] sm:$0x1]
      %v931 = vsel %vm547, %v781, %v930
      %932 = vst [vmem:[%s894 + $0x2c] sm:$0x1] %v931
      %v933 = vld [vmem:[%s894 + $0x30] sm:$0xf]
      %v934 = vsel %vm896, %v788, %v933
      %935 = vst [vmem:[%s894 + $0x30] sm:$0xf] %v934
      %v936 = vld [vmem:[%s894 + $0x34] sm:$0x1]
      %v937 = vsel %vm547, %v789, %v936
      %938 = vst [vmem:[%s894 + $0x34] sm:$0x1] %v937
      %v939 = vld [vmem:[%s894 + $0x38] sm:$0xf]
      %v940 = vsel %vm896, %v796, %v939
      %941 = vst [vmem:[%s894 + $0x38] sm:$0xf] %v940
      %v942 = vld [vmem:[%s894 + $0x3c] sm:$0x1]
      %v943 = vsel %vm547, %v797, %v942
      %944 = vst [vmem:[%s894 + $0x3c] sm:$0x1] %v943
      %v945 = vld [vmem:[%s894 + $0x50] sm:$0xf]
      %v946 = vsel %vm896, %v804, %v945
      %947 = vst [vmem:[%s894 + $0x50] sm:$0xf] %v946
      %v948 = vld [vmem:[%s894 + $0x54] sm:$0x1]
      %v949 = vsel %vm547, %v805, %v948
      %950 = vst [vmem:[%s894 + $0x54] sm:$0x1] %v949
      %v951 = vld [vmem:[%s894 + $0x58] sm:$0xf]
      %v952 = vsel %vm896, %v812, %v951
      %953 = vst [vmem:[%s894 + $0x58] sm:$0xf] %v952
      %v954 = vld [vmem:[%s894 + $0x5c] sm:$0x1]
      %v955 = vsel %vm547, %v813, %v954
      %956 = vst [vmem:[%s894 + $0x5c] sm:$0x1] %v955
      %v957 = vld [vmem:[%s894 + $0x60] sm:$0xf]
      %v958 = vsel %vm896, %v820, %v957
      %959 = vst [vmem:[%s894 + $0x60] sm:$0xf] %v958
      %v960 = vld [vmem:[%s894 + $0x64] sm:$0x1]
      %v961 = vsel %vm547, %v821, %v960
      %962 = vst [vmem:[%s894 + $0x64] sm:$0x1] %v961
      %v963 = vld [vmem:[%s894 + $0x68] sm:$0xf]
      %v964 = vsel %vm896, %v828, %v963
      %965 = vst [vmem:[%s894 + $0x68] sm:$0xf] %v964
      %v966 = vld [vmem:[%s894 + $0x6c] sm:$0x1]
      %v967 = vsel %vm547, %v829, %v966
      %968 = vst [vmem:[%s894 + $0x6c] sm:$0x1] %v967
      %v969 = vld [vmem:[%s894 + $0x70] sm:$0xf]
      %v970 = vsel %vm896, %v836, %v969
      %971 = vst [vmem:[%s894 + $0x70] sm:$0xf] %v970
      %v972 = vld [vmem:[%s894 + $0x74] sm:$0x1]
      %v973 = vsel %vm547, %v837, %v972
      %974 = vst [vmem:[%s894 + $0x74] sm:$0x1] %v973
      %v975 = vld [vmem:[%s894 + $0x78] sm:$0xf]
      %v976 = vsel %vm896, %v844, %v975
      %977 = vst [vmem:[%s894 + $0x78] sm:$0xf] %v976
      %v978 = vld [vmem:[%s894 + $0x7c] sm:$0x1]
      %v979 = vsel %vm547, %v845, %v978
      %980 = vst [vmem:[%s894 + $0x7c] sm:$0x1] %v979
      %v981 = vld [vmem:[%s894 + $0x80] sm:$0xf]
      %v982 = vsel %vm896, %v852, %v981
      %983 = vst [vmem:[%s894 + $0x80] sm:$0xf] %v982
      %v984 = vld [vmem:[%s894 + $0x84] sm:$0x1]
      %v985 = vsel %vm547, %v853, %v984
      %986 = vst [vmem:[%s894 + $0x84] sm:$0x1] %v985
      %v987 = vld [vmem:[%s894 + $0x88] sm:$0xf]
      %v988 = vsel %vm896, %v860, %v987
      %989 = vst [vmem:[%s894 + $0x88] sm:$0xf] %v988
      %v990 = vld [vmem:[%s894 + $0x8c] sm:$0x1]
      %v991 = vsel %vm547, %v861, %v990
      %992 = vst [vmem:[%s894 + $0x8c] sm:$0x1] %v991
      %v993 = vld [vmem:[#allocation2] sm:$0xf]
      %v994 = vld [vmem:[#allocation2 + $0x8] sm:$0xf]
      %v995 = vld [vmem:[#allocation2 + $0x10] sm:$0xf]
      %v996 = vld [vmem:[#allocation2 + $0x18] sm:$0xf]
      %v997 = vld [vmem:[#allocation2 + $0x20] sm:$0xf]
      %v998 = vld [vmem:[#allocation2 + $0x28] sm:$0xf]
      %v999 = vld [vmem:[#allocation2 + $0x30] sm:$0xf]
      %v1000 = vld [vmem:[#allocation2 + $0x38] sm:$0xf]
      %v1001 = vld [vmem:[#allocation2 + $0x50] sm:$0xf]
      %v1002 = vld [vmem:[#allocation2 + $0x58] sm:$0xf]
      %v1003 = vld [vmem:[#allocation2 + $0x60] sm:$0xf]
      %v1004 = vld [vmem:[#allocation2 + $0x68] sm:$0xf]
      %v1005 = vld [vmem:[#allocation2 + $0x70] sm:$0xf]
      %v1006 = vld [vmem:[#allocation2 + $0x78] sm:$0xf]
      %v1007 = vld [vmem:[#allocation2 + $0x80] sm:$0xf]
      %v1008 = vld [vmem:[#allocation2 + $0x88] sm:$0xf]
      %v1009 = vld [vmem:[%s3] sm:$0xf]
      %v1010 = vld [vmem:[%s3 + $0x4] sm:$0xf]
      %v1011 = vld [vmem:[%s3 + $0x8] sm:$0xf]
      %v1012 = vld [vmem:[%s3 + $0xc] sm:$0xf]
      %v1013 = vld [vmem:[%s3 + $0x10] sm:$0xf]
      %v1014 = vld [vmem:[%s3 + $0x14] sm:$0xf]
      %v1015 = vld [vmem:[%s3 + $0x18] sm:$0xf]
      %v1016 = vld [vmem:[%s3 + $0x1c] sm:$0xf]
      %v1017 = vld [vmem:[%s3 + $0x20] sm:$0xf]
      %v1018 = vld [vmem:[%s3 + $0x24] sm:$0xf]
      %v1019 = vld [vmem:[%s3 + $0x28] sm:$0xf]
      %v1020 = vld [vmem:[%s3 + $0x2c] sm:$0xf]
      %v1021 = vld [vmem:[%s3 + $0x30] sm:$0xf]
      %v1022 = vld [vmem:[%s3 + $0x34] sm:$0xf]
      %v1023 = vld [vmem:[%s3 + $0x38] sm:$0xf]
      %v1024 = vld [vmem:[%s3 + $0x3c] sm:$0xf]
      %v1025 = vld [vmem:[#allocation2 + $0x4] sm:$0x1]
      %v1026 = vld [vmem:[#allocation2 + $0xc] sm:$0x1]
      %v1027 = vld [vmem:[#allocation2 + $0x14] sm:$0x1]
      %v1028 = vld [vmem:[#allocation2 + $0x1c] sm:$0x1]
      %v1029 = vld [vmem:[#allocation2 + $0x24] sm:$0x1]
      %v1030 = vld [vmem:[#allocation2 + $0x2c] sm:$0x1]
      %v1031 = vld [vmem:[#allocation2 + $0x34] sm:$0x1]
      %v1032 = vld [vmem:[#allocation2 + $0x3c] sm:$0x1]
      %v1033 = vld [vmem:[#allocation2 + $0x54] sm:$0x1]
      %v1034 = vld [vmem:[#allocation2 + $0x5c] sm:$0x1]
      %v1035 = vld [vmem:[#allocation2 + $0x64] sm:$0x1]
      %v1036 = vld [vmem:[#allocation2 + $0x6c] sm:$0x1]
      %v1037 = vld [vmem:[#allocation2 + $0x74] sm:$0x1]
      %v1038 = vld [vmem:[#allocation2 + $0x7c] sm:$0x1]
      %v1039 = vld [vmem:[#allocation2 + $0x84] sm:$0x1]
      %v1040 = vld [vmem:[#allocation2 + $0x8c] sm:$0x1]
      %vm1041 = vsmask.f32 3328
      %vm1042 = vsmask.f32 7440
      %vm1043 = vmor %vm1041, %vm1042
      %v1045 = vshrl.u32 %v993, 16
      %v1047 = vrot.slane %v1045, 4
      %v1048 = vshll.u32 %v993, 16
      %v1050 = vrot.slane %v1048, 5
      %v1051 = vor.u32 %v1047, %v1050
      %v1052 = vrot.slane %v1051, 4
      %v1054 = vshll.u32 %v1025, 16
      %v1056 = vrot.slane %v1054, 5
      %v1057 = vsel %vm1043, %v1052, %v1056
      %v1059 = vshrl.u32 %v994, 16
      %v1061 = vrot.slane %v1059, 4
      %v1062 = vshll.u32 %v994, 16
      %v1064 = vrot.slane %v1062, 5
      %v1065 = vor.u32 %v1061, %v1064
      %v1066 = vrot.slane %v1065, 4
      %v1068 = vshll.u32 %v1026, 16
      %v1070 = vrot.slane %v1068, 5
      %v1071 = vsel %vm1043, %v1066, %v1070
      %v1073 = vshrl.u32 %v995, 16
      %v1075 = vrot.slane %v1073, 4
      %v1076 = vshll.u32 %v995, 16
      %v1078 = vrot.slane %v1076, 5
      %v1079 = vor.u32 %v1075, %v1078
      %v1080 = vrot.slane %v1079, 4
      %v1082 = vshll.u32 %v1027, 16
      %v1084 = vrot.slane %v1082, 5
      %v1085 = vsel %vm1043, %v1080, %v1084
      %v1087 = vshrl.u32 %v996, 16
      %v1089 = vrot.slane %v1087, 4
      %v1090 = vshll.u32 %v996, 16
      %v1092 = vrot.slane %v1090, 5
      %v1093 = vor.u32 %v1089, %v1092
      %v1094 = vrot.slane %v1093, 4
      %v1096 = vshll.u32 %v1028, 16
      %v1098 = vrot.slane %v1096, 5
      %v1099 = vsel %vm1043, %v1094, %v1098
      %v1101 = vshrl.u32 %v997, 16
      %v1103 = vrot.slane %v1101, 4
      %v1104 = vshll.u32 %v997, 16
      %v1106 = vrot.slane %v1104, 5
      %v1107 = vor.u32 %v1103, %v1106
      %v1108 = vrot.slane %v1107, 4
      %v1110 = vshll.u32 %v1029, 16
      %v1112 = vrot.slane %v1110, 5
      %v1113 = vsel %vm1043, %v1108, %v1112
      %v1115 = vshrl.u32 %v998, 16
      %v1117 = vrot.slane %v1115, 4
      %v1118 = vshll.u32 %v998, 16
      %v1120 = vrot.slane %v1118, 5
      %v1121 = vor.u32 %v1117, %v1120
      %v1122 = vrot.slane %v1121, 4
      %v1124 = vshll.u32 %v1030, 16
      %v1126 = vrot.slane %v1124, 5
      %v1127 = vsel %vm1043, %v1122, %v1126
      %v1129 = vshrl.u32 %v999, 16
      %v1131 = vrot.slane %v1129, 4
      %v1132 = vshll.u32 %v999, 16
      %v1134 = vrot.slane %v1132, 5
      %v1135 = vor.u32 %v1131, %v1134
      %v1136 = vrot.slane %v1135, 4
      %v1138 = vshll.u32 %v1031, 16
      %v1140 = vrot.slane %v1138, 5
      %v1141 = vsel %vm1043, %v1136, %v1140
      %v1143 = vshrl.u32 %v1000, 16
      %v1145 = vrot.slane %v1143, 4
      %v1146 = vshll.u32 %v1000, 16
      %v1148 = vrot.slane %v1146, 5
      %v1149 = vor.u32 %v1145, %v1148
      %v1150 = vrot.slane %v1149, 4
      %v1152 = vshll.u32 %v1032, 16
      %v1154 = vrot.slane %v1152, 5
      %v1155 = vsel %vm1043, %v1150, %v1154
      %v1157 = vshrl.u32 %v1001, 16
      %v1159 = vrot.slane %v1157, 4
      %v1160 = vshll.u32 %v1001, 16
      %v1162 = vrot.slane %v1160, 5
      %v1163 = vor.u32 %v1159, %v1162
      %v1164 = vrot.slane %v1163, 4
      %v1166 = vshll.u32 %v1033, 16
      %v1168 = vrot.slane %v1166, 5
      %v1169 = vsel %vm1043, %v1164, %v1168
      %v1171 = vshrl.u32 %v1002, 16
      %v1173 = vrot.slane %v1171, 4
      %v1174 = vshll.u32 %v1002, 16
      %v1176 = vrot.slane %v1174, 5
      %v1177 = vor.u32 %v1173, %v1176
      %v1178 = vrot.slane %v1177, 4
      %v1180 = vshll.u32 %v1034, 16
      %v1182 = vrot.slane %v1180, 5
      %v1183 = vsel %vm1043, %v1178, %v1182
      %v1185 = vshrl.u32 %v1003, 16
      %v1187 = vrot.slane %v1185, 4
      %v1188 = vshll.u32 %v1003, 16
      %v1190 = vrot.slane %v1188, 5
      %v1191 = vor.u32 %v1187, %v1190
      %v1192 = vrot.slane %v1191, 4
      %v1194 = vshll.u32 %v1035, 16
      %v1196 = vrot.slane %v1194, 5
      %v1197 = vsel %vm1043, %v1192, %v1196
      %v1199 = vshrl.u32 %v1004, 16
      %v1201 = vrot.slane %v1199, 4
      %v1202 = vshll.u32 %v1004, 16
      %v1204 = vrot.slane %v1202, 5
      %v1205 = vor.u32 %v1201, %v1204
      %v1206 = vrot.slane %v1205, 4
      %v1208 = vshll.u32 %v1036, 16
      %v1210 = vrot.slane %v1208, 5
      %v1211 = vsel %vm1043, %v1206, %v1210
      %v1213 = vshrl.u32 %v1005, 16
      %v1215 = vrot.slane %v1213, 4
      %v1216 = vshll.u32 %v1005, 16
      %v1218 = vrot.slane %v1216, 5
      %v1219 = vor.u32 %v1215, %v1218
      %v1220 = vrot.slane %v1219, 4
      %v1222 = vshll.u32 %v1037, 16
      %v1224 = vrot.slane %v1222, 5
      %v1225 = vsel %vm1043, %v1220, %v1224
      %v1227 = vshrl.u32 %v1006, 16
      %v1229 = vrot.slane %v1227, 4
      %v1230 = vshll.u32 %v1006, 16
      %v1232 = vrot.slane %v1230, 5
      %v1233 = vor.u32 %v1229, %v1232
      %v1234 = vrot.slane %v1233, 4
      %v1236 = vshll.u32 %v1038, 16
      %v1238 = vrot.slane %v1236, 5
      %v1239 = vsel %vm1043, %v1234, %v1238
      %v1241 = vshrl.u32 %v1007, 16
      %v1243 = vrot.slane %v1241, 4
      %v1244 = vshll.u32 %v1007, 16
      %v1246 = vrot.slane %v1244, 5
      %v1247 = vor.u32 %v1243, %v1246
      %v1248 = vrot.slane %v1247, 4
      %v1250 = vshll.u32 %v1039, 16
      %v1252 = vrot.slane %v1250, 5
      %v1253 = vsel %vm1043, %v1248, %v1252
      %v1255 = vshrl.u32 %v1008, 16
      %v1257 = vrot.slane %v1255, 4
      %v1258 = vshll.u32 %v1008, 16
      %v1260 = vrot.slane %v1258, 5
      %v1261 = vor.u32 %v1257, %v1260
      %v1262 = vrot.slane %v1261, 4
      %v1264 = vshll.u32 %v1040, 16
      %v1266 = vrot.slane %v1264, 5
      %v1267 = vsel %vm1043, %v1262, %v1266
      %v1268 = vld [vmem:[%s3 + $0x40] sm:$0xf]
      %v1269 = vld [vmem:[%s3 + $0x44] sm:$0xf]
      %v1270 = vld [vmem:[%s3 + $0x48] sm:$0xf]
      %v1271 = vld [vmem:[%s3 + $0x4c] sm:$0xf]
      %v1272 = vld [vmem:[%s3 + $0x50] sm:$0xf]
      %v1273 = vld [vmem:[%s3 + $0x54] sm:$0xf]
      %v1274 = vld [vmem:[%s3 + $0x58] sm:$0xf]
      %v1275 = vld [vmem:[%s3 + $0x5c] sm:$0xf]
      %v1276 = vld [vmem:[%s3 + $0x60] sm:$0xf]
      %v1277 = vld [vmem:[%s3 + $0x64] sm:$0xf]
      %v1278 = vld [vmem:[%s3 + $0x68] sm:$0xf]
      %v1279 = vld [vmem:[%s3 + $0x6c] sm:$0xf]
      %v1280 = vld [vmem:[%s3 + $0x70] sm:$0xf]
      %v1281 = vld [vmem:[%s3 + $0x74] sm:$0xf]
      %v1282 = vld [vmem:[%s3 + $0x78] sm:$0xf]
      %v1283 = vld [vmem:[%s3 + $0x7c] sm:$0xf]
      %v1284 = vunpack.c.l.b16 %v1057
      %v1285 = vunpack.c.l.b16 %v1071
      %v1286 = vunpack.c.l.b16 %v1085
      %v1287 = vunpack.c.l.b16 %v1099
      %v1288 = vunpack.c.l.b16 %v1113
      %v1289 = vunpack.c.l.b16 %v1127
      %v1290 = vunpack.c.l.b16 %v1141
      %v1291 = vunpack.c.l.b16 %v1155
      %v1292 = vunpack.c.l.b16 %v1169
      %v1293 = vunpack.c.l.b16 %v1183
      %v1294 = vunpack.c.l.b16 %v1197
      %v1295 = vunpack.c.l.b16 %v1211
      %v1296 = vunpack.c.l.b16 %v1225
      %v1297 = vunpack.c.l.b16 %v1239
      %v1298 = vunpack.c.l.b16 %v1253
      %v1299 = vunpack.c.l.b16 %v1267
      %v1300 = vpack.c.b16 %v1285, %v1284
      %v1301 = vpack.c.b16 %v1287, %v1286
      %v1302 = vpack.c.b16 %v1289, %v1288
      %v1303 = vpack.c.b16 %v1291, %v1290
      %v1304 = vpack.c.b16 %v1293, %v1292
      %v1305 = vpack.c.b16 %v1295, %v1294
      %v1306 = vpack.c.b16 %v1297, %v1296
      %v1307 = vpack.c.b16 %v1299, %v1298
      %v1332 = vunpack.c.l.b16 %v1268
      %v1333 = vunpack.c.l.b16 %v1269
      %v1334 = vunpack.c.l.b16 %v1270
      %v1335 = vunpack.c.l.b16 %v1271
      %v1336 = vunpack.c.l.b16 %v1272
      %v1337 = vunpack.c.l.b16 %v1273
      %v1338 = vunpack.c.l.b16 %v1274
      %v1339 = vunpack.c.l.b16 %v1275
      %v1340 = vunpack.c.l.b16 %v1276
      %v1341 = vunpack.c.l.b16 %v1277
      %v1342 = vunpack.c.l.b16 %v1278
      %v1343 = vunpack.c.l.b16 %v1279
      %v1344 = vunpack.c.l.b16 %v1280
      %v1345 = vunpack.c.l.b16 %v1281
      %v1346 = vunpack.c.l.b16 %v1282
      %v1347 = vunpack.c.l.b16 %v1283
      %v1348 = vpack.c.b16 %v1333, %v1332
      %v1349 = vpack.c.b16 %v1335, %v1334
      %v1350 = vpack.c.b16 %v1337, %v1336
      %v1351 = vpack.c.b16 %v1339, %v1338
      %v1352 = vpack.c.b16 %v1341, %v1340
      %v1353 = vpack.c.b16 %v1343, %v1342
      %v1354 = vpack.c.b16 %v1345, %v1344
      %v1355 = vpack.c.b16 %v1347, %v1346
      %1364 = vmatprep.subr.bf16.mxu0 0
      %1365 = vmatpush1.bf16.msra.mxu0 %v1355
      %1366 = vmatprep.subr.bf16.mxu0 0
      %1367 = vmatpush1.bf16.msra.mxu0 %v1354
      %1368 = vmatprep.subr.bf16.mxu0 0
      %1369 = vmatpush1.bf16.msra.mxu0 %v1353
      %1370 = vmatprep.subr.bf16.mxu0 0
      %1371 = vmatpush1.bf16.msra.mxu0 %v1352
      %1372 = vmatprep.subr.bf16.mxu0 0
      %1373 = vmatpush1.bf16.msra.mxu0 %v1351
      %1374 = vmatprep.subr.bf16.mxu0 0
      %1375 = vmatpush1.bf16.msra.mxu0 %v1350
      %1376 = vmatprep.subr.bf16.mxu0 0
      %1377 = vmatpush1.bf16.msra.mxu0 %v1349
      %1378 = vmatprep.subr.bf16.mxu0 0
      %1379 = vmatpush1.bf16.msra.mxu0 %v1348
      %1380 = vmatprep.subr.bf16.mxu0 0
      %1381 = vmatpush2.bf16.msra.mxu0 0
      %1382 = vmatprep.subr.bf16.mxu0 0
      %1383 = vmatpush2.bf16.msra.mxu0 0
      %1384 = vmatprep.subr.bf16.mxu0 0
      %1385 = vmatpush2.bf16.msra.mxu0 0
      %1386 = vmatprep.subr.bf16.mxu0 0
      %1387 = vmatpush2.bf16.msra.mxu0 0
      %1388 = vmatprep.subr.bf16.mxu0 0
      %1389 = vmatpush2.bf16.msra.mxu0 0
      %1390 = vmatprep.subr.bf16.mxu0 0
      %1391 = vmatpush2.bf16.msra.mxu0 0
      %1392 = vmatprep.subr.bf16.mxu0 0
      %1393 = vmatpush2.bf16.msra.mxu0 0
      %1394 = vmatprep.subr.bf16.mxu0 0
      %1395 = vmatpush2.bf16.msra.mxu0 0
      %1396 = vmatprep.mubr.bf16.mxu0 0
      %1397 = vmatmul.mubr.bf16.gmra.mxu0 %v1300
      %v1398 = vpop.f32.mrf.mxu0
      %v1399 = vadd.f32 0.0, %v1398
      %v1400 = vpop.f32.mrf.mxu0
      %v1401 = vpop.f32.mrf.mxu0
      %v1402 = vadd.f32 0.0, %v1401
      %v1403 = vpop.f32.mrf.mxu0
      %1404 = vmatprep.mubr.bf16.mxu0 0
      %1405 = vmatmul.mubr.bf16.gmra.mxu0 %v1301
      %v1406 = vpop.f32.mrf.mxu0
      %v1407 = vadd.f32 0.0, %v1406
      %v1408 = vpop.f32.mrf.mxu0
      %v1409 = vpop.f32.mrf.mxu0
      %v1410 = vadd.f32 0.0, %v1409
      %v1411 = vpop.f32.mrf.mxu0
      %1412 = vmatprep.mubr.bf16.mxu0 0
      %1413 = vmatmul.mubr.bf16.gmra.mxu0 %v1302
      %v1414 = vpop.f32.mrf.mxu0
      %v1415 = vadd.f32 0.0, %v1414
      %v1416 = vpop.f32.mrf.mxu0
      %v1417 = vpop.f32.mrf.mxu0
      %v1418 = vadd.f32 0.0, %v1417
      %v1419 = vpop.f32.mrf.mxu0
      %1420 = vmatprep.mubr.bf16.mxu0 0
      %1421 = vmatmul.mubr.bf16.gmra.mxu0 %v1303
      %v1422 = vpop.f32.mrf.mxu0
      %v1423 = vadd.f32 0.0, %v1422
      %v1424 = vpop.f32.mrf.mxu0
      %v1425 = vpop.f32.mrf.mxu0
      %v1426 = vadd.f32 0.0, %v1425
      %v1427 = vpop.f32.mrf.mxu0
      %1428 = vmatprep.mubr.bf16.mxu0 0
      %1429 = vmatmul.mubr.bf16.gmra.mxu0 %v1304
      %v1430 = vpop.f32.mrf.mxu0
      %v1431 = vadd.f32 0.0, %v1430
      %v1432 = vpop.f32.mrf.mxu0
      %v1433 = vpop.f32.mrf.mxu0
      %v1434 = vadd.f32 0.0, %v1433
      %v1435 = vpop.f32.mrf.mxu0
      %1436 = vmatprep.mubr.bf16.mxu0 0
      %1437 = vmatmul.mubr.bf16.gmra.mxu0 %v1305
      %v1438 = vpop.f32.mrf.mxu0
      %v1439 = vadd.f32 0.0, %v1438
      %v1440 = vpop.f32.mrf.mxu0
      %v1441 = vpop.f32.mrf.mxu0
      %v1442 = vadd.f32 0.0, %v1441
      %v1443 = vpop.f32.mrf.mxu0
      %1444 = vmatprep.mubr.bf16.mxu0 0
      %1445 = vmatmul.mubr.bf16.gmra.mxu0 %v1306
      %v1446 = vpop.f32.mrf.mxu0
      %v1447 = vadd.f32 0.0, %v1446
      %v1448 = vpop.f32.mrf.mxu0
      %v1449 = vpop.f32.mrf.mxu0
      %v1450 = vadd.f32 0.0, %v1449
      %v1451 = vpop.f32.mrf.mxu0
      %1452 = vmatprep.mubr.bf16.mxu0 0
      %1453 = vmatmul.mubr.bf16.gmra.mxu0 %v1307
      %v1454 = vpop.f32.mrf.mxu0
      %v1455 = vadd.f32 0.0, %v1454
      %v1456 = vpop.f32.mrf.mxu0
      %v1457 = vpop.f32.mrf.mxu0
      %v1458 = vadd.f32 0.0, %v1457
      %v1459 = vpop.f32.mrf.mxu0
      %1460 = vdwg.mxu0
      %v1477 = vunpack.c.l.b16 %v993
      %v1478 = vunpack.c.l.b16 %v994
      %v1479 = vunpack.c.l.b16 %v995
      %v1480 = vunpack.c.l.b16 %v996
      %v1481 = vunpack.c.l.b16 %v997
      %v1482 = vunpack.c.l.b16 %v998
      %v1483 = vunpack.c.l.b16 %v999
      %v1484 = vunpack.c.l.b16 %v1000
      %v1485 = vunpack.c.l.b16 %v1001
      %v1486 = vunpack.c.l.b16 %v1002
      %v1487 = vunpack.c.l.b16 %v1003
      %v1488 = vunpack.c.l.b16 %v1004
      %v1489 = vunpack.c.l.b16 %v1005
      %v1490 = vunpack.c.l.b16 %v1006
      %v1491 = vunpack.c.l.b16 %v1007
      %v1492 = vunpack.c.l.b16 %v1008
      %v1493 = vpack.c.b16 %v1478, %v1477
      %v1494 = vpack.c.b16 %v1480, %v1479
      %v1495 = vpack.c.b16 %v1482, %v1481
      %v1496 = vpack.c.b16 %v1484, %v1483
      %v1497 = vpack.c.b16 %v1486, %v1485
      %v1498 = vpack.c.b16 %v1488, %v1487
      %v1499 = vpack.c.b16 %v1490, %v1489
      %v1500 = vpack.c.b16 %v1492, %v1491
      %v1525 = vunpack.c.l.b16 %v1009
      %v1526 = vunpack.c.l.b16 %v1010
      %v1527 = vunpack.c.l.b16 %v1011
      %v1528 = vunpack.c.l.b16 %v1012
      %v1529 = vunpack.c.l.b16 %v1013
      %v1530 = vunpack.c.l.b16 %v1014
      %v1531 = vunpack.c.l.b16 %v1015
      %v1532 = vunpack.c.l.b16 %v1016
      %v1533 = vunpack.c.l.b16 %v1017
      %v1534 = vunpack.c.l.b16 %v1018
      %v1535 = vunpack.c.l.b16 %v1019
      %v1536 = vunpack.c.l.b16 %v1020
      %v1537 = vunpack.c.l.b16 %v1021
      %v1538 = vunpack.c.l.b16 %v1022
      %v1539 = vunpack.c.l.b16 %v1023
      %v1540 = vunpack.c.l.b16 %v1024
      %v1541 = vpack.c.b16 %v1526, %v1525
      %v1542 = vpack.c.b16 %v1528, %v1527
      %v1543 = vpack.c.b16 %v1530, %v1529
      %v1544 = vpack.c.b16 %v1532, %v1531
      %v1545 = vpack.c.b16 %v1534, %v1533
      %v1546 = vpack.c.b16 %v1536, %v1535
      %v1547 = vpack.c.b16 %v1538, %v1537
      %v1548 = vpack.c.b16 %v1540, %v1539
      %1557 = vmatprep.subr.bf16.mxu0 0
      %1558 = vmatpush1.bf16.msra.mxu0 %v1548
      %1559 = vmatprep.subr.bf16.mxu0 0
      %1560 = vmatpush1.bf16.msra.mxu0 %v1547
      %1561 = vmatprep.subr.bf16.mxu0 0
      %1562 = vmatpush1.bf16.msra.mxu0 %v1546
      %1563 = vmatprep.subr.bf16.mxu0 0
      %1564 = vmatpush1.bf16.msra.mxu0 %v1545
      %1565 = vmatprep.subr.bf16.mxu0 0
      %1566 = vmatpush1.bf16.msra.mxu0 %v1544
      %1567 = vmatprep.subr.bf16.mxu0 0
      %1568 = vmatpush1.bf16.msra.mxu0 %v1543
      %1569 = vmatprep.subr.bf16.mxu0 0
      %1570 = vmatpush1.bf16.msra.mxu0 %v1542
      %1571 = vmatprep.subr.bf16.mxu0 0
      %1572 = vmatpush1.bf16.msra.mxu0 %v1541
      %1573 = vmatprep.subr.bf16.mxu0 0
      %1574 = vmatpush2.bf16.msra.mxu0 0
      %1575 = vmatprep.subr.bf16.mxu0 0
      %1576 = vmatpush2.bf16.msra.mxu0 0
      %1577 = vmatprep.subr.bf16.mxu0 0
      %1578 = vmatpush2.bf16.msra.mxu0 0
      %1579 = vmatprep.subr.bf16.mxu0 0
      %1580 = vmatpush2.bf16.msra.mxu0 0
      %1581 = vmatprep.subr.bf16.mxu0 0
      %1582 = vmatpush2.bf16.msra.mxu0 0
      %1583 = vmatprep.subr.bf16.mxu0 0
      %1584 = vmatpush2.bf16.msra.mxu0 0
      %1585 = vmatprep.subr.bf16.mxu0 0
      %1586 = vmatpush2.bf16.msra.mxu0 0
      %1587 = vmatprep.subr.bf16.mxu0 0
      %1588 = vmatpush2.bf16.msra.mxu0 0
      %1589 = vmatprep.mubr.bf16.mxu0 0
      %1590 = vmatmul.mubr.bf16.gmra.mxu0 %v1493
      %v1591 = vpop.f32.mrf.mxu0
      %v1592 = vadd.f32 %v1399, %v1591
      %v1593 = vpop.f32.mrf.mxu0
      %v1594 = vpop.f32.mrf.mxu0
      %v1595 = vadd.f32 %v1402, %v1594
      %v1596 = vpop.f32.mrf.mxu0
      %1597 = vmatprep.mubr.bf16.mxu0 0
      %1598 = vmatmul.mubr.bf16.gmra.mxu0 %v1494
      %v1599 = vpop.f32.mrf.mxu0
      %v1600 = vadd.f32 %v1407, %v1599
      %v1601 = vpop.f32.mrf.mxu0
      %v1602 = vpop.f32.mrf.mxu0
      %v1603 = vadd.f32 %v1410, %v1602
      %v1604 = vpop.f32.mrf.mxu0
      %1605 = vmatprep.mubr.bf16.mxu0 0
      %1606 = vmatmul.mubr.bf16.gmra.mxu0 %v1495
      %v1607 = vpop.f32.mrf.mxu0
      %v1608 = vadd.f32 %v1415, %v1607
      %v1609 = vpop.f32.mrf.mxu0
      %v1610 = vpop.f32.mrf.mxu0
      %v1611 = vadd.f32 %v1418, %v1610
      %v1612 = vpop.f32.mrf.mxu0
      %1613 = vmatprep.mubr.bf16.mxu0 0
      %1614 = vmatmul.mubr.bf16.gmra.mxu0 %v1496
      %v1615 = vpop.f32.mrf.mxu0
      %v1616 = vadd.f32 %v1423, %v1615
      %v1617 = vpop.f32.mrf.mxu0
      %v1618 = vpop.f32.mrf.mxu0
      %v1619 = vadd.f32 %v1426, %v1618
      %v1620 = vpop.f32.mrf.mxu0
      %1621 = vmatprep.mubr.bf16.mxu0 0
      %1622 = vmatmul.mubr.bf16.gmra.mxu0 %v1497
      %v1623 = vpop.f32.mrf.mxu0
      %v1624 = vadd.f32 %v1431, %v1623
      %v1625 = vpop.f32.mrf.mxu0
      %v1626 = vpop.f32.mrf.mxu0
      %v1627 = vadd.f32 %v1434, %v1626
      %v1628 = vpop.f32.mrf.mxu0
      %1629 = vmatprep.mubr.bf16.mxu0 0
      %1630 = vmatmul.mubr.bf16.gmra.mxu0 %v1498
      %v1631 = vpop.f32.mrf.mxu0
      %v1632 = vadd.f32 %v1439, %v1631
      %v1633 = vpop.f32.mrf.mxu0
      %v1634 = vpop.f32.mrf.mxu0
      %v1635 = vadd.f32 %v1442, %v1634
      %v1636 = vpop.f32.mrf.mxu0
      %1637 = vmatprep.mubr.bf16.mxu0 0
      %1638 = vmatmul.mubr.bf16.gmra.mxu0 %v1499
      %v1639 = vpop.f32.mrf.mxu0
      %v1640 = vadd.f32 %v1447, %v1639
      %v1641 = vpop.f32.mrf.mxu0
      %v1642 = vpop.f32.mrf.mxu0
      %v1643 = vadd.f32 %v1450, %v1642
      %v1644 = vpop.f32.mrf.mxu0
      %1645 = vmatprep.mubr.bf16.mxu0 0
      %1646 = vmatmul.mubr.bf16.gmra.mxu0 %v1500
      %v1647 = vpop.f32.mrf.mxu0
      %v1648 = vadd.f32 %v1455, %v1647
      %v1649 = vpop.f32.mrf.mxu0
      %v1650 = vpop.f32.mrf.mxu0
      %v1651 = vadd.f32 %v1458, %v1650
      %v1652 = vpop.f32.mrf.mxu0
      %1653 = vdwg.mxu0
      %v1654 = vld [vmem:[#allocation2] sm:$0xe]
      %v1655 = vld [vmem:[#allocation2 + $0x8] sm:$0xe]
      %v1656 = vld [vmem:[#allocation2 + $0x10] sm:$0xe]
      %v1657 = vld [vmem:[#allocation2 + $0x18] sm:$0xe]
      %v1658 = vld [vmem:[#allocation2 + $0x20] sm:$0xe]
      %v1659 = vld [vmem:[#allocation2 + $0x28] sm:$0xe]
      %v1660 = vld [vmem:[#allocation2 + $0x30] sm:$0xe]
      %v1661 = vld [vmem:[#allocation2 + $0x38] sm:$0xe]
      %v1662 = vld [vmem:[#allocation2 + $0x50] sm:$0xe]
      %v1663 = vld [vmem:[#allocation2 + $0x58] sm:$0xe]
      %v1664 = vld [vmem:[#allocation2 + $0x60] sm:$0xe]
      %v1665 = vld [vmem:[#allocation2 + $0x68] sm:$0xe]
      %v1666 = vld [vmem:[#allocation2 + $0x70] sm:$0xe]
      %v1667 = vld [vmem:[#allocation2 + $0x78] sm:$0xe]
      %v1668 = vld [vmem:[#allocation2 + $0x80] sm:$0xe]
      %v1669 = vld [vmem:[#allocation2 + $0x88] sm:$0xe]
      %vm1702 = vcmask 1042432
      %vm1703 = vcmask 1046532
      %vm1704 = vmor %vm1702, %vm1703
      %v1705 = vrot.slane %v1654, 5
      %v1706 = vrot.slane %v1705, 4
      %v1707 = vrot.slane %v1025, 5
      %v1708 = vsel %vm1704, %v1706, %v1707
      %v1709 = vrot.slane %v1655, 5
      %v1710 = vrot.slane %v1709, 4
      %v1711 = vrot.slane %v1026, 5
      %v1712 = vsel %vm1704, %v1710, %v1711
      %v1713 = vrot.slane %v1656, 5
      %v1714 = vrot.slane %v1713, 4
      %v1715 = vrot.slane %v1027, 5
      %v1716 = vsel %vm1704, %v1714, %v1715
      %v1717 = vrot.slane %v1657, 5
      %v1718 = vrot.slane %v1717, 4
      %v1719 = vrot.slane %v1028, 5
      %v1720 = vsel %vm1704, %v1718, %v1719
      %v1721 = vrot.slane %v1658, 5
      %v1722 = vrot.slane %v1721, 4
      %v1723 = vrot.slane %v1029, 5
      %v1724 = vsel %vm1704, %v1722, %v1723
      %v1725 = vrot.slane %v1659, 5
      %v1726 = vrot.slane %v1725, 4
      %v1727 = vrot.slane %v1030, 5
      %v1728 = vsel %vm1704, %v1726, %v1727
      %v1729 = vrot.slane %v1660, 5
      %v1730 = vrot.slane %v1729, 4
      %v1731 = vrot.slane %v1031, 5
      %v1732 = vsel %vm1704, %v1730, %v1731
      %v1733 = vrot.slane %v1661, 5
      %v1734 = vrot.slane %v1733, 4
      %v1735 = vrot.slane %v1032, 5
      %v1736 = vsel %vm1704, %v1734, %v1735
      %v1737 = vrot.slane %v1662, 5
      %v1738 = vrot.slane %v1737, 4
      %v1739 = vrot.slane %v1033, 5
      %v1740 = vsel %vm1704, %v1738, %v1739
      %v1741 = vrot.slane %v1663, 5
      %v1742 = vrot.slane %v1741, 4
      %v1743 = vrot.slane %v1034, 5
      %v1744 = vsel %vm1704, %v1742, %v1743
      %v1745 = vrot.slane %v1664, 5
      %v1746 = vrot.slane %v1745, 4
      %v1747 = vrot.slane %v1035, 5
      %v1748 = vsel %vm1704, %v1746, %v1747
      %v1749 = vrot.slane %v1665, 5
      %v1750 = vrot.slane %v1749, 4
      %v1751 = vrot.slane %v1036, 5
      %v1752 = vsel %vm1704, %v1750, %v1751
      %v1753 = vrot.slane %v1666, 5
      %v1754 = vrot.slane %v1753, 4
      %v1755 = vrot.slane %v1037, 5
      %v1756 = vsel %vm1704, %v1754, %v1755
      %v1757 = vrot.slane %v1667, 5
      %v1758 = vrot.slane %v1757, 4
      %v1759 = vrot.slane %v1038, 5
      %v1760 = vsel %vm1704, %v1758, %v1759
      %v1761 = vrot.slane %v1668, 5
      %v1762 = vrot.slane %v1761, 4
      %v1763 = vrot.slane %v1039, 5
      %v1764 = vsel %vm1704, %v1762, %v1763
      %v1765 = vrot.slane %v1669, 5
      %v1766 = vrot.slane %v1765, 4
      %v1767 = vrot.slane %v1040, 5
      %v1768 = vsel %vm1704, %v1766, %v1767
      %v1769 = vld [vmem:[%s3 + $0x80] sm:$0xf]
      %v1770 = vld [vmem:[%s3 + $0x84] sm:$0xf]
      %v1771 = vld [vmem:[%s3 + $0x88] sm:$0xf]
      %v1772 = vld [vmem:[%s3 + $0x8c] sm:$0xf]
      %v1773 = vld [vmem:[%s3 + $0x90] sm:$0xf]
      %v1774 = vld [vmem:[%s3 + $0x94] sm:$0xf]
      %v1775 = vld [vmem:[%s3 + $0x98] sm:$0xf]
      %v1776 = vld [vmem:[%s3 + $0x9c] sm:$0xf]
      %v1777 = vld [vmem:[%s3 + $0xa0] sm:$0xf]
      %v1778 = vld [vmem:[%s3 + $0xa4] sm:$0xf]
      %v1779 = vld [vmem:[%s3 + $0xa8] sm:$0xf]
      %v1780 = vld [vmem:[%s3 + $0xac] sm:$0xf]
      %v1781 = vld [vmem:[%s3 + $0xb0] sm:$0xf]
      %v1782 = vld [vmem:[%s3 + $0xb4] sm:$0xf]
      %v1783 = vld [vmem:[%s3 + $0xb8] sm:$0xf]
      %v1784 = vld [vmem:[%s3 + $0xbc] sm:$0xf]
      %v1785 = vunpack.c.l.b16 %v1708
      %v1786 = vunpack.c.l.b16 %v1712
      %v1787 = vunpack.c.l.b16 %v1716
      %v1788 = vunpack.c.l.b16 %v1720
      %v1789 = vunpack.c.l.b16 %v1724
      %v1790 = vunpack.c.l.b16 %v1728
      %v1791 = vunpack.c.l.b16 %v1732
      %v1792 = vunpack.c.l.b16 %v1736
      %v1793 = vunpack.c.l.b16 %v1740
      %v1794 = vunpack.c.l.b16 %v1744
      %v1795 = vunpack.c.l.b16 %v1748
      %v1796 = vunpack.c.l.b16 %v1752
      %v1797 = vunpack.c.l.b16 %v1756
      %v1798 = vunpack.c.l.b16 %v1760
      %v1799 = vunpack.c.l.b16 %v1764
      %v1800 = vunpack.c.l.b16 %v1768
      %v1801 = vpack.c.b16 %v1786, %v1785
      %v1802 = vpack.c.b16 %v1788, %v1787
      %v1803 = vpack.c.b16 %v1790, %v1789
      %v1804 = vpack.c.b16 %v1792, %v1791
      %v1805 = vpack.c.b16 %v1794, %v1793
      %v1806 = vpack.c.b16 %v1796, %v1795
      %v1807 = vpack.c.b16 %v1798, %v1797
      %v1808 = vpack.c.b16 %v1800, %v1799
      %v1833 = vunpack.c.l.b16 %v1769
      %v1834 = vunpack.c.l.b16 %v1770
      %v1835 = vunpack.c.l.b16 %v1771
      %v1836 = vunpack.c.l.b16 %v1772
      %v1837 = vunpack.c.l.b16 %v1773
      %v1838 = vunpack.c.l.b16 %v1774
      %v1839 = vunpack.c.l.b16 %v1775
      %v1840 = vunpack.c.l.b16 %v1776
      %v1841 = vunpack.c.l.b16 %v1777
      %v1842 = vunpack.c.l.b16 %v1778
      %v1843 = vunpack.c.l.b16 %v1779
      %v1844 = vunpack.c.l.b16 %v1780
      %v1845 = vunpack.c.l.b16 %v1781
      %v1846 = vunpack.c.l.b16 %v1782
      %v1847 = vunpack.c.l.b16 %v1783
      %v1848 = vunpack.c.l.b16 %v1784
      %v1849 = vpack.c.b16 %v1834, %v1833
      %v1850 = vpack.c.b16 %v1836, %v1835
      %v1851 = vpack.c.b16 %v1838, %v1837
      %v1852 = vpack.c.b16 %v1840, %v1839
      %v1853 = vpack.c.b16 %v1842, %v1841
      %v1854 = vpack.c.b16 %v1844, %v1843
      %v1855 = vpack.c.b16 %v1846, %v1845
      %v1856 = vpack.c.b16 %v1848, %v1847
      %1865 = vmatprep.subr.bf16.mxu0 0
      %1866 = vmatpush1.bf16.msra.mxu0 %v1856
      %1867 = vmatprep.subr.bf16.mxu0 0
      %1868 = vmatpush1.bf16.msra.mxu0 %v1855
      %1869 = vmatprep.subr.bf16.mxu0 0
      %1870 = vmatpush1.bf16.msra.mxu0 %v1854
      %1871 = vmatprep.subr.bf16.mxu0 0
      %1872 = vmatpush1.bf16.msra.mxu0 %v1853
      %1873 = vmatprep.subr.bf16.mxu0 0
      %1874 = vmatpush1.bf16.msra.mxu0 %v1852
      %1875 = vmatprep.subr.bf16.mxu0 0
      %1876 = vmatpush1.bf16.msra.mxu0 %v1851
      %1877 = vmatprep.subr.bf16.mxu0 0
      %1878 = vmatpush1.bf16.msra.mxu0 %v1850
      %1879 = vmatprep.subr.bf16.mxu0 0
      %1880 = vmatpush1.bf16.msra.mxu0 %v1849
      %1881 = vmatprep.subr.bf16.mxu0 0
      %1882 = vmatpush2.bf16.msra.mxu0 0
      %1883 = vmatprep.subr.bf16.mxu0 0
      %1884 = vmatpush2.bf16.msra.mxu0 0
      %1885 = vmatprep.subr.bf16.mxu0 0
      %1886 = vmatpush2.bf16.msra.mxu0 0
      %1887 = vmatprep.subr.bf16.mxu0 0
      %1888 = vmatpush2.bf16.msra.mxu0 0
      %1889 = vmatprep.subr.bf16.mxu0 0
      %1890 = vmatpush2.bf16.msra.mxu0 0
      %1891 = vmatprep.subr.bf16.mxu0 0
      %1892 = vmatpush2.bf16.msra.mxu0 0
      %1893 = vmatprep.subr.bf16.mxu0 0
      %1894 = vmatpush2.bf16.msra.mxu0 0
      %1895 = vmatprep.subr.bf16.mxu0 0
      %1896 = vmatpush2.bf16.msra.mxu0 0
      %1897 = vmatprep.mubr.bf16.mxu0 0
      %1898 = vmatmul.mubr.bf16.gmra.mxu0 %v1801
      %v1899 = vpop.f32.mrf.mxu0
      %v1900 = vadd.f32 0.0, %v1899
      %v1901 = vpop.f32.mrf.mxu0
      %v1902 = vpop.f32.mrf.mxu0
      %v1903 = vadd.f32 0.0, %v1902
      %v1904 = vpop.f32.mrf.mxu0
      %1905 = vmatprep.mubr.bf16.mxu0 0
      %1906 = vmatmul.mubr.bf16.gmra.mxu0 %v1802
      %v1907 = vpop.f32.mrf.mxu0
      %v1908 = vadd.f32 0.0, %v1907
      %v1909 = vpop.f32.mrf.mxu0
      %v1910 = vpop.f32.mrf.mxu0
      %v1911 = vadd.f32 0.0, %v1910
      %v1912 = vpop.f32.mrf.mxu0
      %1913 = vmatprep.mubr.bf16.mxu0 0
      %1914 = vmatmul.mubr.bf16.gmra.mxu0 %v1803
      %v1915 = vpop.f32.mrf.mxu0
      %v1916 = vadd.f32 0.0, %v1915
      %v1917 = vpop.f32.mrf.mxu0
      %v1918 = vpop.f32.mrf.mxu0
      %v1919 = vadd.f32 0.0, %v1918
      %v1920 = vpop.f32.mrf.mxu0
      %1921 = vmatprep.mubr.bf16.mxu0 0
      %1922 = vmatmul.mubr.bf16.gmra.mxu0 %v1804
      %v1923 = vpop.f32.mrf.mxu0
      %v1924 = vadd.f32 0.0, %v1923
      %v1925 = vpop.f32.mrf.mxu0
      %v1926 = vpop.f32.mrf.mxu0
      %v1927 = vadd.f32 0.0, %v1926
      %v1928 = vpop.f32.mrf.mxu0
      %1929 = vmatprep.mubr.bf16.mxu0 0
      %1930 = vmatmul.mubr.bf16.gmra.mxu0 %v1805
      %v1931 = vpop.f32.mrf.mxu0
      %v1932 = vadd.f32 0.0, %v1931
      %v1933 = vpop.f32.mrf.mxu0
      %v1934 = vpop.f32.mrf.mxu0
      %v1935 = vadd.f32 0.0, %v1934
      %v1936 = vpop.f32.mrf.mxu0
      %1937 = vmatprep.mubr.bf16.mxu0 0
      %1938 = vmatmul.mubr.bf16.gmra.mxu0 %v1806
      %v1939 = vpop.f32.mrf.mxu0
      %v1940 = vadd.f32 0.0, %v1939
      %v1941 = vpop.f32.mrf.mxu0
      %v1942 = vpop.f32.mrf.mxu0
      %v1943 = vadd.f32 0.0, %v1942
      %v1944 = vpop.f32.mrf.mxu0
      %1945 = vmatprep.mubr.bf16.mxu0 0
      %1946 = vmatmul.mubr.bf16.gmra.mxu0 %v1807
      %v1947 = vpop.f32.mrf.mxu0
      %v1948 = vadd.f32 0.0, %v1947
      %v1949 = vpop.f32.mrf.mxu0
      %v1950 = vpop.f32.mrf.mxu0
      %v1951 = vadd.f32 0.0, %v1950
      %v1952 = vpop.f32.mrf.mxu0
      %1953 = vmatprep.mubr.bf16.mxu0 0
      %1954 = vmatmul.mubr.bf16.gmra.mxu0 %v1808
      %v1955 = vpop.f32.mrf.mxu0
      %v1956 = vadd.f32 0.0, %v1955
      %v1957 = vpop.f32.mrf.mxu0
      %v1958 = vpop.f32.mrf.mxu0
      %v1959 = vadd.f32 0.0, %v1958
      %v1960 = vpop.f32.mrf.mxu0
      %1961 = vdwg.mxu0
      %v1962 = vadd.f32 %v1592, %v1900
      %v1963 = vadd.f32 %v1595, %v1903
      %v1964 = vadd.f32 %v1600, %v1908
      %v1965 = vadd.f32 %v1603, %v1911
      %v1966 = vadd.f32 %v1608, %v1916
      %v1967 = vadd.f32 %v1611, %v1919
      %v1968 = vadd.f32 %v1616, %v1924
      %v1969 = vadd.f32 %v1619, %v1927
      %v1970 = vadd.f32 %v1624, %v1932
      %v1971 = vadd.f32 %v1627, %v1935
      %v1972 = vadd.f32 %v1632, %v1940
      %v1973 = vadd.f32 %v1635, %v1943
      %v1974 = vadd.f32 %v1640, %v1948
      %v1975 = vadd.f32 %v1643, %v1951
      %v1976 = vadd.f32 %v1648, %v1956
      %v1977 = vadd.f32 %v1651, %v1959
      %v1978 = vld [vmem:[%s894] sm:$0xf]
      %v1979 = vld [vmem:[%s894 + $0x8] sm:$0xf]
      %v1980 = vld [vmem:[%s894 + $0x10] sm:$0xf]
      %v1981 = vld [vmem:[%s894 + $0x18] sm:$0xf]
      %v1982 = vld [vmem:[%s894 + $0x20] sm:$0xf]
      %v1983 = vld [vmem:[%s894 + $0x28] sm:$0xf]
      %v1984 = vld [vmem:[%s894 + $0x30] sm:$0xf]
      %v1985 = vld [vmem:[%s894 + $0x38] sm:$0xf]
      %v1986 = vld [vmem:[%s894 + $0x50] sm:$0xf]
      %v1987 = vld [vmem:[%s894 + $0x58] sm:$0xf]
      %v1988 = vld [vmem:[%s894 + $0x60] sm:$0xf]
      %v1989 = vld [vmem:[%s894 + $0x68] sm:$0xf]
      %v1990 = vld [vmem:[%s894 + $0x70] sm:$0xf]
      %v1991 = vld [vmem:[%s894 + $0x78] sm:$0xf]
      %v1992 = vld [vmem:[%s894 + $0x80] sm:$0xf]
      %v1993 = vld [vmem:[%s894 + $0x88] sm:$0xf]
      %v1994 = vld [vmem:[%s3 + $0xc0] sm:$0xf]
      %v1995 = vld [vmem:[%s3 + $0xc4] sm:$0xf]
      %v1996 = vld [vmem:[%s3 + $0xc8] sm:$0xf]
      %v1997 = vld [vmem:[%s3 + $0xcc] sm:$0xf]
      %v1998 = vld [vmem:[%s3 + $0xd0] sm:$0xf]
      %v1999 = vld [vmem:[%s3 + $0xd4] sm:$0xf]
      %v2000 = vld [vmem:[%s3 + $0xd8] sm:$0xf]
      %v2001 = vld [vmem:[%s3 + $0xdc] sm:$0xf]
      %v2002 = vld [vmem:[%s3 + $0xe0] sm:$0xf]
      %v2003 = vld [vmem:[%s3 + $0xe4] sm:$0xf]
      %v2004 = vld [vmem:[%s3 + $0xe8] sm:$0xf]
      %v2005 = vld [vmem:[%s3 + $0xec] sm:$0xf]
      %v2006 = vld [vmem:[%s3 + $0xf0] sm:$0xf]
      %v2007 = vld [vmem:[%s3 + $0xf4] sm:$0xf]
      %v2008 = vld [vmem:[%s3 + $0xf8] sm:$0xf]
      %v2009 = vld [vmem:[%s3 + $0xfc] sm:$0xf]
      %v2026 = vunpack.c.l.b16 %v1978
      %v2027 = vunpack.c.l.b16 %v1979
      %v2028 = vunpack.c.l.b16 %v1980
      %v2029 = vunpack.c.l.b16 %v1981
      %v2030 = vunpack.c.l.b16 %v1982
      %v2031 = vunpack.c.l.b16 %v1983
      %v2032 = vunpack.c.l.b16 %v1984
      %v2033 = vunpack.c.l.b16 %v1985
      %v2034 = vunpack.c.l.b16 %v1986
      %v2035 = vunpack.c.l.b16 %v1987
      %v2036 = vunpack.c.l.b16 %v1988
      %v2037 = vunpack.c.l.b16 %v1989
      %v2038 = vunpack.c.l.b16 %v1990
      %v2039 = vunpack.c.l.b16 %v1991
      %v2040 = vunpack.c.l.b16 %v1992
      %v2041 = vunpack.c.l.b16 %v1993
      %v2042 = vpack.c.b16 %v2027, %v2026
      %v2043 = vpack.c.b16 %v2029, %v2028
      %v2044 = vpack.c.b16 %v2031, %v2030
      %v2045 = vpack.c.b16 %v2033, %v2032
      %v2046 = vpack.c.b16 %v2035, %v2034
      %v2047 = vpack.c.b16 %v2037, %v2036
      %v2048 = vpack.c.b16 %v2039, %v2038
      %v2049 = vpack.c.b16 %v2041, %v2040
      %v2074 = vunpack.c.l.b16 %v1994
      %v2075 = vunpack.c.l.b16 %v1995
      %v2076 = vunpack.c.l.b16 %v1996
      %v2077 = vunpack.c.l.b16 %v1997
      %v2078 = vunpack.c.l.b16 %v1998
      %v2079 = vunpack.c.l.b16 %v1999
      %v2080 = vunpack.c.l.b16 %v2000
      %v2081 = vunpack.c.l.b16 %v2001
      %v2082 = vunpack.c.l.b16 %v2002
      %v2083 = vunpack.c.l.b16 %v2003
      %v2084 = vunpack.c.l.b16 %v2004
      %v2085 = vunpack.c.l.b16 %v2005
      %v2086 = vunpack.c.l.b16 %v2006
      %v2087 = vunpack.c.l.b16 %v2007
      %v2088 = vunpack.c.l.b16 %v2008
      %v2089 = vunpack.c.l.b16 %v2009
      %v2090 = vpack.c.b16 %v2075, %v2074
      %v2091 = vpack.c.b16 %v2077, %v2076
      %v2092 = vpack.c.b16 %v2079, %v2078
      %v2093 = vpack.c.b16 %v2081, %v2080
      %v2094 = vpack.c.b16 %v2083, %v2082
      %v2095 = vpack.c.b16 %v2085, %v2084
      %v2096 = vpack.c.b16 %v2087, %v2086
      %v2097 = vpack.c.b16 %v2089, %v2088
      %2106 = vmatprep.subr.bf16.mxu0 0
      %2107 = vmatpush1.bf16.msra.mxu0 %v2097
      %2108 = vmatprep.subr.bf16.mxu0 0
      %2109 = vmatpush1.bf16.msra.mxu0 %v2096
      %2110 = vmatprep.subr.bf16.mxu0 0
      %2111 = vmatpush1.bf16.msra.mxu0 %v2095
      %2112 = vmatprep.subr.bf16.mxu0 0
      %2113 = vmatpush1.bf16.msra.mxu0 %v2094
      %2114 = vmatprep.subr.bf16.mxu0 0
      %2115 = vmatpush1.bf16.msra.mxu0 %v2093
      %2116 = vmatprep.subr.bf16.mxu0 0
      %2117 = vmatpush1.bf16.msra.mxu0 %v2092
      %2118 = vmatprep.subr.bf16.mxu0 0
      %2119 = vmatpush1.bf16.msra.mxu0 %v2091
      %2120 = vmatprep.subr.bf16.mxu0 0
      %2121 = vmatpush1.bf16.msra.mxu0 %v2090
      %2122 = vmatprep.subr.bf16.mxu0 0
      %2123 = vmatpush2.bf16.msra.mxu0 0
      %2124 = vmatprep.subr.bf16.mxu0 0
      %2125 = vmatpush2.bf16.msra.mxu0 0
      %2126 = vmatprep.subr.bf16.mxu0 0
      %2127 = vmatpush2.bf16.msra.mxu0 0
      %2128 = vmatprep.subr.bf16.mxu0 0
      %2129 = vmatpush2.bf16.msra.mxu0 0
      %2130 = vmatprep.subr.bf16.mxu0 0
      %2131 = vmatpush2.bf16.msra.mxu0 0
      %2132 = vmatprep.subr.bf16.mxu0 0
      %2133 = vmatpush2.bf16.msra.mxu0 0
      %2134 = vmatprep.subr.bf16.mxu0 0
      %2135 = vmatpush2.bf16.msra.mxu0 0
      %2136 = vmatprep.subr.bf16.mxu0 0
      %2137 = vmatpush2.bf16.msra.mxu0 0
      %2138 = vmatprep.mubr.bf16.mxu0 0
      %2139 = vmatmul.mubr.bf16.gmra.mxu0 %v2042
      %v2140 = vpop.f32.mrf.mxu0
      %v2141 = vadd.f32 0.0, %v2140
      %v2142 = vpop.f32.mrf.mxu0
      %v2143 = vpop.f32.mrf.mxu0
      %v2144 = vadd.f32 0.0, %v2143
      %v2145 = vpop.f32.mrf.mxu0
      %2146 = vmatprep.mubr.bf16.mxu0 0
      %2147 = vmatmul.mubr.bf16.gmra.mxu0 %v2043
      %v2148 = vpop.f32.mrf.mxu0
      %v2149 = vadd.f32 0.0, %v2148
      %v2150 = vpop.f32.mrf.mxu0
      %v2151 = vpop.f32.mrf.mxu0
      %v2152 = vadd.f32 0.0, %v2151
      %v2153 = vpop.f32.mrf.mxu0
      %2154 = vmatprep.mubr.bf16.mxu0 0
      %2155 = vmatmul.mubr.bf16.gmra.mxu0 %v2044
      %v2156 = vpop.f32.mrf.mxu0
      %v2157 = vadd.f32 0.0, %v2156
      %v2158 = vpop.f32.mrf.mxu0
      %v2159 = vpop.f32.mrf.mxu0
      %v2160 = vadd.f32 0.0, %v2159
      %v2161 = vpop.f32.mrf.mxu0
      %2162 = vmatprep.mubr.bf16.mxu0 0
      %2163 = vmatmul.mubr.bf16.gmra.mxu0 %v2045
      %v2164 = vpop.f32.mrf.mxu0
      %v2165 = vadd.f32 0.0, %v2164
      %v2166 = vpop.f32.mrf.mxu0
      %v2167 = vpop.f32.mrf.mxu0
      %v2168 = vadd.f32 0.0, %v2167
      %v2169 = vpop.f32.mrf.mxu0
      %2170 = vmatprep.mubr.bf16.mxu0 0
      %2171 = vmatmul.mubr.bf16.gmra.mxu0 %v2046
      %v2172 = vpop.f32.mrf.mxu0
      %v2173 = vadd.f32 0.0, %v2172
      %v2174 = vpop.f32.mrf.mxu0
      %v2175 = vpop.f32.mrf.mxu0
      %v2176 = vadd.f32 0.0, %v2175
      %v2177 = vpop.f32.mrf.mxu0
      %2178 = vmatprep.mubr.bf16.mxu0 0
      %2179 = vmatmul.mubr.bf16.gmra.mxu0 %v2047
      %v2180 = vpop.f32.mrf.mxu0
      %v2181 = vadd.f32 0.0, %v2180
      %v2182 = vpop.f32.mrf.mxu0
      %v2183 = vpop.f32.mrf.mxu0
      %v2184 = vadd.f32 0.0, %v2183
      %v2185 = vpop.f32.mrf.mxu0
      %2186 = vmatprep.mubr.bf16.mxu0 0
      %2187 = vmatmul.mubr.bf16.gmra.mxu0 %v2048
      %v2188 = vpop.f32.mrf.mxu0
      %v2189 = vadd.f32 0.0, %v2188
      %v2190 = vpop.f32.mrf.mxu0
      %v2191 = vpop.f32.mrf.mxu0
      %v2192 = vadd.f32 0.0, %v2191
      %v2193 = vpop.f32.mrf.mxu0
      %2194 = vmatprep.mubr.bf16.mxu0 0
      %2195 = vmatmul.mubr.bf16.gmra.mxu0 %v2049
      %v2196 = vpop.f32.mrf.mxu0
      %v2197 = vadd.f32 0.0, %v2196
      %v2198 = vpop.f32.mrf.mxu0
      %v2199 = vpop.f32.mrf.mxu0
      %v2200 = vadd.f32 0.0, %v2199
      %v2201 = vpop.f32.mrf.mxu0
      %2202 = vdwg.mxu0
      %v2203 = vadd.f32 %v1962, %v2141
      %v2204 = vadd.f32 %v1963, %v2144
      %v2205 = vadd.f32 %v1964, %v2149
      %v2206 = vadd.f32 %v1965, %v2152
      %v2207 = vadd.f32 %v1966, %v2157
      %v2208 = vadd.f32 %v1967, %v2160
      %v2209 = vadd.f32 %v1968, %v2165
      %v2210 = vadd.f32 %v1969, %v2168
      %v2211 = vadd.f32 %v1970, %v2173
      %v2212 = vadd.f32 %v1971, %v2176
      %v2213 = vadd.f32 %v1972, %v2181
      %v2214 = vadd.f32 %v1973, %v2184
      %v2215 = vadd.f32 %v1974, %v2189
      %v2216 = vadd.f32 %v1975, %v2192
      %v2217 = vadd.f32 %v1976, %v2197
      %v2218 = vadd.f32 %v1977, %v2200
      %v2219 = vld [vmem:[%s894] sm:$0xf]
      %v2220 = vld [vmem:[%s894 + $0x4] sm:$0x1]
      %v2221 = vld [vmem:[%s894 + $0x8] sm:$0xf]
      %v2222 = vld [vmem:[%s894 + $0xc] sm:$0x1]
      %v2223 = vld [vmem:[%s894 + $0x10] sm:$0xf]
      %v2224 = vld [vmem:[%s894 + $0x14] sm:$0x1]
      %v2225 = vld [vmem:[%s894 + $0x18] sm:$0xf]
      %v2226 = vld [vmem:[%s894 + $0x1c] sm:$0x1]
      %v2227 = vld [vmem:[%s894 + $0x20] sm:$0xf]
      %v2228 = vld [vmem:[%s894 + $0x24] sm:$0x1]
      %v2229 = vld [vmem:[%s894 + $0x28] sm:$0xf]
      %v2230 = vld [vmem:[%s894 + $0x2c] sm:$0x1]
      %v2231 = vld [vmem:[%s894 + $0x30] sm:$0xf]
      %v2232 = vld [vmem:[%s894 + $0x34] sm:$0x1]
      %v2233 = vld [vmem:[%s894 + $0x38] sm:$0xf]
      %v2234 = vld [vmem:[%s894 + $0x3c] sm:$0x1]
      %v2235 = vld [vmem:[%s894 + $0x50] sm:$0xf]
      %v2236 = vld [vmem:[%s894 + $0x54] sm:$0x1]
      %v2237 = vld [vmem:[%s894 + $0x58] sm:$0xf]
      %v2238 = vld [vmem:[%s894 + $0x5c] sm:$0x1]
      %v2239 = vld [vmem:[%s894 + $0x60] sm:$0xf]
      %v2240 = vld [vmem:[%s894 + $0x64] sm:$0x1]
      %v2241 = vld [vmem:[%s894 + $0x68] sm:$0xf]
      %v2242 = vld [vmem:[%s894 + $0x6c] sm:$0x1]
      %v2243 = vld [vmem:[%s894 + $0x70] sm:$0xf]
      %v2244 = vld [vmem:[%s894 + $0x74] sm:$0x1]
      %v2245 = vld [vmem:[%s894 + $0x78] sm:$0xf]
      %v2246 = vld [vmem:[%s894 + $0x7c] sm:$0x1]
      %v2247 = vld [vmem:[%s894 + $0x80] sm:$0xf]
      %v2248 = vld [vmem:[%s894 + $0x84] sm:$0x1]
      %v2249 = vld [vmem:[%s894 + $0x88] sm:$0xf]
      %v2250 = vld [vmem:[%s894 + $0x8c] sm:$0x1]
      %v2252 = vshrl.u32 %v2219, 16
      %v2254 = vrot.slane %v2252, 4
      %v2255 = vshll.u32 %v2219, 16
      %v2257 = vrot.slane %v2255, 5
      %v2258 = vor.u32 %v2254, %v2257
      %v2259 = vrot.slane %v2258, 4
      %v2261 = vshll.u32 %v2220, 16
      %v2263 = vrot.slane %v2261, 5
      %v2264 = vsel %vm1043, %v2259, %v2263
      %v2266 = vshrl.u32 %v2221, 16
      %v2268 = vrot.slane %v2266, 4
      %v2269 = vshll.u32 %v2221, 16
      %v2271 = vrot.slane %v2269, 5
      %v2272 = vor.u32 %v2268, %v2271
      %v2273 = vrot.slane %v2272, 4
      %v2275 = vshll.u32 %v2222, 16
      %v2277 = vrot.slane %v2275, 5
      %v2278 = vsel %vm1043, %v2273, %v2277
      %v2280 = vshrl.u32 %v2223, 16
      %v2282 = vrot.slane %v2280, 4
      %v2283 = vshll.u32 %v2223, 16
      %v2285 = vrot.slane %v2283, 5
      %v2286 = vor.u32 %v2282, %v2285
      %v2287 = vrot.slane %v2286, 4
      %v2289 = vshll.u32 %v2224, 16
      %v2291 = vrot.slane %v2289, 5
      %v2292 = vsel %vm1043, %v2287, %v2291
      %v2294 = vshrl.u32 %v2225, 16
      %v2296 = vrot.slane %v2294, 4
      %v2297 = vshll.u32 %v2225, 16
      %v2299 = vrot.slane %v2297, 5
      %v2300 = vor.u32 %v2296, %v2299
      %v2301 = vrot.slane %v2300, 4
      %v2303 = vshll.u32 %v2226, 16
      %v2305 = vrot.slane %v2303, 5
      %v2306 = vsel %vm1043, %v2301, %v2305
      %v2308 = vshrl.u32 %v2227, 16
      %v2310 = vrot.slane %v2308, 4
      %v2311 = vshll.u32 %v2227, 16
      %v2313 = vrot.slane %v2311, 5
      %v2314 = vor.u32 %v2310, %v2313
      %v2315 = vrot.slane %v2314, 4
      %v2317 = vshll.u32 %v2228, 16
      %v2319 = vrot.slane %v2317, 5
      %v2320 = vsel %vm1043, %v2315, %v2319
      %v2322 = vshrl.u32 %v2229, 16
      %v2324 = vrot.slane %v2322, 4
      %v2325 = vshll.u32 %v2229, 16
      %v2327 = vrot.slane %v2325, 5
      %v2328 = vor.u32 %v2324, %v2327
      %v2329 = vrot.slane %v2328, 4
      %v2331 = vshll.u32 %v2230, 16
      %v2333 = vrot.slane %v2331, 5
      %v2334 = vsel %vm1043, %v2329, %v2333
      %v2336 = vshrl.u32 %v2231, 16
      %v2338 = vrot.slane %v2336, 4
      %v2339 = vshll.u32 %v2231, 16
      %v2341 = vrot.slane %v2339, 5
      %v2342 = vor.u32 %v2338, %v2341
      %v2343 = vrot.slane %v2342, 4
      %v2345 = vshll.u32 %v2232, 16
      %v2347 = vrot.slane %v2345, 5
      %v2348 = vsel %vm1043, %v2343, %v2347
      %v2350 = vshrl.u32 %v2233, 16
      %v2352 = vrot.slane %v2350, 4
      %v2353 = vshll.u32 %v2233, 16
      %v2355 = vrot.slane %v2353, 5
      %v2356 = vor.u32 %v2352, %v2355
      %v2357 = vrot.slane %v2356, 4
      %v2359 = vshll.u32 %v2234, 16
      %v2361 = vrot.slane %v2359, 5
      %v2362 = vsel %vm1043, %v2357, %v2361
      %v2364 = vshrl.u32 %v2235, 16
      %v2366 = vrot.slane %v2364, 4
      %v2367 = vshll.u32 %v2235, 16
      %v2369 = vrot.slane %v2367, 5
      %v2370 = vor.u32 %v2366, %v2369
      %v2371 = vrot.slane %v2370, 4
      %v2373 = vshll.u32 %v2236, 16
      %v2375 = vrot.slane %v2373, 5
      %v2376 = vsel %vm1043, %v2371, %v2375
      %v2378 = vshrl.u32 %v2237, 16
      %v2380 = vrot.slane %v2378, 4
      %v2381 = vshll.u32 %v2237, 16
      %v2383 = vrot.slane %v2381, 5
      %v2384 = vor.u32 %v2380, %v2383
      %v2385 = vrot.slane %v2384, 4
      %v2387 = vshll.u32 %v2238, 16
      %v2389 = vrot.slane %v2387, 5
      %v2390 = vsel %vm1043, %v2385, %v2389
      %v2392 = vshrl.u32 %v2239, 16
      %v2394 = vrot.slane %v2392, 4
      %v2395 = vshll.u32 %v2239, 16
      %v2397 = vrot.slane %v2395, 5
      %v2398 = vor.u32 %v2394, %v2397
      %v2399 = vrot.slane %v2398, 4
      %v2401 = vshll.u32 %v2240, 16
      %v2403 = vrot.slane %v2401, 5
      %v2404 = vsel %vm1043, %v2399, %v2403
      %v2406 = vshrl.u32 %v2241, 16
      %v2408 = vrot.slane %v2406, 4
      %v2409 = vshll.u32 %v2241, 16
      %v2411 = vrot.slane %v2409, 5
      %v2412 = vor.u32 %v2408, %v2411
      %v2413 = vrot.slane %v2412, 4
      %v2415 = vshll.u32 %v2242, 16
      %v2417 = vrot.slane %v2415, 5
      %v2418 = vsel %vm1043, %v2413, %v2417
      %v2420 = vshrl.u32 %v2243, 16
      %v2422 = vrot.slane %v2420, 4
      %v2423 = vshll.u32 %v2243, 16
      %v2425 = vrot.slane %v2423, 5
      %v2426 = vor.u32 %v2422, %v2425
      %v2427 = vrot.slane %v2426, 4
      %v2429 = vshll.u32 %v2244, 16
      %v2431 = vrot.slane %v2429, 5
      %v2432 = vsel %vm1043, %v2427, %v2431
      %v2434 = vshrl.u32 %v2245, 16
      %v2436 = vrot.slane %v2434, 4
      %v2437 = vshll.u32 %v2245, 16
      %v2439 = vrot.slane %v2437, 5
      %v2440 = vor.u32 %v2436, %v2439
      %v2441 = vrot.slane %v2440, 4
      %v2443 = vshll.u32 %v2246, 16
      %v2445 = vrot.slane %v2443, 5
      %v2446 = vsel %vm1043, %v2441, %v2445
      %v2448 = vshrl.u32 %v2247, 16
      %v2450 = vrot.slane %v2448, 4
      %v2451 = vshll.u32 %v2247, 16
      %v2453 = vrot.slane %v2451, 5
      %v2454 = vor.u32 %v2450, %v2453
      %v2455 = vrot.slane %v2454, 4
      %v2457 = vshll.u32 %v2248, 16
      %v2459 = vrot.slane %v2457, 5
      %v2460 = vsel %vm1043, %v2455, %v2459
      %v2462 = vshrl.u32 %v2249, 16
      %v2464 = vrot.slane %v2462, 4
      %v2465 = vshll.u32 %v2249, 16
      %v2467 = vrot.slane %v2465, 5
      %v2468 = vor.u32 %v2464, %v2467
      %v2469 = vrot.slane %v2468, 4
      %v2471 = vshll.u32 %v2250, 16
      %v2473 = vrot.slane %v2471, 5
      %v2474 = vsel %vm1043, %v2469, %v2473
      %v2475 = vld [vmem:[%s3 + $0x100] sm:$0xf]
      %v2476 = vld [vmem:[%s3 + $0x104] sm:$0xf]
      %v2477 = vld [vmem:[%s3 + $0x108] sm:$0xf]
      %v2478 = vld [vmem:[%s3 + $0x10c] sm:$0xf]
      %v2479 = vld [vmem:[%s3 + $0x110] sm:$0xf]
      %v2480 = vld [vmem:[%s3 + $0x114] sm:$0xf]
      %v2481 = vld [vmem:[%s3 + $0x118] sm:$0xf]
      %v2482 = vld [vmem:[%s3 + $0x11c] sm:$0xf]
      %v2483 = vld [vmem:[%s3 + $0x120] sm:$0xf]
      %v2484 = vld [vmem:[%s3 + $0x124] sm:$0xf]
      %v2485 = vld [vmem:[%s3 + $0x128] sm:$0xf]
      %v2486 = vld [vmem:[%s3 + $0x12c] sm:$0xf]
      %v2487 = vld [vmem:[%s3 + $0x130] sm:$0xf]
      %v2488 = vld [vmem:[%s3 + $0x134] sm:$0xf]
      %v2489 = vld [vmem:[%s3 + $0x138] sm:$0xf]
      %v2490 = vld [vmem:[%s3 + $0x13c] sm:$0xf]
      %v2491 = vunpack.c.l.b16 %v2264
      %v2492 = vunpack.c.l.b16 %v2278
      %v2493 = vunpack.c.l.b16 %v2292
      %v2494 = vunpack.c.l.b16 %v2306
      %v2495 = vunpack.c.l.b16 %v2320
      %v2496 = vunpack.c.l.b16 %v2334
      %v2497 = vunpack.c.l.b16 %v2348
      %v2498 = vunpack.c.l.b16 %v2362
      %v2499 = vunpack.c.l.b16 %v2376
      %v2500 = vunpack.c.l.b16 %v2390
      %v2501 = vunpack.c.l.b16 %v2404
      %v2502 = vunpack.c.l.b16 %v2418
      %v2503 = vunpack.c.l.b16 %v2432
      %v2504 = vunpack.c.l.b16 %v2446
      %v2505 = vunpack.c.l.b16 %v2460
      %v2506 = vunpack.c.l.b16 %v2474
      %v2507 = vpack.c.b16 %v2492, %v2491
      %v2508 = vpack.c.b16 %v2494, %v2493
      %v2509 = vpack.c.b16 %v2496, %v2495
      %v2510 = vpack.c.b16 %v2498, %v2497
      %v2511 = vpack.c.b16 %v2500, %v2499
      %v2512 = vpack.c.b16 %v2502, %v2501
      %v2513 = vpack.c.b16 %v2504, %v2503
      %v2514 = vpack.c.b16 %v2506, %v2505
      %v2539 = vunpack.c.l.b16 %v2475
      %v2540 = vunpack.c.l.b16 %v2476
      %v2541 = vunpack.c.l.b16 %v2477
      %v2542 = vunpack.c.l.b16 %v2478
      %v2543 = vunpack.c.l.b16 %v2479
      %v2544 = vunpack.c.l.b16 %v2480
      %v2545 = vunpack.c.l.b16 %v2481
      %v2546 = vunpack.c.l.b16 %v2482
      %v2547 = vunpack.c.l.b16 %v2483
      %v2548 = vunpack.c.l.b16 %v2484
      %v2549 = vunpack.c.l.b16 %v2485
      %v2550 = vunpack.c.l.b16 %v2486
      %v2551 = vunpack.c.l.b16 %v2487
      %v2552 = vunpack.c.l.b16 %v2488
      %v2553 = vunpack.c.l.b16 %v2489
      %v2554 = vunpack.c.l.b16 %v2490
      %v2555 = vpack.c.b16 %v2540, %v2539
      %v2556 = vpack.c.b16 %v2542, %v2541
      %v2557 = vpack.c.b16 %v2544, %v2543
      %v2558 = vpack.c.b16 %v2546, %v2545
      %v2559 = vpack.c.b16 %v2548, %v2547
      %v2560 = vpack.c.b16 %v2550, %v2549
      %v2561 = vpack.c.b16 %v2552, %v2551
      %v2562 = vpack.c.b16 %v2554, %v2553
      %2571 = vmatprep.subr.bf16.mxu0 0
      %2572 = vmatpush1.bf16.msra.mxu0 %v2562
      %2573 = vmatprep.subr.bf16.mxu0 0
      %2574 = vmatpush1.bf16.msra.mxu0 %v2561
      %2575 = vmatprep.subr.bf16.mxu0 0
      %2576 = vmatpush1.bf16.msra.mxu0 %v2560
      %2577 = vmatprep.subr.bf16.mxu0 0
      %2578 = vmatpush1.bf16.msra.mxu0 %v2559
      %2579 = vmatprep.subr.bf16.mxu0 0
      %2580 = vmatpush1.bf16.msra.mxu0 %v2558
      %2581 = vmatprep.subr.bf16.mxu0 0
      %2582 = vmatpush1.bf16.msra.mxu0 %v2557
      %2583 = vmatprep.subr.bf16.mxu0 0
      %2584 = vmatpush1.bf16.msra.mxu0 %v2556
      %2585 = vmatprep.subr.bf16.mxu0 0
      %2586 = vmatpush1.bf16.msra.mxu0 %v2555
      %2587 = vmatprep.subr.bf16.mxu0 0
      %2588 = vmatpush2.bf16.msra.mxu0 0
      %2589 = vmatprep.subr.bf16.mxu0 0
      %2590 = vmatpush2.bf16.msra.mxu0 0
      %2591 = vmatprep.subr.bf16.mxu0 0
      %2592 = vmatpush2.bf16.msra.mxu0 0
      %2593 = vmatprep.subr.bf16.mxu0 0
      %2594 = vmatpush2.bf16.msra.mxu0 0
      %2595 = vmatprep.subr.bf16.mxu0 0
      %2596 = vmatpush2.bf16.msra.mxu0 0
      %2597 = vmatprep.subr.bf16.mxu0 0
      %2598 = vmatpush2.bf16.msra.mxu0 0
      %2599 = vmatprep.subr.bf16.mxu0 0
      %2600 = vmatpush2.bf16.msra.mxu0 0
      %2601 = vmatprep.subr.bf16.mxu0 0
      %2602 = vmatpush2.bf16.msra.mxu0 0
      %2603 = vmatprep.mubr.bf16.mxu0 0
      %2604 = vmatmul.mubr.bf16.gmra.mxu0 %v2507
      %v2605 = vpop.f32.mrf.mxu0
      %v2606 = vadd.f32 0.0, %v2605
      %v2607 = vpop.f32.mrf.mxu0
      %v2608 = vpop.f32.mrf.mxu0
      %v2609 = vadd.f32 0.0, %v2608
      %v2610 = vpop.f32.mrf.mxu0
      %2611 = vmatprep.mubr.bf16.mxu0 0
      %2612 = vmatmul.mubr.bf16.gmra.mxu0 %v2508
      %v2613 = vpop.f32.mrf.mxu0
      %v2614 = vadd.f32 0.0, %v2613
      %v2615 = vpop.f32.mrf.mxu0
      %v2616 = vpop.f32.mrf.mxu0
      %v2617 = vadd.f32 0.0, %v2616
      %v2618 = vpop.f32.mrf.mxu0
      %2619 = vmatprep.mubr.bf16.mxu0 0
      %2620 = vmatmul.mubr.bf16.gmra.mxu0 %v2509
      %v2621 = vpop.f32.mrf.mxu0
      %v2622 = vadd.f32 0.0, %v2621
      %v2623 = vpop.f32.mrf.mxu0
      %v2624 = vpop.f32.mrf.mxu0
      %v2625 = vadd.f32 0.0, %v2624
      %v2626 = vpop.f32.mrf.mxu0
      %2627 = vmatprep.mubr.bf16.mxu0 0
      %2628 = vmatmul.mubr.bf16.gmra.mxu0 %v2510
      %v2629 = vpop.f32.mrf.mxu0
      %v2630 = vadd.f32 0.0, %v2629
      %v2631 = vpop.f32.mrf.mxu0
      %v2632 = vpop.f32.mrf.mxu0
      %v2633 = vadd.f32 0.0, %v2632
      %v2634 = vpop.f32.mrf.mxu0
      %2635 = vmatprep.mubr.bf16.mxu0 0
      %2636 = vmatmul.mubr.bf16.gmra.mxu0 %v2511
      %v2637 = vpop.f32.mrf.mxu0
      %v2638 = vadd.f32 0.0, %v2637
      %v2639 = vpop.f32.mrf.mxu0
      %v2640 = vpop.f32.mrf.mxu0
      %v2641 = vadd.f32 0.0, %v2640
      %v2642 = vpop.f32.mrf.mxu0
      %2643 = vmatprep.mubr.bf16.mxu0 0
      %2644 = vmatmul.mubr.bf16.gmra.mxu0 %v2512
      %v2645 = vpop.f32.mrf.mxu0
      %v2646 = vadd.f32 0.0, %v2645
      %v2647 = vpop.f32.mrf.mxu0
      %v2648 = vpop.f32.mrf.mxu0
      %v2649 = vadd.f32 0.0, %v2648
      %v2650 = vpop.f32.mrf.mxu0
      %2651 = vmatprep.mubr.bf16.mxu0 0
      %2652 = vmatmul.mubr.bf16.gmra.mxu0 %v2513
      %v2653 = vpop.f32.mrf.mxu0
      %v2654 = vadd.f32 0.0, %v2653
      %v2655 = vpop.f32.mrf.mxu0
      %v2656 = vpop.f32.mrf.mxu0
      %v2657 = vadd.f32 0.0, %v2656
      %v2658 = vpop.f32.mrf.mxu0
      %2659 = vmatprep.mubr.bf16.mxu0 0
      %2660 = vmatmul.mubr.bf16.gmra.mxu0 %v2514
      %v2661 = vpop.f32.mrf.mxu0
      %v2662 = vadd.f32 0.0, %v2661
      %v2663 = vpop.f32.mrf.mxu0
      %v2664 = vpop.f32.mrf.mxu0
      %v2665 = vadd.f32 0.0, %v2664
      %v2666 = vpop.f32.mrf.mxu0
      %2667 = vdwg.mxu0
      %v2668 = vadd.f32 %v2203, %v2606
      %v2669 = vadd.f32 %v2204, %v2609
      %v2670 = vadd.f32 %v2205, %v2614
      %v2671 = vadd.f32 %v2206, %v2617
      %v2672 = vadd.f32 %v2207, %v2622
      %v2673 = vadd.f32 %v2208, %v2625
      %v2674 = vadd.f32 %v2209, %v2630
      %v2675 = vadd.f32 %v2210, %v2633
      %v2676 = vadd.f32 %v2211, %v2638
      %v2677 = vadd.f32 %v2212, %v2641
      %v2678 = vadd.f32 %v2213, %v2646
      %v2679 = vadd.f32 %v2214, %v2649
      %v2680 = vadd.f32 %v2215, %v2654
      %v2681 = vadd.f32 %v2216, %v2657
      %v2682 = vadd.f32 %v2217, %v2662
      %v2683 = vadd.f32 %v2218, %v2665
      %v2684 = vld [vmem:[%s894] sm:$0xe]
      %v2685 = vld [vmem:[%s894 + $0x8] sm:$0xe]
      %v2686 = vld [vmem:[%s894 + $0x10] sm:$0xe]
      %v2687 = vld [vmem:[%s894 + $0x18] sm:$0xe]
      %v2688 = vld [vmem:[%s894 + $0x20] sm:$0xe]
      %v2689 = vld [vmem:[%s894 + $0x28] sm:$0xe]
      %v2690 = vld [vmem:[%s894 + $0x30] sm:$0xe]
      %v2691 = vld [vmem:[%s894 + $0x38] sm:$0xe]
      %v2692 = vld [vmem:[%s894 + $0x50] sm:$0xe]
      %v2693 = vld [vmem:[%s894 + $0x58] sm:$0xe]
      %v2694 = vld [vmem:[%s894 + $0x60] sm:$0xe]
      %v2695 = vld [vmem:[%s894 + $0x68] sm:$0xe]
      %v2696 = vld [vmem:[%s894 + $0x70] sm:$0xe]
      %v2697 = vld [vmem:[%s894 + $0x78] sm:$0xe]
      %v2698 = vld [vmem:[%s894 + $0x80] sm:$0xe]
      %v2699 = vld [vmem:[%s894 + $0x88] sm:$0xe]
      %v2732 = vrot.slane %v2684, 5
      %v2733 = vrot.slane %v2732, 4
      %v2734 = vrot.slane %v2220, 5
      %v2735 = vsel %vm1704, %v2733, %v2734
      %v2736 = vrot.slane %v2685, 5
      %v2737 = vrot.slane %v2736, 4
      %v2738 = vrot.slane %v2222, 5
      %v2739 = vsel %vm1704, %v2737, %v2738
      %v2740 = vrot.slane %v2686, 5
      %v2741 = vrot.slane %v2740, 4
      %v2742 = vrot.slane %v2224, 5
      %v2743 = vsel %vm1704, %v2741, %v2742
      %v2744 = vrot.slane %v2687, 5
      %v2745 = vrot.slane %v2744, 4
      %v2746 = vrot.slane %v2226, 5
      %v2747 = vsel %vm1704, %v2745, %v2746
      %v2748 = vrot.slane %v2688, 5
      %v2749 = vrot.slane %v2748, 4
      %v2750 = vrot.slane %v2228, 5
      %v2751 = vsel %vm1704, %v2749, %v2750
      %v2752 = vrot.slane %v2689, 5
      %v2753 = vrot.slane %v2752, 4
      %v2754 = vrot.slane %v2230, 5
      %v2755 = vsel %vm1704, %v2753, %v2754
      %v2756 = vrot.slane %v2690, 5
      %v2757 = vrot.slane %v2756, 4
      %v2758 = vrot.slane %v2232, 5
      %v2759 = vsel %vm1704, %v2757, %v2758
      %v2760 = vrot.slane %v2691, 5
      %v2761 = vrot.slane %v2760, 4
      %v2762 = vrot.slane %v2234, 5
      %v2763 = vsel %vm1704, %v2761, %v2762
      %v2764 = vrot.slane %v2692, 5
      %v2765 = vrot.slane %v2764, 4
      %v2766 = vrot.slane %v2236, 5
      %v2767 = vsel %vm1704, %v2765, %v2766
      %v2768 = vrot.slane %v2693, 5
      %v2769 = vrot.slane %v2768, 4
      %v2770 = vrot.slane %v2238, 5
      %v2771 = vsel %vm1704, %v2769, %v2770
      %v2772 = vrot.slane %v2694, 5
      %v2773 = vrot.slane %v2772, 4
      %v2774 = vrot.slane %v2240, 5
      %v2775 = vsel %vm1704, %v2773, %v2774
      %v2776 = vrot.slane %v2695, 5
      %v2777 = vrot.slane %v2776, 4
      %v2778 = vrot.slane %v2242, 5
      %v2779 = vsel %vm1704, %v2777, %v2778
      %v2780 = vrot.slane %v2696, 5
      %v2781 = vrot.slane %v2780, 4
      %v2782 = vrot.slane %v2244, 5
      %v2783 = vsel %vm1704, %v2781, %v2782
      %v2784 = vrot.slane %v2697, 5
      %v2785 = vrot.slane %v2784, 4
      %v2786 = vrot.slane %v2246, 5
      %v2787 = vsel %vm1704, %v2785, %v2786
      %v2788 = vrot.slane %v2698, 5
      %v2789 = vrot.slane %v2788, 4
      %v2790 = vrot.slane %v2248, 5
      %v2791 = vsel %vm1704, %v2789, %v2790
      %v2792 = vrot.slane %v2699, 5
      %v2793 = vrot.slane %v2792, 4
      %v2794 = vrot.slane %v2250, 5
      %v2795 = vsel %vm1704, %v2793, %v2794
      %v2796 = vld [vmem:[%s3 + $0x140] sm:$0xf]
      %v2797 = vld [vmem:[%s3 + $0x144] sm:$0xf]
      %v2798 = vld [vmem:[%s3 + $0x148] sm:$0xf]
      %v2799 = vld [vmem:[%s3 + $0x14c] sm:$0xf]
      %v2800 = vld [vmem:[%s3 + $0x150] sm:$0xf]
      %v2801 = vld [vmem:[%s3 + $0x154] sm:$0xf]
      %v2802 = vld [vmem:[%s3 + $0x158] sm:$0xf]
      %v2803 = vld [vmem:[%s3 + $0x15c] sm:$0xf]
      %v2804 = vld [vmem:[%s3 + $0x160] sm:$0xf]
      %v2805 = vld [vmem:[%s3 + $0x164] sm:$0xf]
      %v2806 = vld [vmem:[%s3 + $0x168] sm:$0xf]
      %v2807 = vld [vmem:[%s3 + $0x16c] sm:$0xf]
      %v2808 = vld [vmem:[%s3 + $0x170] sm:$0xf]
      %v2809 = vld [vmem:[%s3 + $0x174] sm:$0xf]
      %v2810 = vld [vmem:[%s3 + $0x178] sm:$0xf]
      %v2811 = vld [vmem:[%s3 + $0x17c] sm:$0xf]
      %v2812 = vunpack.c.l.b16 %v2735
      %v2813 = vunpack.c.l.b16 %v2739
      %v2814 = vunpack.c.l.b16 %v2743
      %v2815 = vunpack.c.l.b16 %v2747
      %v2816 = vunpack.c.l.b16 %v2751
      %v2817 = vunpack.c.l.b16 %v2755
      %v2818 = vunpack.c.l.b16 %v2759
      %v2819 = vunpack.c.l.b16 %v2763
      %v2820 = vunpack.c.l.b16 %v2767
      %v2821 = vunpack.c.l.b16 %v2771
      %v2822 = vunpack.c.l.b16 %v2775
      %v2823 = vunpack.c.l.b16 %v2779
      %v2824 = vunpack.c.l.b16 %v2783
      %v2825 = vunpack.c.l.b16 %v2787
      %v2826 = vunpack.c.l.b16 %v2791
      %v2827 = vunpack.c.l.b16 %v2795
      %v2828 = vpack.c.b16 %v2813, %v2812
      %v2829 = vpack.c.b16 %v2815, %v2814
      %v2830 = vpack.c.b16 %v2817, %v2816
      %v2831 = vpack.c.b16 %v2819, %v2818
      %v2832 = vpack.c.b16 %v2821, %v2820
      %v2833 = vpack.c.b16 %v2823, %v2822
      %v2834 = vpack.c.b16 %v2825, %v2824
      %v2835 = vpack.c.b16 %v2827, %v2826
      %v2860 = vunpack.c.l.b16 %v2796
      %v2861 = vunpack.c.l.b16 %v2797
      %v2862 = vunpack.c.l.b16 %v2798
      %v2863 = vunpack.c.l.b16 %v2799
      %v2864 = vunpack.c.l.b16 %v2800
      %v2865 = vunpack.c.l.b16 %v2801
      %v2866 = vunpack.c.l.b16 %v2802
      %v2867 = vunpack.c.l.b16 %v2803
      %v2868 = vunpack.c.l.b16 %v2804
      %v2869 = vunpack.c.l.b16 %v2805
      %v2870 = vunpack.c.l.b16 %v2806
      %v2871 = vunpack.c.l.b16 %v2807
      %v2872 = vunpack.c.l.b16 %v2808
      %v2873 = vunpack.c.l.b16 %v2809
      %v2874 = vunpack.c.l.b16 %v2810
      %v2875 = vunpack.c.l.b16 %v2811
      %v2876 = vpack.c.b16 %v2861, %v2860
      %v2877 = vpack.c.b16 %v2863, %v2862
      %v2878 = vpack.c.b16 %v2865, %v2864
      %v2879 = vpack.c.b16 %v2867, %v2866
      %v2880 = vpack.c.b16 %v2869, %v2868
      %v2881 = vpack.c.b16 %v2871, %v2870
      %v2882 = vpack.c.b16 %v2873, %v2872
      %v2883 = vpack.c.b16 %v2875, %v2874
      %2892 = vmatprep.subr.bf16.mxu0 0
      %2893 = vmatpush1.bf16.msra.mxu0 %v2883
      %2894 = vmatprep.subr.bf16.mxu0 0
      %2895 = vmatpush1.bf16.msra.mxu0 %v2882
      %2896 = vmatprep.subr.bf16.mxu0 0
      %2897 = vmatpush1.bf16.msra.mxu0 %v2881
      %2898 = vmatprep.subr.bf16.mxu0 0
      %2899 = vmatpush1.bf16.msra.mxu0 %v2880
      %2900 = vmatprep.subr.bf16.mxu0 0
      %2901 = vmatpush1.bf16.msra.mxu0 %v2879
      %2902 = vmatprep.subr.bf16.mxu0 0
      %2903 = vmatpush1.bf16.msra.mxu0 %v2878
      %2904 = vmatprep.subr.bf16.mxu0 0
      %2905 = vmatpush1.bf16.msra.mxu0 %v2877
      %2906 = vmatprep.subr.bf16.mxu0 0
      %2907 = vmatpush1.bf16.msra.mxu0 %v2876
      %2908 = vmatprep.subr.bf16.mxu0 0
      %2909 = vmatpush2.bf16.msra.mxu0 0
      %2910 = vmatprep.subr.bf16.mxu0 0
      %2911 = vmatpush2.bf16.msra.mxu0 0
      %2912 = vmatprep.subr.bf16.mxu0 0
      %2913 = vmatpush2.bf16.msra.mxu0 0
      %2914 = vmatprep.subr.bf16.mxu0 0
      %2915 = vmatpush2.bf16.msra.mxu0 0
      %2916 = vmatprep.subr.bf16.mxu0 0
      %2917 = vmatpush2.bf16.msra.mxu0 0
      %2918 = vmatprep.subr.bf16.mxu0 0
      %2919 = vmatpush2.bf16.msra.mxu0 0
      %2920 = vmatprep.subr.bf16.mxu0 0
      %2921 = vmatpush2.bf16.msra.mxu0 0
      %2922 = vmatprep.subr.bf16.mxu0 0
      %2923 = vmatpush2.bf16.msra.mxu0 0
      %2924 = vmatprep.mubr.bf16.mxu0 0
      %2925 = vmatmul.mubr.bf16.gmra.mxu0 %v2828
      %v2926 = vpop.f32.mrf.mxu0
      %v2927 = vadd.f32 0.0, %v2926
      %v2928 = vpop.f32.mrf.mxu0
      %v2929 = vpop.f32.mrf.mxu0
      %v2930 = vadd.f32 0.0, %v2929
      %v2931 = vpop.f32.mrf.mxu0
      %2932 = vmatprep.mubr.bf16.mxu0 0
      %2933 = vmatmul.mubr.bf16.gmra.mxu0 %v2829
      %v2934 = vpop.f32.mrf.mxu0
      %v2935 = vadd.f32 0.0, %v2934
      %v2936 = vpop.f32.mrf.mxu0
      %v2937 = vpop.f32.mrf.mxu0
      %v2938 = vadd.f32 0.0, %v2937
      %v2939 = vpop.f32.mrf.mxu0
      %2940 = vmatprep.mubr.bf16.mxu0 0
      %2941 = vmatmul.mubr.bf16.gmra.mxu0 %v2830
      %v2942 = vpop.f32.mrf.mxu0
      %v2943 = vadd.f32 0.0, %v2942
      %v2944 = vpop.f32.mrf.mxu0
      %v2945 = vpop.f32.mrf.mxu0
      %v2946 = vadd.f32 0.0, %v2945
      %v2947 = vpop.f32.mrf.mxu0
      %2948 = vmatprep.mubr.bf16.mxu0 0
      %2949 = vmatmul.mubr.bf16.gmra.mxu0 %v2831
      %v2950 = vpop.f32.mrf.mxu0
      %v2951 = vadd.f32 0.0, %v2950
      %v2952 = vpop.f32.mrf.mxu0
      %v2953 = vpop.f32.mrf.mxu0
      %v2954 = vadd.f32 0.0, %v2953
      %v2955 = vpop.f32.mrf.mxu0
      %2956 = vmatprep.mubr.bf16.mxu0 0
      %2957 = vmatmul.mubr.bf16.gmra.mxu0 %v2832
      %v2958 = vpop.f32.mrf.mxu0
      %v2959 = vadd.f32 0.0, %v2958
      %v2960 = vpop.f32.mrf.mxu0
      %v2961 = vpop.f32.mrf.mxu0
      %v2962 = vadd.f32 0.0, %v2961
      %v2963 = vpop.f32.mrf.mxu0
      %2964 = vmatprep.mubr.bf16.mxu0 0
      %2965 = vmatmul.mubr.bf16.gmra.mxu0 %v2833
      %v2966 = vpop.f32.mrf.mxu0
      %v2967 = vadd.f32 0.0, %v2966
      %v2968 = vpop.f32.mrf.mxu0
      %v2969 = vpop.f32.mrf.mxu0
      %v2970 = vadd.f32 0.0, %v2969
      %v2971 = vpop.f32.mrf.mxu0
      %2972 = vmatprep.mubr.bf16.mxu0 0
      %2973 = vmatmul.mubr.bf16.gmra.mxu0 %v2834
      %v2974 = vpop.f32.mrf.mxu0
      %v2975 = vadd.f32 0.0, %v2974
      %v2976 = vpop.f32.mrf.mxu0
      %v2977 = vpop.f32.mrf.mxu0
      %v2978 = vadd.f32 0.0, %v2977
      %v2979 = vpop.f32.mrf.mxu0
      %2980 = vmatprep.mubr.bf16.mxu0 0
      %2981 = vmatmul.mubr.bf16.gmra.mxu0 %v2835
      %v2982 = vpop.f32.mrf.mxu0
      %v2983 = vadd.f32 0.0, %v2982
      %v2984 = vpop.f32.mrf.mxu0
      %v2985 = vpop.f32.mrf.mxu0
      %v2986 = vadd.f32 0.0, %v2985
      %v2987 = vpop.f32.mrf.mxu0
      %2988 = vdwg.mxu0
      %v2989 = vadd.f32 %v2668, %v2927
      %v2990 = vadd.f32 %v2669, %v2930
      %v2991 = vadd.f32 %v2670, %v2935
      %v2992 = vadd.f32 %v2671, %v2938
      %v2993 = vadd.f32 %v2672, %v2943
      %v2994 = vadd.f32 %v2673, %v2946
      %v2995 = vadd.f32 %v2674, %v2951
      %v2996 = vadd.f32 %v2675, %v2954
      %v2997 = vadd.f32 %v2676, %v2959
      %v2998 = vadd.f32 %v2677, %v2962
      %v2999 = vadd.f32 %v2678, %v2967
      %v3000 = vadd.f32 %v2679, %v2970
      %v3001 = vadd.f32 %v2680, %v2975
      %v3002 = vadd.f32 %v2681, %v2978
      %v3003 = vadd.f32 %v2682, %v2983
      %v3004 = vadd.f32 %v2683, %v2986
      %s3005 = scalar_lea.vmem [#allocation2], 16
      %v3006 = vld [vmem:[%s3005] sm:$0xf]
      %v3007 = vld [vmem:[%s3005 + $0x8] sm:$0xf]
      %v3008 = vld [vmem:[%s3005 + $0x10] sm:$0xf]
      %v3009 = vld [vmem:[%s3005 + $0x18] sm:$0xf]
      %v3010 = vld [vmem:[%s3005 + $0x20] sm:$0xf]
      %v3011 = vld [vmem:[%s3005 + $0x28] sm:$0xf]
      %v3012 = vld [vmem:[%s3005 + $0x30] sm:$0xf]
      %v3013 = vld [vmem:[%s3005 + $0x38] sm:$0xf]
      %v3014 = vld [vmem:[%s3005 + $0x50] sm:$0xf]
      %v3015 = vld [vmem:[%s3005 + $0x58] sm:$0xf]
      %v3016 = vld [vmem:[%s3005 + $0x60] sm:$0xf]
      %v3017 = vld [vmem:[%s3005 + $0x68] sm:$0xf]
      %v3018 = vld [vmem:[%s3005 + $0x70] sm:$0xf]
      %v3019 = vld [vmem:[%s3005 + $0x78] sm:$0xf]
      %v3020 = vld [vmem:[%s3005 + $0x80] sm:$0xf]
      %v3021 = vld [vmem:[%s3005 + $0x88] sm:$0xf]
      %v3022 = vld [vmem:[%s3 + $0x180] sm:$0xf]
      %v3023 = vld [vmem:[%s3 + $0x184] sm:$0xf]
      %v3024 = vld [vmem:[%s3 + $0x188] sm:$0xf]
      %v3025 = vld [vmem:[%s3 + $0x18c] sm:$0xf]
      %v3026 = vld [vmem:[%s3 + $0x190] sm:$0xf]
      %v3027 = vld [vmem:[%s3 + $0x194] sm:$0xf]
      %v3028 = vld [vmem:[%s3 + $0x198] sm:$0xf]
      %v3029 = vld [vmem:[%s3 + $0x19c] sm:$0xf]
      %v3030 = vld [vmem:[%s3 + $0x1a0] sm:$0xf]
      %v3031 = vld [vmem:[%s3 + $0x1a4] sm:$0xf]
      %v3032 = vld [vmem:[%s3 + $0x1a8] sm:$0xf]
      %v3033 = vld [vmem:[%s3 + $0x1ac] sm:$0xf]
      %v3034 = vld [vmem:[%s3 + $0x1b0] sm:$0xf]
      %v3035 = vld [vmem:[%s3 + $0x1b4] sm:$0xf]
      %v3036 = vld [vmem:[%s3 + $0x1b8] sm:$0xf]
      %v3037 = vld [vmem:[%s3 + $0x1bc] sm:$0xf]
      %v3054 = vunpack.c.l.b16 %v3006
      %v3055 = vunpack.c.l.b16 %v3007
      %v3056 = vunpack.c.l.b16 %v3008
      %v3057 = vunpack.c.l.b16 %v3009
      %v3058 = vunpack.c.l.b16 %v3010
      %v3059 = vunpack.c.l.b16 %v3011
      %v3060 = vunpack.c.l.b16 %v3012
      %v3061 = vunpack.c.l.b16 %v3013
      %v3062 = vunpack.c.l.b16 %v3014
      %v3063 = vunpack.c.l.b16 %v3015
      %v3064 = vunpack.c.l.b16 %v3016
      %v3065 = vunpack.c.l.b16 %v3017
      %v3066 = vunpack.c.l.b16 %v3018
      %v3067 = vunpack.c.l.b16 %v3019
      %v3068 = vunpack.c.l.b16 %v3020
      %v3069 = vunpack.c.l.b16 %v3021
      %v3070 = vpack.c.b16 %v3055, %v3054
      %v3071 = vpack.c.b16 %v3057, %v3056
      %v3072 = vpack.c.b16 %v3059, %v3058
      %v3073 = vpack.c.b16 %v3061, %v3060
      %v3074 = vpack.c.b16 %v3063, %v3062
      %v3075 = vpack.c.b16 %v3065, %v3064
      %v3076 = vpack.c.b16 %v3067, %v3066
      %v3077 = vpack.c.b16 %v3069, %v3068
      %v3102 = vunpack.c.l.b16 %v3022
      %v3103 = vunpack.c.l.b16 %v3023
      %v3104 = vunpack.c.l.b16 %v3024
      %v3105 = vunpack.c.l.b16 %v3025
      %v3106 = vunpack.c.l.b16 %v3026
      %v3107 = vunpack.c.l.b16 %v3027
      %v3108 = vunpack.c.l.b16 %v3028
      %v3109 = vunpack.c.l.b16 %v3029
      %v3110 = vunpack.c.l.b16 %v3030
      %v3111 = vunpack.c.l.b16 %v3031
      %v3112 = vunpack.c.l.b16 %v3032
      %v3113 = vunpack.c.l.b16 %v3033
      %v3114 = vunpack.c.l.b16 %v3034
      %v3115 = vunpack.c.l.b16 %v3035
      %v3116 = vunpack.c.l.b16 %v3036
      %v3117 = vunpack.c.l.b16 %v3037
      %v3118 = vpack.c.b16 %v3103, %v3102
      %v3119 = vpack.c.b16 %v3105, %v3104
      %v3120 = vpack.c.b16 %v3107, %v3106
      %v3121 = vpack.c.b16 %v3109, %v3108
      %v3122 = vpack.c.b16 %v3111, %v3110
      %v3123 = vpack.c.b16 %v3113, %v3112
      %v3124 = vpack.c.b16 %v3115, %v3114
      %v3125 = vpack.c.b16 %v3117, %v3116
      %3134 = vmatprep.subr.bf16.mxu0 0
      %3135 = vmatpush1.bf16.msra.mxu0 %v3125
      %3136 = vmatprep.subr.bf16.mxu0 0
      %3137 = vmatpush1.bf16.msra.mxu0 %v3124
      %3138 = vmatprep.subr.bf16.mxu0 0
      %3139 = vmatpush1.bf16.msra.mxu0 %v3123
      %3140 = vmatprep.subr.bf16.mxu0 0
      %3141 = vmatpush1.bf16.msra.mxu0 %v3122
      %3142 = vmatprep.subr.bf16.mxu0 0
      %3143 = vmatpush1.bf16.msra.mxu0 %v3121
      %3144 = vmatprep.subr.bf16.mxu0 0
      %3145 = vmatpush1.bf16.msra.mxu0 %v3120
      %3146 = vmatprep.subr.bf16.mxu0 0
      %3147 = vmatpush1.bf16.msra.mxu0 %v3119
      %3148 = vmatprep.subr.bf16.mxu0 0
      %3149 = vmatpush1.bf16.msra.mxu0 %v3118
      %3150 = vmatprep.subr.bf16.mxu0 0
      %3151 = vmatpush2.bf16.msra.mxu0 0
      %3152 = vmatprep.subr.bf16.mxu0 0
      %3153 = vmatpush2.bf16.msra.mxu0 0
      %3154 = vmatprep.subr.bf16.mxu0 0
      %3155 = vmatpush2.bf16.msra.mxu0 0
      %3156 = vmatprep.subr.bf16.mxu0 0
      %3157 = vmatpush2.bf16.msra.mxu0 0
      %3158 = vmatprep.subr.bf16.mxu0 0
      %3159 = vmatpush2.bf16.msra.mxu0 0
      %3160 = vmatprep.subr.bf16.mxu0 0
      %3161 = vmatpush2.bf16.msra.mxu0 0
      %3162 = vmatprep.subr.bf16.mxu0 0
      %3163 = vmatpush2.bf16.msra.mxu0 0
      %3164 = vmatprep.subr.bf16.mxu0 0
      %3165 = vmatpush2.bf16.msra.mxu0 0
      %3166 = vmatprep.mubr.bf16.mxu0 0
      %3167 = vmatmul.mubr.bf16.gmra.mxu0 %v3070
      %v3168 = vpop.f32.mrf.mxu0
      %v3169 = vadd.f32 0.0, %v3168
      %v3170 = vpop.f32.mrf.mxu0
      %v3171 = vpop.f32.mrf.mxu0
      %v3172 = vadd.f32 0.0, %v3171
      %v3173 = vpop.f32.mrf.mxu0
      %3174 = vmatprep.mubr.bf16.mxu0 0
      %3175 = vmatmul.mubr.bf16.gmra.mxu0 %v3071
      %v3176 = vpop.f32.mrf.mxu0
      %v3177 = vadd.f32 0.0, %v3176
      %v3178 = vpop.f32.mrf.mxu0
      %v3179 = vpop.f32.mrf.mxu0
      %v3180 = vadd.f32 0.0, %v3179
      %v3181 = vpop.f32.mrf.mxu0
      %3182 = vmatprep.mubr.bf16.mxu0 0
      %3183 = vmatmul.mubr.bf16.gmra.mxu0 %v3072
      %v3184 = vpop.f32.mrf.mxu0
      %v3185 = vadd.f32 0.0, %v3184
      %v3186 = vpop.f32.mrf.mxu0
      %v3187 = vpop.f32.mrf.mxu0
      %v3188 = vadd.f32 0.0, %v3187
      %v3189 = vpop.f32.mrf.mxu0
      %3190 = vmatprep.mubr.bf16.mxu0 0
      %3191 = vmatmul.mubr.bf16.gmra.mxu0 %v3073
      %v3192 = vpop.f32.mrf.mxu0
      %v3193 = vadd.f32 0.0, %v3192
      %v3194 = vpop.f32.mrf.mxu0
      %v3195 = vpop.f32.mrf.mxu0
      %v3196 = vadd.f32 0.0, %v3195
      %v3197 = vpop.f32.mrf.mxu0
      %3198 = vmatprep.mubr.bf16.mxu0 0
      %3199 = vmatmul.mubr.bf16.gmra.mxu0 %v3074
      %v3200 = vpop.f32.mrf.mxu0
      %v3201 = vadd.f32 0.0, %v3200
      %v3202 = vpop.f32.mrf.mxu0
      %v3203 = vpop.f32.mrf.mxu0
      %v3204 = vadd.f32 0.0, %v3203
      %v3205 = vpop.f32.mrf.mxu0
      %3206 = vmatprep.mubr.bf16.mxu0 0
      %3207 = vmatmul.mubr.bf16.gmra.mxu0 %v3075
      %v3208 = vpop.f32.mrf.mxu0
      %v3209 = vadd.f32 0.0, %v3208
      %v3210 = vpop.f32.mrf.mxu0
      %v3211 = vpop.f32.mrf.mxu0
      %v3212 = vadd.f32 0.0, %v3211
      %v3213 = vpop.f32.mrf.mxu0
      %3214 = vmatprep.mubr.bf16.mxu0 0
      %3215 = vmatmul.mubr.bf16.gmra.mxu0 %v3076
      %v3216 = vpop.f32.mrf.mxu0
      %v3217 = vadd.f32 0.0, %v3216
      %v3218 = vpop.f32.mrf.mxu0
      %v3219 = vpop.f32.mrf.mxu0
      %v3220 = vadd.f32 0.0, %v3219
      %v3221 = vpop.f32.mrf.mxu0
      %3222 = vmatprep.mubr.bf16.mxu0 0
      %3223 = vmatmul.mubr.bf16.gmra.mxu0 %v3077
      %v3224 = vpop.f32.mrf.mxu0
      %v3225 = vadd.f32 0.0, %v3224
      %v3226 = vpop.f32.mrf.mxu0
      %v3227 = vpop.f32.mrf.mxu0
      %v3228 = vadd.f32 0.0, %v3227
      %v3229 = vpop.f32.mrf.mxu0
      %3230 = vdwg.mxu0
      %v3231 = vadd.f32 %v2989, %v3169
      %v3232 = vadd.f32 %v2990, %v3172
      %v3233 = vadd.f32 %v2991, %v3177
      %v3234 = vadd.f32 %v2992, %v3180
      %v3235 = vadd.f32 %v2993, %v3185
      %v3236 = vadd.f32 %v2994, %v3188
      %v3237 = vadd.f32 %v2995, %v3193
      %v3238 = vadd.f32 %v2996, %v3196
      %v3239 = vadd.f32 %v2997, %v3201
      %v3240 = vadd.f32 %v2998, %v3204
      %v3241 = vadd.f32 %v2999, %v3209
      %v3242 = vadd.f32 %v3000, %v3212
      %v3243 = vadd.f32 %v3001, %v3217
      %v3244 = vadd.f32 %v3002, %v3220
      %v3245 = vadd.f32 %v3003, %v3225
      %v3246 = vadd.f32 %v3004, %v3228
      %v3247 = vld [vmem:[%s3005] sm:$0xf]
      %v3248 = vld [vmem:[%s3005 + $0x4] sm:$0x1]
      %v3249 = vld [vmem:[%s3005 + $0x8] sm:$0xf]
      %v3250 = vld [vmem:[%s3005 + $0xc] sm:$0x1]
      %v3251 = vld [vmem:[%s3005 + $0x10] sm:$0xf]
      %v3252 = vld [vmem:[%s3005 + $0x14] sm:$0x1]
      %v3253 = vld [vmem:[%s3005 + $0x18] sm:$0xf]
      %v3254 = vld [vmem:[%s3005 + $0x1c] sm:$0x1]
      %v3255 = vld [vmem:[%s3005 + $0x20] sm:$0xf]
      %v3256 = vld [vmem:[%s3005 + $0x24] sm:$0x1]
      %v3257 = vld [vmem:[%s3005 + $0x28] sm:$0xf]
      %v3258 = vld [vmem:[%s3005 + $0x2c] sm:$0x1]
      %v3259 = vld [vmem:[%s3005 + $0x30] sm:$0xf]
      %v3260 = vld [vmem:[%s3005 + $0x34] sm:$0x1]
      %v3261 = vld [vmem:[%s3005 + $0x38] sm:$0xf]
      %v3262 = vld [vmem:[%s3005 + $0x3c] sm:$0x1]
      %v3263 = vld [vmem:[%s3005 + $0x50] sm:$0xf]
      %v3264 = vld [vmem:[%s3005 + $0x54] sm:$0x1]
      %v3265 = vld [vmem:[%s3005 + $0x58] sm:$0xf]
      %v3266 = vld [vmem:[%s3005 + $0x5c] sm:$0x1]
      %v3267 = vld [vmem:[%s3005 + $0x60] sm:$0xf]
      %v3268 = vld [vmem:[%s3005 + $0x64] sm:$0x1]
      %v3269 = vld [vmem:[%s3005 + $0x68] sm:$0xf]
      %v3270 = vld [vmem:[%s3005 + $0x6c] sm:$0x1]
      %v3271 = vld [vmem:[%s3005 + $0x70] sm:$0xf]
      %v3272 = vld [vmem:[%s3005 + $0x74] sm:$0x1]
      %v3273 = vld [vmem:[%s3005 + $0x78] sm:$0xf]
      %v3274 = vld [vmem:[%s3005 + $0x7c] sm:$0x1]
      %v3275 = vld [vmem:[%s3005 + $0x80] sm:$0xf]
      %v3276 = vld [vmem:[%s3005 + $0x84] sm:$0x1]
      %v3277 = vld [vmem:[%s3005 + $0x88] sm:$0xf]
      %v3278 = vld [vmem:[%s3005 + $0x8c] sm:$0x1]
      %v3280 = vshrl.u32 %v3247, 16
      %v3282 = vrot.slane %v3280, 4
      %v3283 = vshll.u32 %v3247, 16
      %v3285 = vrot.slane %v3283, 5
      %v3286 = vor.u32 %v3282, %v3285
      %v3287 = vrot.slane %v3286, 4
      %v3289 = vshll.u32 %v3248, 16
      %v3291 = vrot.slane %v3289, 5
      %v3292 = vsel %vm1043, %v3287, %v3291
      %v3294 = vshrl.u32 %v3249, 16
      %v3296 = vrot.slane %v3294, 4
      %v3297 = vshll.u32 %v3249, 16
      %v3299 = vrot.slane %v3297, 5
      %v3300 = vor.u32 %v3296, %v3299
      %v3301 = vrot.slane %v3300, 4
      %v3303 = vshll.u32 %v3250, 16
      %v3305 = vrot.slane %v3303, 5
      %v3306 = vsel %vm1043, %v3301, %v3305
      %v3308 = vshrl.u32 %v3251, 16
      %v3310 = vrot.slane %v3308, 4
      %v3311 = vshll.u32 %v3251, 16
      %v3313 = vrot.slane %v3311, 5
      %v3314 = vor.u32 %v3310, %v3313
      %v3315 = vrot.slane %v3314, 4
      %v3317 = vshll.u32 %v3252, 16
      %v3319 = vrot.slane %v3317, 5
      %v3320 = vsel %vm1043, %v3315, %v3319
      %v3322 = vshrl.u32 %v3253, 16
      %v3324 = vrot.slane %v3322, 4
      %v3325 = vshll.u32 %v3253, 16
      %v3327 = vrot.slane %v3325, 5
      %v3328 = vor.u32 %v3324, %v3327
      %v3329 = vrot.slane %v3328, 4
      %v3331 = vshll.u32 %v3254, 16
      %v3333 = vrot.slane %v3331, 5
      %v3334 = vsel %vm1043, %v3329, %v3333
      %v3336 = vshrl.u32 %v3255, 16
      %v3338 = vrot.slane %v3336, 4
      %v3339 = vshll.u32 %v3255, 16
      %v3341 = vrot.slane %v3339, 5
      %v3342 = vor.u32 %v3338, %v3341
      %v3343 = vrot.slane %v3342, 4
      %v3345 = vshll.u32 %v3256, 16
      %v3347 = vrot.slane %v3345, 5
      %v3348 = vsel %vm1043, %v3343, %v3347
      %v3350 = vshrl.u32 %v3257, 16
      %v3352 = vrot.slane %v3350, 4
      %v3353 = vshll.u32 %v3257, 16
      %v3355 = vrot.slane %v3353, 5
      %v3356 = vor.u32 %v3352, %v3355
      %v3357 = vrot.slane %v3356, 4
      %v3359 = vshll.u32 %v3258, 16
      %v3361 = vrot.slane %v3359, 5
      %v3362 = vsel %vm1043, %v3357, %v3361
      %v3364 = vshrl.u32 %v3259, 16
      %v3366 = vrot.slane %v3364, 4
      %v3367 = vshll.u32 %v3259, 16
      %v3369 = vrot.slane %v3367, 5
      %v3370 = vor.u32 %v3366, %v3369
      %v3371 = vrot.slane %v3370, 4
      %v3373 = vshll.u32 %v3260, 16
      %v3375 = vrot.slane %v3373, 5
      %v3376 = vsel %vm1043, %v3371, %v3375
      %v3378 = vshrl.u32 %v3261, 16
      %v3380 = vrot.slane %v3378, 4
      %v3381 = vshll.u32 %v3261, 16
      %v3383 = vrot.slane %v3381, 5
      %v3384 = vor.u32 %v3380, %v3383
      %v3385 = vrot.slane %v3384, 4
      %v3387 = vshll.u32 %v3262, 16
      %v3389 = vrot.slane %v3387, 5
      %v3390 = vsel %vm1043, %v3385, %v3389
      %v3392 = vshrl.u32 %v3263, 16
      %v3394 = vrot.slane %v3392, 4
      %v3395 = vshll.u32 %v3263, 16
      %v3397 = vrot.slane %v3395, 5
      %v3398 = vor.u32 %v3394, %v3397
      %v3399 = vrot.slane %v3398, 4
      %v3401 = vshll.u32 %v3264, 16
      %v3403 = vrot.slane %v3401, 5
      %v3404 = vsel %vm1043, %v3399, %v3403
      %v3406 = vshrl.u32 %v3265, 16
      %v3408 = vrot.slane %v3406, 4
      %v3409 = vshll.u32 %v3265, 16
      %v3411 = vrot.slane %v3409, 5
      %v3412 = vor.u32 %v3408, %v3411
      %v3413 = vrot.slane %v3412, 4
      %v3415 = vshll.u32 %v3266, 16
      %v3417 = vrot.slane %v3415, 5
      %v3418 = vsel %vm1043, %v3413, %v3417
      %v3420 = vshrl.u32 %v3267, 16
      %v3422 = vrot.slane %v3420, 4
      %v3423 = vshll.u32 %v3267, 16
      %v3425 = vrot.slane %v3423, 5
      %v3426 = vor.u32 %v3422, %v3425
      %v3427 = vrot.slane %v3426, 4
      %v3429 = vshll.u32 %v3268, 16
      %v3431 = vrot.slane %v3429, 5
      %v3432 = vsel %vm1043, %v3427, %v3431
      %v3434 = vshrl.u32 %v3269, 16
      %v3436 = vrot.slane %v3434, 4
      %v3437 = vshll.u32 %v3269, 16
      %v3439 = vrot.slane %v3437, 5
      %v3440 = vor.u32 %v3436, %v3439
      %v3441 = vrot.slane %v3440, 4
      %v3443 = vshll.u32 %v3270, 16
      %v3445 = vrot.slane %v3443, 5
      %v3446 = vsel %vm1043, %v3441, %v3445
      %v3448 = vshrl.u32 %v3271, 16
      %v3450 = vrot.slane %v3448, 4
      %v3451 = vshll.u32 %v3271, 16
      %v3453 = vrot.slane %v3451, 5
      %v3454 = vor.u32 %v3450, %v3453
      %v3455 = vrot.slane %v3454, 4
      %v3457 = vshll.u32 %v3272, 16
      %v3459 = vrot.slane %v3457, 5
      %v3460 = vsel %vm1043, %v3455, %v3459
      %v3462 = vshrl.u32 %v3273, 16
      %v3464 = vrot.slane %v3462, 4
      %v3465 = vshll.u32 %v3273, 16
      %v3467 = vrot.slane %v3465, 5
      %v3468 = vor.u32 %v3464, %v3467
      %v3469 = vrot.slane %v3468, 4
      %v3471 = vshll.u32 %v3274, 16
      %v3473 = vrot.slane %v3471, 5
      %v3474 = vsel %vm1043, %v3469, %v3473
      %v3476 = vshrl.u32 %v3275, 16
      %v3478 = vrot.slane %v3476, 4
      %v3479 = vshll.u32 %v3275, 16
      %v3481 = vrot.slane %v3479, 5
      %v3482 = vor.u32 %v3478, %v3481
      %v3483 = vrot.slane %v3482, 4
      %v3485 = vshll.u32 %v3276, 16
      %v3487 = vrot.slane %v3485, 5
      %v3488 = vsel %vm1043, %v3483, %v3487
      %v3490 = vshrl.u32 %v3277, 16
      %v3492 = vrot.slane %v3490, 4
      %v3493 = vshll.u32 %v3277, 16
      %v3495 = vrot.slane %v3493, 5
      %v3496 = vor.u32 %v3492, %v3495
      %v3497 = vrot.slane %v3496, 4
      %v3499 = vshll.u32 %v3278, 16
      %v3501 = vrot.slane %v3499, 5
      %v3502 = vsel %vm1043, %v3497, %v3501
      %v3503 = vld [vmem:[%s3 + $0x1c0] sm:$0xf]
      %v3504 = vld [vmem:[%s3 + $0x1c4] sm:$0xf]
      %v3505 = vld [vmem:[%s3 + $0x1c8] sm:$0xf]
      %v3506 = vld [vmem:[%s3 + $0x1cc] sm:$0xf]
      %v3507 = vld [vmem:[%s3 + $0x1d0] sm:$0xf]
      %v3508 = vld [vmem:[%s3 + $0x1d4] sm:$0xf]
      %v3509 = vld [vmem:[%s3 + $0x1d8] sm:$0xf]
      %v3510 = vld [vmem:[%s3 + $0x1dc] sm:$0xf]
      %v3511 = vld [vmem:[%s3 + $0x1e0] sm:$0xf]
      %v3512 = vld [vmem:[%s3 + $0x1e4] sm:$0xf]
      %v3513 = vld [vmem:[%s3 + $0x1e8] sm:$0xf]
      %v3514 = vld [vmem:[%s3 + $0x1ec] sm:$0xf]
      %v3515 = vld [vmem:[%s3 + $0x1f0] sm:$0xf]
      %v3516 = vld [vmem:[%s3 + $0x1f4] sm:$0xf]
      %v3517 = vld [vmem:[%s3 + $0x1f8] sm:$0xf]
      %v3518 = vld [vmem:[%s3 + $0x1fc] sm:$0xf]
      %v3519 = vunpack.c.l.b16 %v3292
      %v3520 = vunpack.c.l.b16 %v3306
      %v3521 = vunpack.c.l.b16 %v3320
      %v3522 = vunpack.c.l.b16 %v3334
      %v3523 = vunpack.c.l.b16 %v3348
      %v3524 = vunpack.c.l.b16 %v3362
      %v3525 = vunpack.c.l.b16 %v3376
      %v3526 = vunpack.c.l.b16 %v3390
      %v3527 = vunpack.c.l.b16 %v3404
      %v3528 = vunpack.c.l.b16 %v3418
      %v3529 = vunpack.c.l.b16 %v3432
      %v3530 = vunpack.c.l.b16 %v3446
      %v3531 = vunpack.c.l.b16 %v3460
      %v3532 = vunpack.c.l.b16 %v3474
      %v3533 = vunpack.c.l.b16 %v3488
      %v3534 = vunpack.c.l.b16 %v3502
      %v3535 = vpack.c.b16 %v3520, %v3519
      %v3536 = vpack.c.b16 %v3522, %v3521
      %v3537 = vpack.c.b16 %v3524, %v3523
      %v3538 = vpack.c.b16 %v3526, %v3525
      %v3539 = vpack.c.b16 %v3528, %v3527
      %v3540 = vpack.c.b16 %v3530, %v3529
      %v3541 = vpack.c.b16 %v3532, %v3531
      %v3542 = vpack.c.b16 %v3534, %v3533
      %v3567 = vunpack.c.l.b16 %v3503
      %v3568 = vunpack.c.l.b16 %v3504
      %v3569 = vunpack.c.l.b16 %v3505
      %v3570 = vunpack.c.l.b16 %v3506
      %v3571 = vunpack.c.l.b16 %v3507
      %v3572 = vunpack.c.l.b16 %v3508
      %v3573 = vunpack.c.l.b16 %v3509
      %v3574 = vunpack.c.l.b16 %v3510
      %v3575 = vunpack.c.l.b16 %v3511
      %v3576 = vunpack.c.l.b16 %v3512
      %v3577 = vunpack.c.l.b16 %v3513
      %v3578 = vunpack.c.l.b16 %v3514
      %v3579 = vunpack.c.l.b16 %v3515
      %v3580 = vunpack.c.l.b16 %v3516
      %v3581 = vunpack.c.l.b16 %v3517
      %v3582 = vunpack.c.l.b16 %v3518
      %v3583 = vpack.c.b16 %v3568, %v3567
      %v3584 = vpack.c.b16 %v3570, %v3569
      %v3585 = vpack.c.b16 %v3572, %v3571
      %v3586 = vpack.c.b16 %v3574, %v3573
      %v3587 = vpack.c.b16 %v3576, %v3575
      %v3588 = vpack.c.b16 %v3578, %v3577
      %v3589 = vpack.c.b16 %v3580, %v3579
      %v3590 = vpack.c.b16 %v3582, %v3581
      %3599 = vmatprep.subr.bf16.mxu0 0
      %3600 = vmatpush1.bf16.msra.mxu0 %v3590
      %3601 = vmatprep.subr.bf16.mxu0 0
      %3602 = vmatpush1.bf16.msra.mxu0 %v3589
      %3603 = vmatprep.subr.bf16.mxu0 0
      %3604 = vmatpush1.bf16.msra.mxu0 %v3588
      %3605 = vmatprep.subr.bf16.mxu0 0
      %3606 = vmatpush1.bf16.msra.mxu0 %v3587
      %3607 = vmatprep.subr.bf16.mxu0 0
      %3608 = vmatpush1.bf16.msra.mxu0 %v3586
      %3609 = vmatprep.subr.bf16.mxu0 0
      %3610 = vmatpush1.bf16.msra.mxu0 %v3585
      %3611 = vmatprep.subr.bf16.mxu0 0
      %3612 = vmatpush1.bf16.msra.mxu0 %v3584
      %3613 = vmatprep.subr.bf16.mxu0 0
      %3614 = vmatpush1.bf16.msra.mxu0 %v3583
      %3615 = vmatprep.subr.bf16.mxu0 0
      %3616 = vmatpush2.bf16.msra.mxu0 0
      %3617 = vmatprep.subr.bf16.mxu0 0
      %3618 = vmatpush2.bf16.msra.mxu0 0
      %3619 = vmatprep.subr.bf16.mxu0 0
      %3620 = vmatpush2.bf16.msra.mxu0 0
      %3621 = vmatprep.subr.bf16.mxu0 0
      %3622 = vmatpush2.bf16.msra.mxu0 0
      %3623 = vmatprep.subr.bf16.mxu0 0
      %3624 = vmatpush2.bf16.msra.mxu0 0
      %3625 = vmatprep.subr.bf16.mxu0 0
      %3626 = vmatpush2.bf16.msra.mxu0 0
      %3627 = vmatprep.subr.bf16.mxu0 0
      %3628 = vmatpush2.bf16.msra.mxu0 0
      %3629 = vmatprep.subr.bf16.mxu0 0
      %3630 = vmatpush2.bf16.msra.mxu0 0
      %3631 = vmatprep.mubr.bf16.mxu0 0
      %3632 = vmatmul.mubr.bf16.gmra.mxu0 %v3535
      %v3633 = vpop.f32.mrf.mxu0
      %v3634 = vadd.f32 0.0, %v3633
      %v3635 = vpop.f32.mrf.mxu0
      %v3636 = vpop.f32.mrf.mxu0
      %v3637 = vadd.f32 0.0, %v3636
      %v3638 = vpop.f32.mrf.mxu0
      %3639 = vmatprep.mubr.bf16.mxu0 0
      %3640 = vmatmul.mubr.bf16.gmra.mxu0 %v3536
      %v3641 = vpop.f32.mrf.mxu0
      %v3642 = vadd.f32 0.0, %v3641
      %v3643 = vpop.f32.mrf.mxu0
      %v3644 = vpop.f32.mrf.mxu0
      %v3645 = vadd.f32 0.0, %v3644
      %v3646 = vpop.f32.mrf.mxu0
      %3647 = vmatprep.mubr.bf16.mxu0 0
      %3648 = vmatmul.mubr.bf16.gmra.mxu0 %v3537
      %v3649 = vpop.f32.mrf.mxu0
      %v3650 = vadd.f32 0.0, %v3649
      %v3651 = vpop.f32.mrf.mxu0
      %v3652 = vpop.f32.mrf.mxu0
      %v3653 = vadd.f32 0.0, %v3652
      %v3654 = vpop.f32.mrf.mxu0
      %3655 = vmatprep.mubr.bf16.mxu0 0
      %3656 = vmatmul.mubr.bf16.gmra.mxu0 %v3538
      %v3657 = vpop.f32.mrf.mxu0
      %v3658 = vadd.f32 0.0, %v3657
      %v3659 = vpop.f32.mrf.mxu0
      %v3660 = vpop.f32.mrf.mxu0
      %v3661 = vadd.f32 0.0, %v3660
      %v3662 = vpop.f32.mrf.mxu0
      %3663 = vmatprep.mubr.bf16.mxu0 0
      %3664 = vmatmul.mubr.bf16.gmra.mxu0 %v3539
      %v3665 = vpop.f32.mrf.mxu0
      %v3666 = vadd.f32 0.0, %v3665
      %v3667 = vpop.f32.mrf.mxu0
      %v3668 = vpop.f32.mrf.mxu0
      %v3669 = vadd.f32 0.0, %v3668
      %v3670 = vpop.f32.mrf.mxu0
      %3671 = vmatprep.mubr.bf16.mxu0 0
      %3672 = vmatmul.mubr.bf16.gmra.mxu0 %v3540
      %v3673 = vpop.f32.mrf.mxu0
      %v3674 = vadd.f32 0.0, %v3673
      %v3675 = vpop.f32.mrf.mxu0
      %v3676 = vpop.f32.mrf.mxu0
      %v3677 = vadd.f32 0.0, %v3676
      %v3678 = vpop.f32.mrf.mxu0
      %3679 = vmatprep.mubr.bf16.mxu0 0
      %3680 = vmatmul.mubr.bf16.gmra.mxu0 %v3541
      %v3681 = vpop.f32.mrf.mxu0
      %v3682 = vadd.f32 0.0, %v3681
      %v3683 = vpop.f32.mrf.mxu0
      %v3684 = vpop.f32.mrf.mxu0
      %v3685 = vadd.f32 0.0, %v3684
      %v3686 = vpop.f32.mrf.mxu0
      %3687 = vmatprep.mubr.bf16.mxu0 0
      %3688 = vmatmul.mubr.bf16.gmra.mxu0 %v3542
      %v3689 = vpop.f32.mrf.mxu0
      %v3690 = vadd.f32 0.0, %v3689
      %v3691 = vpop.f32.mrf.mxu0
      %v3692 = vpop.f32.mrf.mxu0
      %v3693 = vadd.f32 0.0, %v3692
      %v3694 = vpop.f32.mrf.mxu0
      %3695 = vdwg.mxu0
      %v3696 = vadd.f32 %v3231, %v3634
      %v3697 = vadd.f32 %v3232, %v3637
      %v3698 = vadd.f32 %v3233, %v3642
      %v3699 = vadd.f32 %v3234, %v3645
      %v3700 = vadd.f32 %v3235, %v3650
      %v3701 = vadd.f32 %v3236, %v3653
      %v3702 = vadd.f32 %v3237, %v3658
      %v3703 = vadd.f32 %v3238, %v3661
      %v3704 = vadd.f32 %v3239, %v3666
      %v3705 = vadd.f32 %v3240, %v3669
      %v3706 = vadd.f32 %v3241, %v3674
      %v3707 = vadd.f32 %v3242, %v3677
      %v3708 = vadd.f32 %v3243, %v3682
      %v3709 = vadd.f32 %v3244, %v3685
      %v3710 = vadd.f32 %v3245, %v3690
      %v3711 = vadd.f32 %v3246, %v3693
      %v3712 = vld [vmem:[%s3005] sm:$0xe]
      %v3713 = vld [vmem:[%s3005 + $0x8] sm:$0xe]
      %v3714 = vld [vmem:[%s3005 + $0x10] sm:$0xe]
      %v3715 = vld [vmem:[%s3005 + $0x18] sm:$0xe]
      %v3716 = vld [vmem:[%s3005 + $0x20] sm:$0xe]
      %v3717 = vld [vmem:[%s3005 + $0x28] sm:$0xe]
      %v3718 = vld [vmem:[%s3005 + $0x30] sm:$0xe]
      %v3719 = vld [vmem:[%s3005 + $0x38] sm:$0xe]
      %v3720 = vld [vmem:[%s3005 + $0x50] sm:$0xe]
      %v3721 = vld [vmem:[%s3005 + $0x58] sm:$0xe]
      %v3722 = vld [vmem:[%s3005 + $0x60] sm:$0xe]
      %v3723 = vld [vmem:[%s3005 + $0x68] sm:$0xe]
      %v3724 = vld [vmem:[%s3005 + $0x70] sm:$0xe]
      %v3725 = vld [vmem:[%s3005 + $0x78] sm:$0xe]
      %v3726 = vld [vmem:[%s3005 + $0x80] sm:$0xe]
      %v3727 = vld [vmem:[%s3005 + $0x88] sm:$0xe]
      %v3760 = vrot.slane %v3712, 5
      %v3761 = vrot.slane %v3760, 4
      %v3762 = vrot.slane %v3248, 5
      %v3763 = vsel %vm1704, %v3761, %v3762
      %v3764 = vrot.slane %v3713, 5
      %v3765 = vrot.slane %v3764, 4
      %v3766 = vrot.slane %v3250, 5
      %v3767 = vsel %vm1704, %v3765, %v3766
      %v3768 = vrot.slane %v3714, 5
      %v3769 = vrot.slane %v3768, 4
      %v3770 = vrot.slane %v3252, 5
      %v3771 = vsel %vm1704, %v3769, %v3770
      %v3772 = vrot.slane %v3715, 5
      %v3773 = vrot.slane %v3772, 4
      %v3774 = vrot.slane %v3254, 5
      %v3775 = vsel %vm1704, %v3773, %v3774
      %v3776 = vrot.slane %v3716, 5
      %v3777 = vrot.slane %v3776, 4
      %v3778 = vrot.slane %v3256, 5
      %v3779 = vsel %vm1704, %v3777, %v3778
      %v3780 = vrot.slane %v3717, 5
      %v3781 = vrot.slane %v3780, 4
      %v3782 = vrot.slane %v3258, 5
      %v3783 = vsel %vm1704, %v3781, %v3782
      %v3784 = vrot.slane %v3718, 5
      %v3785 = vrot.slane %v3784, 4
      %v3786 = vrot.slane %v3260, 5
      %v3787 = vsel %vm1704, %v3785, %v3786
      %v3788 = vrot.slane %v3719, 5
      %v3789 = vrot.slane %v3788, 4
      %v3790 = vrot.slane %v3262, 5
      %v3791 = vsel %vm1704, %v3789, %v3790
      %v3792 = vrot.slane %v3720, 5
      %v3793 = vrot.slane %v3792, 4
      %v3794 = vrot.slane %v3264, 5
      %v3795 = vsel %vm1704, %v3793, %v3794
      %v3796 = vrot.slane %v3721, 5
      %v3797 = vrot.slane %v3796, 4
      %v3798 = vrot.slane %v3266, 5
      %v3799 = vsel %vm1704, %v3797, %v3798
      %v3800 = vrot.slane %v3722, 5
      %v3801 = vrot.slane %v3800, 4
      %v3802 = vrot.slane %v3268, 5
      %v3803 = vsel %vm1704, %v3801, %v3802
      %v3804 = vrot.slane %v3723, 5
      %v3805 = vrot.slane %v3804, 4
      %v3806 = vrot.slane %v3270, 5
      %v3807 = vsel %vm1704, %v3805, %v3806
      %v3808 = vrot.slane %v3724, 5
      %v3809 = vrot.slane %v3808, 4
      %v3810 = vrot.slane %v3272, 5
      %v3811 = vsel %vm1704, %v3809, %v3810
      %v3812 = vrot.slane %v3725, 5
      %v3813 = vrot.slane %v3812, 4
      %v3814 = vrot.slane %v3274, 5
      %v3815 = vsel %vm1704, %v3813, %v3814
      %v3816 = vrot.slane %v3726, 5
      %v3817 = vrot.slane %v3816, 4
      %v3818 = vrot.slane %v3276, 5
      %v3819 = vsel %vm1704, %v3817, %v3818
      %v3820 = vrot.slane %v3727, 5
      %v3821 = vrot.slane %v3820, 4
      %v3822 = vrot.slane %v3278, 5
      %v3823 = vsel %vm1704, %v3821, %v3822
      %v3824 = vld [vmem:[%s3 + $0x200] sm:$0xf]
      %v3825 = vld [vmem:[%s3 + $0x204] sm:$0xf]
      %v3826 = vld [vmem:[%s3 + $0x208] sm:$0xf]
      %v3827 = vld [vmem:[%s3 + $0x20c] sm:$0xf]
      %v3828 = vld [vmem:[%s3 + $0x210] sm:$0xf]
      %v3829 = vld [vmem:[%s3 + $0x214] sm:$0xf]
      %v3830 = vld [vmem:[%s3 + $0x218] sm:$0xf]
      %v3831 = vld [vmem:[%s3 + $0x21c] sm:$0xf]
      %v3832 = vld [vmem:[%s3 + $0x220] sm:$0xf]
      %v3833 = vld [vmem:[%s3 + $0x224] sm:$0xf]
      %v3834 = vld [vmem:[%s3 + $0x228] sm:$0xf]
      %v3835 = vld [vmem:[%s3 + $0x22c] sm:$0xf]
      %v3836 = vld [vmem:[%s3 + $0x230] sm:$0xf]
      %v3837 = vld [vmem:[%s3 + $0x234] sm:$0xf]
      %v3838 = vld [vmem:[%s3 + $0x238] sm:$0xf]
      %v3839 = vld [vmem:[%s3 + $0x23c] sm:$0xf]
      %v3840 = vunpack.c.l.b16 %v3763
      %v3841 = vunpack.c.l.b16 %v3767
      %v3842 = vunpack.c.l.b16 %v3771
      %v3843 = vunpack.c.l.b16 %v3775
      %v3844 = vunpack.c.l.b16 %v3779
      %v3845 = vunpack.c.l.b16 %v3783
      %v3846 = vunpack.c.l.b16 %v3787
      %v3847 = vunpack.c.l.b16 %v3791
      %v3848 = vunpack.c.l.b16 %v3795
      %v3849 = vunpack.c.l.b16 %v3799
      %v3850 = vunpack.c.l.b16 %v3803
      %v3851 = vunpack.c.l.b16 %v3807
      %v3852 = vunpack.c.l.b16 %v3811
      %v3853 = vunpack.c.l.b16 %v3815
      %v3854 = vunpack.c.l.b16 %v3819
      %v3855 = vunpack.c.l.b16 %v3823
      %v3856 = vpack.c.b16 %v3841, %v3840
      %v3857 = vpack.c.b16 %v3843, %v3842
      %v3858 = vpack.c.b16 %v3845, %v3844
      %v3859 = vpack.c.b16 %v3847, %v3846
      %v3860 = vpack.c.b16 %v3849, %v3848
      %v3861 = vpack.c.b16 %v3851, %v3850
      %v3862 = vpack.c.b16 %v3853, %v3852
      %v3863 = vpack.c.b16 %v3855, %v3854
      %v3888 = vunpack.c.l.b16 %v3824
      %v3889 = vunpack.c.l.b16 %v3825
      %v3890 = vunpack.c.l.b16 %v3826
      %v3891 = vunpack.c.l.b16 %v3827
      %v3892 = vunpack.c.l.b16 %v3828
      %v3893 = vunpack.c.l.b16 %v3829
      %v3894 = vunpack.c.l.b16 %v3830
      %v3895 = vunpack.c.l.b16 %v3831
      %v3896 = vunpack.c.l.b16 %v3832
      %v3897 = vunpack.c.l.b16 %v3833
      %v3898 = vunpack.c.l.b16 %v3834
      %v3899 = vunpack.c.l.b16 %v3835
      %v3900 = vunpack.c.l.b16 %v3836
      %v3901 = vunpack.c.l.b16 %v3837
      %v3902 = vunpack.c.l.b16 %v3838
      %v3903 = vunpack.c.l.b16 %v3839
      %v3904 = vpack.c.b16 %v3889, %v3888
      %v3905 = vpack.c.b16 %v3891, %v3890
      %v3906 = vpack.c.b16 %v3893, %v3892
      %v3907 = vpack.c.b16 %v3895, %v3894
      %v3908 = vpack.c.b16 %v3897, %v3896
      %v3909 = vpack.c.b16 %v3899, %v3898
      %v3910 = vpack.c.b16 %v3901, %v3900
      %v3911 = vpack.c.b16 %v3903, %v3902
      %3920 = vmatprep.subr.bf16.mxu0 0
      %3921 = vmatpush1.bf16.msra.mxu0 %v3911
      %3922 = vmatprep.subr.bf16.mxu0 0
      %3923 = vmatpush1.bf16.msra.mxu0 %v3910
      %3924 = vmatprep.subr.bf16.mxu0 0
      %3925 = vmatpush1.bf16.msra.mxu0 %v3909
      %3926 = vmatprep.subr.bf16.mxu0 0
      %3927 = vmatpush1.bf16.msra.mxu0 %v3908
      %3928 = vmatprep.subr.bf16.mxu0 0
      %3929 = vmatpush1.bf16.msra.mxu0 %v3907
      %3930 = vmatprep.subr.bf16.mxu0 0
      %3931 = vmatpush1.bf16.msra.mxu0 %v3906
      %3932 = vmatprep.subr.bf16.mxu0 0
      %3933 = vmatpush1.bf16.msra.mxu0 %v3905
      %3934 = vmatprep.subr.bf16.mxu0 0
      %3935 = vmatpush1.bf16.msra.mxu0 %v3904
      %3936 = vmatprep.subr.bf16.mxu0 0
      %3937 = vmatpush2.bf16.msra.mxu0 0
      %3938 = vmatprep.subr.bf16.mxu0 0
      %3939 = vmatpush2.bf16.msra.mxu0 0
      %3940 = vmatprep.subr.bf16.mxu0 0
      %3941 = vmatpush2.bf16.msra.mxu0 0
      %3942 = vmatprep.subr.bf16.mxu0 0
      %3943 = vmatpush2.bf16.msra.mxu0 0
      %3944 = vmatprep.subr.bf16.mxu0 0
      %3945 = vmatpush2.bf16.msra.mxu0 0
      %3946 = vmatprep.subr.bf16.mxu0 0
      %3947 = vmatpush2.bf16.msra.mxu0 0
      %3948 = vmatprep.subr.bf16.mxu0 0
      %3949 = vmatpush2.bf16.msra.mxu0 0
      %3950 = vmatprep.subr.bf16.mxu0 0
      %3951 = vmatpush2.bf16.msra.mxu0 0
      %3952 = vmatprep.mubr.bf16.mxu0 0
      %3953 = vmatmul.mubr.bf16.gmra.mxu0 %v3856
      %v3954 = vpop.f32.mrf.mxu0
      %v3955 = vadd.f32 0.0, %v3954
      %v3956 = vpop.f32.mrf.mxu0
      %v3957 = vpop.f32.mrf.mxu0
      %v3958 = vadd.f32 0.0, %v3957
      %v3959 = vpop.f32.mrf.mxu0
      %3960 = vmatprep.mubr.bf16.mxu0 0
      %3961 = vmatmul.mubr.bf16.gmra.mxu0 %v3857
      %v3962 = vpop.f32.mrf.mxu0
      %v3963 = vadd.f32 0.0, %v3962
      %v3964 = vpop.f32.mrf.mxu0
      %v3965 = vpop.f32.mrf.mxu0
      %v3966 = vadd.f32 0.0, %v3965
      %v3967 = vpop.f32.mrf.mxu0
      %3968 = vmatprep.mubr.bf16.mxu0 0
      %3969 = vmatmul.mubr.bf16.gmra.mxu0 %v3858
      %v3970 = vpop.f32.mrf.mxu0
      %v3971 = vadd.f32 0.0, %v3970
      %v3972 = vpop.f32.mrf.mxu0
      %v3973 = vpop.f32.mrf.mxu0
      %v3974 = vadd.f32 0.0, %v3973
      %v3975 = vpop.f32.mrf.mxu0
      %3976 = vmatprep.mubr.bf16.mxu0 0
      %3977 = vmatmul.mubr.bf16.gmra.mxu0 %v3859
      %v3978 = vpop.f32.mrf.mxu0
      %v3979 = vadd.f32 0.0, %v3978
      %v3980 = vpop.f32.mrf.mxu0
      %v3981 = vpop.f32.mrf.mxu0
      %v3982 = vadd.f32 0.0, %v3981
      %v3983 = vpop.f32.mrf.mxu0
      %3984 = vmatprep.mubr.bf16.mxu0 0
      %3985 = vmatmul.mubr.bf16.gmra.mxu0 %v3860
      %v3986 = vpop.f32.mrf.mxu0
      %v3987 = vadd.f32 0.0, %v3986
      %v3988 = vpop.f32.mrf.mxu0
      %v3989 = vpop.f32.mrf.mxu0
      %v3990 = vadd.f32 0.0, %v3989
      %v3991 = vpop.f32.mrf.mxu0
      %3992 = vmatprep.mubr.bf16.mxu0 0
      %3993 = vmatmul.mubr.bf16.gmra.mxu0 %v3861
      %v3994 = vpop.f32.mrf.mxu0
      %v3995 = vadd.f32 0.0, %v3994
      %v3996 = vpop.f32.mrf.mxu0
      %v3997 = vpop.f32.mrf.mxu0
      %v3998 = vadd.f32 0.0, %v3997
      %v3999 = vpop.f32.mrf.mxu0
      %4000 = vmatprep.mubr.bf16.mxu0 0
      %4001 = vmatmul.mubr.bf16.gmra.mxu0 %v3862
      %v4002 = vpop.f32.mrf.mxu0
      %v4003 = vadd.f32 0.0, %v4002
      %v4004 = vpop.f32.mrf.mxu0
      %v4005 = vpop.f32.mrf.mxu0
      %v4006 = vadd.f32 0.0, %v4005
      %v4007 = vpop.f32.mrf.mxu0
      %4008 = vmatprep.mubr.bf16.mxu0 0
      %4009 = vmatmul.mubr.bf16.gmra.mxu0 %v3863
      %v4010 = vpop.f32.mrf.mxu0
      %v4011 = vadd.f32 0.0, %v4010
      %v4012 = vpop.f32.mrf.mxu0
      %v4013 = vpop.f32.mrf.mxu0
      %v4014 = vadd.f32 0.0, %v4013
      %v4015 = vpop.f32.mrf.mxu0
      %4016 = vdwg.mxu0
      %v4017 = vadd.f32 %v3696, %v3955
      %v4018 = vadd.f32 %v3697, %v3958
      %v4019 = vadd.f32 %v3698, %v3963
      %v4020 = vadd.f32 %v3699, %v3966
      %v4021 = vadd.f32 %v3700, %v3971
      %v4022 = vadd.f32 %v3701, %v3974
      %v4023 = vadd.f32 %v3702, %v3979
      %v4024 = vadd.f32 %v3703, %v3982
      %v4025 = vadd.f32 %v3704, %v3987
      %v4026 = vadd.f32 %v3705, %v3990
      %v4027 = vadd.f32 %v3706, %v3995
      %v4028 = vadd.f32 %v3707, %v3998
      %v4029 = vadd.f32 %v3708, %v4003
      %v4030 = vadd.f32 %v3709, %v4006
      %v4031 = vadd.f32 %v3710, %v4011
      %v4032 = vadd.f32 %v3711, %v4014
      %v4033 = vld [vmem:[%s4] sm:$0x1]
      %v4035 = vlaneseq
      %v4036 = vshrl.u32 %v4035, 7
      %v4037 = vsub.s32 0, %v4036
      %v4038 = vrot.slane %v4033, %v4037
      %v4040 = vadd.f32 %v4017, %v4038
      %v4041 = vadd.f32 %v4018, %v4038
      %v4042 = vadd.f32 %v4019, %v4038
      %v4043 = vadd.f32 %v4020, %v4038
      %v4044 = vadd.f32 %v4021, %v4038
      %v4045 = vadd.f32 %v4022, %v4038
      %v4046 = vadd.f32 %v4023, %v4038
      %v4047 = vadd.f32 %v4024, %v4038
      %v4048 = vadd.f32 %v4025, %v4038
      %v4049 = vadd.f32 %v4026, %v4038
      %v4050 = vadd.f32 %v4027, %v4038
      %v4051 = vadd.f32 %v4028, %v4038
      %v4052 = vadd.f32 %v4029, %v4038
      %v4053 = vadd.f32 %v4030, %v4038
      %v4054 = vadd.f32 %v4031, %v4038
      %v4055 = vadd.f32 %v4032, %v4038
      %v4056 = vmax.f32 %v4040, 0.0
      %v4057 = vmax.f32 %v4041, 0.0
      %v4058 = vmax.f32 %v4042, 0.0
      %v4059 = vmax.f32 %v4043, 0.0
      %v4060 = vmax.f32 %v4044, 0.0
      %v4061 = vmax.f32 %v4045, 0.0
      %v4062 = vmax.f32 %v4046, 0.0
      %v4063 = vmax.f32 %v4047, 0.0
      %v4064 = vmax.f32 %v4048, 0.0
      %v4065 = vmax.f32 %v4049, 0.0
      %v4066 = vmax.f32 %v4050, 0.0
      %v4067 = vmax.f32 %v4051, 0.0
      %v4068 = vmax.f32 %v4052, 0.0
      %v4069 = vmax.f32 %v4053, 0.0
      %v4070 = vmax.f32 %v4054, 0.0
      %v4071 = vmax.f32 %v4055, 0.0
      %v4072 = vpack.c.bf16 %v4057, %v4056
      %v4073 = vpack.c.bf16 %v4059, %v4058
      %v4074 = vpack.c.bf16 %v4061, %v4060
      %v4075 = vpack.c.bf16 %v4063, %v4062
      %v4076 = vpack.c.bf16 %v4065, %v4064
      %v4077 = vpack.c.bf16 %v4067, %v4066
      %v4078 = vpack.c.bf16 %v4069, %v4068
      %v4079 = vpack.c.bf16 %v4071, %v4070
      %v4080 = vld [vmem:[%s5] sm:$0xf]
      %v4081 = vld [vmem:[%s5 + $0x4] sm:$0xf]
      %v4082 = vld [vmem:[%s5 + $0x8] sm:$0xf]
      %v4083 = vld [vmem:[%s5 + $0xc] sm:$0xf]
      %v4084 = vld [vmem:[%s5 + $0x10] sm:$0xf]
      %v4085 = vld [vmem:[%s5 + $0x14] sm:$0xf]
      %v4086 = vld [vmem:[%s5 + $0x18] sm:$0xf]
      %v4087 = vld [vmem:[%s5 + $0x1c] sm:$0xf]
      %v4088 = vld [vmem:[%s5 + $0x20] sm:$0xf]
      %v4089 = vld [vmem:[%s5 + $0x24] sm:$0xf]
      %v4090 = vld [vmem:[%s5 + $0x28] sm:$0xf]
      %v4091 = vld [vmem:[%s5 + $0x2c] sm:$0xf]
      %v4092 = vld [vmem:[%s5 + $0x30] sm:$0xf]
      %v4093 = vld [vmem:[%s5 + $0x34] sm:$0xf]
      %v4094 = vld [vmem:[%s5 + $0x38] sm:$0xf]
      %v4095 = vld [vmem:[%s5 + $0x3c] sm:$0xf]
      %v4096 = vld [vmem:[%s278] sm:$0xf]
      %v4097 = vld [vmem:[%s278 + $0x4] sm:$0xf]
      %v4098 = vld [vmem:[%s278 + $0x8] sm:$0xf]
      %v4099 = vld [vmem:[%s278 + $0xc] sm:$0xf]
      %v4100 = vld [vmem:[%s278 + $0x10] sm:$0xf]
      %v4101 = vld [vmem:[%s278 + $0x14] sm:$0xf]
      %v4102 = vld [vmem:[%s278 + $0x18] sm:$0xf]
      %v4103 = vld [vmem:[%s278 + $0x1c] sm:$0xf]
      %v4104 = vld [vmem:[%s278 + $0x20] sm:$0xf]
      %v4105 = vld [vmem:[%s278 + $0x24] sm:$0xf]
      %v4106 = vld [vmem:[%s278 + $0x28] sm:$0xf]
      %v4107 = vld [vmem:[%s278 + $0x2c] sm:$0xf]
      %v4108 = vld [vmem:[%s278 + $0x30] sm:$0xf]
      %v4109 = vld [vmem:[%s278 + $0x34] sm:$0xf]
      %v4110 = vld [vmem:[%s278 + $0x38] sm:$0xf]
      %v4111 = vld [vmem:[%s278 + $0x3c] sm:$0xf]
      %v4112 = vunpack.c.l.bf16 %v4096
      %v4113 = vunpack.c.l.bf16 %v4097
      %v4114 = vunpack.c.l.bf16 %v4098
      %v4115 = vunpack.c.l.bf16 %v4099
      %v4116 = vunpack.c.l.bf16 %v4100
      %v4117 = vunpack.c.l.bf16 %v4101
      %v4118 = vunpack.c.l.bf16 %v4102
      %v4119 = vunpack.c.l.bf16 %v4103
      %v4120 = vunpack.c.l.bf16 %v4104
      %v4121 = vunpack.c.l.bf16 %v4105
      %v4122 = vunpack.c.l.bf16 %v4106
      %v4123 = vunpack.c.l.bf16 %v4107
      %v4124 = vunpack.c.l.bf16 %v4108
      %v4125 = vunpack.c.l.bf16 %v4109
      %v4126 = vunpack.c.l.bf16 %v4110
      %v4127 = vunpack.c.l.bf16 %v4111
      %v4128 = vld [vmem:[%s6] sm:$0x1]
      %v4130 = vlaneseq
      %v4131 = vshrl.u32 %v4130, 7
      %v4132 = vsub.s32 0, %v4131
      %v4133 = vrot.slane %v4128, %v4132
      %v4151 = vunpack.c.l.b16 %v4080
      %v4152 = vunpack.c.l.b16 %v4081
      %v4153 = vunpack.c.l.b16 %v4082
      %v4154 = vunpack.c.l.b16 %v4083
      %v4155 = vunpack.c.l.b16 %v4084
      %v4156 = vunpack.c.l.b16 %v4085
      %v4157 = vunpack.c.l.b16 %v4086
      %v4158 = vunpack.c.l.b16 %v4087
      %v4159 = vunpack.c.l.b16 %v4088
      %v4160 = vunpack.c.l.b16 %v4089
      %v4161 = vunpack.c.l.b16 %v4090
      %v4162 = vunpack.c.l.b16 %v4091
      %v4163 = vunpack.c.l.b16 %v4092
      %v4164 = vunpack.c.l.b16 %v4093
      %v4165 = vunpack.c.l.b16 %v4094
      %v4166 = vunpack.c.l.b16 %v4095
      %v4167 = vpack.c.b16 %v4152, %v4151
      %v4168 = vpack.c.b16 %v4154, %v4153
      %v4169 = vpack.c.b16 %v4156, %v4155
      %v4170 = vpack.c.b16 %v4158, %v4157
      %v4171 = vpack.c.b16 %v4160, %v4159
      %v4172 = vpack.c.b16 %v4162, %v4161
      %v4173 = vpack.c.b16 %v4164, %v4163
      %v4174 = vpack.c.b16 %v4166, %v4165
      %4183 = vmatprep.subr.bf16.mxu0 0
      %4184 = vmatpush1.bf16.msra.mxu0 %v4174
      %4185 = vmatprep.subr.bf16.mxu0 0
      %4186 = vmatpush1.bf16.msra.mxu0 %v4173
      %4187 = vmatprep.subr.bf16.mxu0 0
      %4188 = vmatpush1.bf16.msra.mxu0 %v4172
      %4189 = vmatprep.subr.bf16.mxu0 0
      %4190 = vmatpush1.bf16.msra.mxu0 %v4171
      %4191 = vmatprep.subr.bf16.mxu0 0
      %4192 = vmatpush1.bf16.msra.mxu0 %v4170
      %4193 = vmatprep.subr.bf16.mxu0 0
      %4194 = vmatpush1.bf16.msra.mxu0 %v4169
      %4195 = vmatprep.subr.bf16.mxu0 0
      %4196 = vmatpush1.bf16.msra.mxu0 %v4168
      %4197 = vmatprep.subr.bf16.mxu0 0
      %4198 = vmatpush1.bf16.msra.mxu0 %v4167
      %4199 = vmatprep.subr.bf16.mxu0 0
      %4200 = vmatpush2.bf16.msra.mxu0 0
      %4201 = vmatprep.subr.bf16.mxu0 0
      %4202 = vmatpush2.bf16.msra.mxu0 0
      %4203 = vmatprep.subr.bf16.mxu0 0
      %4204 = vmatpush2.bf16.msra.mxu0 0
      %4205 = vmatprep.subr.bf16.mxu0 0
      %4206 = vmatpush2.bf16.msra.mxu0 0
      %4207 = vmatprep.subr.bf16.mxu0 0
      %4208 = vmatpush2.bf16.msra.mxu0 0
      %4209 = vmatprep.subr.bf16.mxu0 0
      %4210 = vmatpush2.bf16.msra.mxu0 0
      %4211 = vmatprep.subr.bf16.mxu0 0
      %4212 = vmatpush2.bf16.msra.mxu0 0
      %4213 = vmatprep.subr.bf16.mxu0 0
      %4214 = vmatpush2.bf16.msra.mxu0 0
      %4215 = vmatprep.mubr.bf16.mxu0 0
      %4216 = vmatmul.mubr.bf16.gmra.mxu0 %v4072
      %v4217 = vpop.f32.mrf.mxu0
      %v4218 = vadd.f32 %v4133, %v4217
      %v4219 = vpop.f32.mrf.mxu0
      %v4220 = vpop.f32.mrf.mxu0
      %v4221 = vadd.f32 %v4133, %v4220
      %v4222 = vpop.f32.mrf.mxu0
      %4223 = vmatprep.mubr.bf16.mxu0 0
      %4224 = vmatmul.mubr.bf16.gmra.mxu0 %v4073
      %v4225 = vpop.f32.mrf.mxu0
      %v4226 = vadd.f32 %v4133, %v4225
      %v4227 = vpop.f32.mrf.mxu0
      %v4228 = vpop.f32.mrf.mxu0
      %v4229 = vadd.f32 %v4133, %v4228
      %v4230 = vpop.f32.mrf.mxu0
      %4231 = vmatprep.mubr.bf16.mxu0 0
      %4232 = vmatmul.mubr.bf16.gmra.mxu0 %v4074
      %v4233 = vpop.f32.mrf.mxu0
      %v4234 = vadd.f32 %v4133, %v4233
      %v4235 = vpop.f32.mrf.mxu0
      %v4236 = vpop.f32.mrf.mxu0
      %v4237 = vadd.f32 %v4133, %v4236
      %v4238 = vpop.f32.mrf.mxu0
      %4239 = vmatprep.mubr.bf16.mxu0 0
      %4240 = vmatmul.mubr.bf16.gmra.mxu0 %v4075
      %v4241 = vpop.f32.mrf.mxu0
      %v4242 = vadd.f32 %v4133, %v4241
      %v4243 = vpop.f32.mrf.mxu0
      %v4244 = vpop.f32.mrf.mxu0
      %v4245 = vadd.f32 %v4133, %v4244
      %v4246 = vpop.f32.mrf.mxu0
      %4247 = vmatprep.mubr.bf16.mxu0 0
      %4248 = vmatmul.mubr.bf16.gmra.mxu0 %v4076
      %v4249 = vpop.f32.mrf.mxu0
      %v4250 = vadd.f32 %v4133, %v4249
      %v4251 = vpop.f32.mrf.mxu0
      %v4252 = vpop.f32.mrf.mxu0
      %v4253 = vadd.f32 %v4133, %v4252
      %v4254 = vpop.f32.mrf.mxu0
      %4255 = vmatprep.mubr.bf16.mxu0 0
      %4256 = vmatmul.mubr.bf16.gmra.mxu0 %v4077
      %v4257 = vpop.f32.mrf.mxu0
      %v4258 = vadd.f32 %v4133, %v4257
      %v4259 = vpop.f32.mrf.mxu0
      %v4260 = vpop.f32.mrf.mxu0
      %v4261 = vadd.f32 %v4133, %v4260
      %v4262 = vpop.f32.mrf.mxu0
      %4263 = vmatprep.mubr.bf16.mxu0 0
      %4264 = vmatmul.mubr.bf16.gmra.mxu0 %v4078
      %v4265 = vpop.f32.mrf.mxu0
      %v4266 = vadd.f32 %v4133, %v4265
      %v4267 = vpop.f32.mrf.mxu0
      %v4268 = vpop.f32.mrf.mxu0
      %v4269 = vadd.f32 %v4133, %v4268
      %v4270 = vpop.f32.mrf.mxu0
      %4271 = vmatprep.mubr.bf16.mxu0 0
      %4272 = vmatmul.mubr.bf16.gmra.mxu0 %v4079
      %v4273 = vpop.f32.mrf.mxu0
      %v4274 = vadd.f32 %v4133, %v4273
      %v4275 = vpop.f32.mrf.mxu0
      %v4276 = vpop.f32.mrf.mxu0
      %v4277 = vadd.f32 %v4133, %v4276
      %v4278 = vpop.f32.mrf.mxu0
      %4279 = vdwg.mxu0
      %v4280 = vadd.f32 %v4218, %v4112
      %v4281 = vadd.f32 %v4221, %v4113
      %v4282 = vadd.f32 %v4226, %v4114
      %v4283 = vadd.f32 %v4229, %v4115
      %v4284 = vadd.f32 %v4234, %v4116
      %v4285 = vadd.f32 %v4237, %v4117
      %v4286 = vadd.f32 %v4242, %v4118
      %v4287 = vadd.f32 %v4245, %v4119
      %v4288 = vadd.f32 %v4250, %v4120
      %v4289 = vadd.f32 %v4253, %v4121
      %v4290 = vadd.f32 %v4258, %v4122
      %v4291 = vadd.f32 %v4261, %v4123
      %v4292 = vadd.f32 %v4266, %v4124
      %v4293 = vadd.f32 %v4269, %v4125
      %v4294 = vadd.f32 %v4274, %v4126
      %v4295 = vadd.f32 %v4277, %v4127
      %v4296 = vmax.f32 %v4280, 0.0
      %v4297 = vmax.f32 %v4281, 0.0
      %v4298 = vmax.f32 %v4282, 0.0
      %v4299 = vmax.f32 %v4283, 0.0
      %v4300 = vmax.f32 %v4284, 0.0
      %v4301 = vmax.f32 %v4285, 0.0
      %v4302 = vmax.f32 %v4286, 0.0
      %v4303 = vmax.f32 %v4287, 0.0
      %v4304 = vmax.f32 %v4288, 0.0
      %v4305 = vmax.f32 %v4289, 0.0
      %v4306 = vmax.f32 %v4290, 0.0
      %v4307 = vmax.f32 %v4291, 0.0
      %v4308 = vmax.f32 %v4292, 0.0
      %v4309 = vmax.f32 %v4293, 0.0
      %v4310 = vmax.f32 %v4294, 0.0
      %v4311 = vmax.f32 %v4295, 0.0
      %v4312 = vpack.c.bf16 %v4296, %v4296
      %v4313 = vpack.c.bf16 %v4297, %v4297
      %v4314 = vpack.c.bf16 %v4298, %v4298
      %v4315 = vpack.c.bf16 %v4299, %v4299
      %v4316 = vpack.c.bf16 %v4300, %v4300
      %v4317 = vpack.c.bf16 %v4301, %v4301
      %v4318 = vpack.c.bf16 %v4302, %v4302
      %v4319 = vpack.c.bf16 %v4303, %v4303
      %v4320 = vpack.c.bf16 %v4304, %v4304
      %v4321 = vpack.c.bf16 %v4305, %v4305
      %v4322 = vpack.c.bf16 %v4306, %v4306
      %v4323 = vpack.c.bf16 %v4307, %v4307
      %v4324 = vpack.c.bf16 %v4308, %v4308
      %v4325 = vpack.c.bf16 %v4309, %v4309
      %v4326 = vpack.c.bf16 %v4310, %v4310
      %v4327 = vpack.c.bf16 %v4311, %v4311
      %4328 = vst [vmem:[%s285] sm:$0xf] %v4312
      %4329 = vst [vmem:[%s285 + $0x4] sm:$0xf] %v4313
      %4330 = vst [vmem:[%s285 + $0x8] sm:$0xf] %v4314
      %4331 = vst [vmem:[%s285 + $0xc] sm:$0xf] %v4315
      %4332 = vst [vmem:[%s285 + $0x10] sm:$0xf] %v4316
      %4333 = vst [vmem:[%s285 + $0x14] sm:$0xf] %v4317
      %4334 = vst [vmem:[%s285 + $0x18] sm:$0xf] %v4318
      %4335 = vst [vmem:[%s285 + $0x1c] sm:$0xf] %v4319
      %4336 = vst [vmem:[%s285 + $0x20] sm:$0xf] %v4320
      %4337 = vst [vmem:[%s285 + $0x24] sm:$0xf] %v4321
      %4338 = vst [vmem:[%s285 + $0x28] sm:$0xf] %v4322
      %4339 = vst [vmem:[%s285 + $0x2c] sm:$0xf] %v4323
      %4340 = vst [vmem:[%s285 + $0x30] sm:$0xf] %v4324
      %4341 = vst [vmem:[%s285 + $0x34] sm:$0xf] %v4325
      %4342 = vst [vmem:[%s285 + $0x38] sm:$0xf] %v4326
      %4343 = vst [vmem:[%s285 + $0x3c] sm:$0xf] %v4327
      %s4344 = smul.u32 2, %s18
      %p4345 = scmp.lt.s32.totalorder %s4344, 7
      %s4346 = scalar_select %p4345, %s4344, 7
      %s4347 = smul.addr %s4346, 8
      %s4348 = smul.addr %s4347, 4
      %s4349 = scalar_lea.vmem %s7, %s4348
      // Predicated region
      $region49: #{bottleneck_forward.1} parent=47 // pred_check
        %p4350 = pneg %p188
      $region50: #{bottleneck_forward.1} parent=47 // pred_check_branch
        %4352 = sbr.rel (%p4350) target = $region52
      $region51: #{bottleneck_forward.1} parent=47 // pred_region
        %s4353 = smul.u32 2, %s18
      $region52: #{bottleneck_forward.1} parent=47 // pred_fallthru
        _
    $region48: #{bottleneck_forward.1} parent=5 // pred_fallthru
      _
    %p4354 = scmp.le.s32.totalorder 2, %s13
    // Predicated region
    $region53: #{bottleneck_forward.1} parent=5 // pred_check
      %p4355 = pneg %p4354
    $region54: #{bottleneck_forward.1} parent=5 // pred_check_branch
      %4357 = sbr.rel (%p4355) target = $region56
    $region55: #{bottleneck_forward.1} parent=5 // pred_region
      %s4358 = ssub.s32 %s13, 2
      // Predicated region
      $region57: #{bottleneck_forward.1} parent=55 // pred_check
        %p4359 = pneg %p194
      $region58: #{bottleneck_forward.1} parent=55 // pred_check_branch
        %4361 = sbr.rel (%p4359) target = $region60
      $region59: #{bottleneck_forward.1} parent=55 // pred_region
        %s4362 = smul.u32 2, %s19
        %p4363 = scmp.lt.s32.totalorder %s4362, 7
        %s4364 = scalar_select %p4363, %s4362, 7
        %s4365 = smul.addr %s4364, 8
        %s4366 = smul.addr %s4365, 4
        %s4367 = scalar_lea.vmem %s7, %s4366
      $region60: #{bottleneck_forward.1} parent=55 // pred_fallthru
        _
    $region56: #{bottleneck_forward.1} parent=5 // pred_fallthru
      _
  $region6: #{bottleneck_forward.1} parent=0 // loop_footer
    %s17 = sadd.s32 1, %s13
  $region7: #{bottleneck_forward.1} parent=0 // loop_footer_branch
    %12 = sbr.rel target = $region3
  $region8: #{bottleneck_forward.1} parent=0 // loop_exit
    _

</llo_original>
